<compile_context>
chip_gen: v6e
topology: v6e:2x2x1
jax: 0.10.0
libtpu: 0.0.40
codegen_flags: <defaults>
</compile_context>

<pallas_src>
import functools
import math

import jax
import jax.numpy as jnp
from jax.experimental import pallas as pl
from jax.experimental.pallas import tpu as pltpu


# ---------------------------------------------------------------------------
# Kernel 1: fused Q/V projection + RoPE on Q.  Grid: (batch, seq tiles).
# ---------------------------------------------------------------------------
def qkv_rope_kernel(x_ref, wqv_ref, cos_ref, sin_ref, q_ref, v_ref, *, d_model):
    x = x_ref[0]                                        # (tm, D), bf16
    # Single MXU pass for both projections: (tm, D) @ (D, 2D) -> (tm, 2D) f32.
    xqv = jnp.dot(x, wqv_ref[...], preferred_element_type=jnp.float32)
    xq = xqv[:, :d_model]
    xv = xqv[:, d_model:]

    # RoPE over the full hidden dim: q*cos + rotate_half(q)*sin, where
    # rotate_half(t) = concat(-t[:, D/2:], t[:, :D/2]).  The softmax scale
    # sqrt(1/sqrt(hd)) is already folded into cos/sin by the wrapper.
    half = d_model // 2
    rot = jnp.concatenate([-xq[:, half:], xq[:, :half]], axis=-1)
    q_rope = xq * cos_ref[...] + rot * sin_ref[...]

    q_ref[0] = q_rope.astype(q_ref.dtype)
    v_ref[0] = xv.astype(v_ref.dtype)


def qkv_rope(x, wq, wv, cos, sin, *, rope_scale=1.0, seq_block=512):
    B, S, D = x.shape
    tm = min(seq_block, S)
    assert S % tm == 0, "seq len must divide the sequence tile"

    # One-time XLA-level layout/dtype fixes (free relative to the kernel):
    #   - weights transposed to (D_in, D_out) and fused into one (D, 2D) slab,
    #   - sqrt(softmax scale) folded into the RoPE tables (kept in f32).
    w_qv = jnp.concatenate([wq.T, wv.T], axis=1).astype(x.dtype)   # (D, 2D)
    cos_s = (cos * rope_scale).astype(jnp.float32)
    sin_s = (sin * rope_scale).astype(jnp.float32)

    out = jax.ShapeDtypeStruct((B, S, D), x.dtype)
    kernel = functools.partial(qkv_rope_kernel, d_model=D)
    return pl.pallas_call(
        kernel,
        out_shape=(out, out),
        grid_spec=pltpu.PrefetchScalarGridSpec(
            num_scalar_prefetch=0,
            grid=(B, S // tm),
            in_specs=[
                pl.BlockSpec((1, tm, D), lambda b, s: (b, s, 0)),
                # Constant weight block.  For production D, single-buffer this
                # (pipeline_mode=pl.Buffered(1)) and/or tile D_out.
                pl.BlockSpec((D, 2 * D), lambda b, s: (0, 0)),
                pl.BlockSpec((tm, D), lambda b, s: (s, 0)),
                pl.BlockSpec((tm, D), lambda b, s: (s, 0)),
            ],
            out_specs=[
                pl.BlockSpec((1, tm, D), lambda b, s: (b, s, 0)),
                pl.BlockSpec((1, tm, D), lambda b, s: (b, s, 0)),
            ],
        ),
        compiler_params=pltpu.CompilerParams(
            dimension_semantics=("parallel", "parallel"),
            vmem_limit_bytes=48 * 1024 * 1024),
    )(x, w_qv, cos_s, sin_s)


# ---------------------------------------------------------------------------
# Kernel 2: flash-style causal attention over (B, S, D) with BlockSpec head
# slicing.  Grid: (batch, head, flat triangular (qi, ki) step); the flat step
# axis is the reduction.  Above-diagonal (fully masked) tiles never become
# grid steps at all.
# ---------------------------------------------------------------------------
def flash_sdpa_kernel(step_q_ref, step_k_ref, q_ref, k_ref, v_ref, o_ref,
                      m_sc, l_sc, acc_sc, *, tq, tk, exp_dtype):
    s_idx = pl.program_id(2)
    qi = step_q_ref[s_idx]          # which Q tile this step belongs to
    ki = step_k_ref[s_idx]          # which KV tile this step processes

    @pl.when(ki == 0)
    def _init():
        m_sc[...] = jnp.full(m_sc.shape, -1e30, jnp.float32)
        l_sc[...] = jnp.zeros(l_sc.shape, jnp.float32)
        acc_sc[...] = jnp.zeros(acc_sc.shape, jnp.float32)

    def process(masked):
        q = q_ref[0]                 # (tq, hd) bf16 (scale folded into RoPE)
        k = k_ref[0]                 # (tk, hd) bf16
        v = v_ref[0]                 # (tk, hd) bf16
        # QK^T as an NT dot_general: bf16 operands, f32 accumulation on MXU.
        s = jax.lax.dot_general(
            q, k, dimension_numbers=(((1,), (1,)), ((), ())),
            preferred_element_type=jnp.float32)          # (tq, tk) f32
        if masked:
            # Diagonal tile (ki == qi, tq == tk): local causal mask suffices.
            row = jax.lax.broadcasted_iota(jnp.int32, (tq, tk), 0)
            col = jax.lax.broadcasted_iota(jnp.int32, (tq, tk), 1)
            s = jnp.where(col <= row, s, -1e30)
        m_prev = m_sc[...]
        m_new = jnp.maximum(m_prev, s.max(axis=-1, keepdims=True))
        alpha = jnp.exp(m_prev - m_new)
        # bf16 exp argument: EUP-friendly on v6e/v7x (use f32 on v5e).
        p = jnp.exp((s - m_new).astype(exp_dtype))
        l_sc[...] = alpha * l_sc[...] + jnp.sum(
            p, axis=-1, keepdims=True, dtype=jnp.float32)
        acc_sc[...] = alpha * acc_sc[...] + jnp.dot(
            p.astype(v.dtype), v, preferred_element_type=jnp.float32)
        m_sc[...] = m_new

    # Strictly-below-diagonal KV tiles: fully visible, no mask math.
    @pl.when(ki < qi)
    def _full():
        process(masked=False)

    # Diagonal KV tile: apply the causal mask, then finalize this Q tile.
    @pl.when(ki == qi)
    def _diag():
        process(masked=True)
        o_ref[0] = (acc_sc[...] / l_sc[...]).astype(o_ref.dtype)


def causal_sdpa(q, k, v, n_heads, *, attn_block=256, exp_dtype=jnp.bfloat16):
    B, S, D = q.shape
    assert D % n_heads == 0
    hd = D // n_heads
    assert hd % 128 == 0, "head_dim must be a multiple of 128 for lane-dense tiles"
    tq = tk = min(attn_block, S)
    assert S % tq == 0
    nq = S // tq

    # Triangular enumeration of (qi, ki) pairs — no grid steps are spent on
    # fully-masked above-diagonal tiles.  The tables live in SMEM via scalar
    # prefetch and feed data-dependent index_maps.
    steps_q, steps_k = [], []
    for qi in range(nq):
        for ki in range(qi + 1):
            steps_q.append(qi)
            steps_k.append(ki)
    n_steps = len(steps_q)
    step_q = jnp.asarray(steps_q, dtype=jnp.int32)
    step_k = jnp.asarray(steps_k, dtype=jnp.int32)

    kernel = functools.partial(flash_sdpa_kernel, tq=tq, tk=tk, exp_dtype=exp_dtype)

    # Heads are sliced out of the (B, S, D) arrays via the block's column
    # index (no head-split transposes in HBM).
    def q_map(b, h, s, sq, sk):
        return (b, sq[s], h)

    def kv_map(b, h, s, sq, sk):
        return (b, sk[s], h)

    return pl.pallas_call(
        kernel,
        out_shape=jax.ShapeDtypeStruct((B, S, D), q.dtype),
        grid_spec=pltpu.PrefetchScalarGridSpec(
            num_scalar_prefetch=2,
            grid=(B, n_heads, n_steps),
            in_specs=[
                pl.BlockSpec((1, tq, hd), q_map),
                pl.BlockSpec((1, tk, hd), kv_map),
                pl.BlockSpec((1, tk, hd), kv_map),
            ],
            out_specs=pl.BlockSpec((1, tq, hd), q_map),
            scratch_shapes=[
                pltpu.VMEM((tq, 1), jnp.float32),    # running max
                pltpu.VMEM((tq, 1), jnp.float32),    # running sum
                pltpu.VMEM((tq, hd), jnp.float32),   # output accumulator
            ],
        ),
        compiler_params=pltpu.CompilerParams(
            dimension_semantics=("parallel", "parallel", "arbitrary"),
            vmem_limit_bytes=48 * 1024 * 1024),
    )(step_q, step_k, q, k, v)


# ---------------------------------------------------------------------------
# Module wrapper.
# ---------------------------------------------------------------------------
def attention_forward(x, cos, sin, wq, wv, n_heads, *,
                      seq_block=512, attn_block=256,
                      compute_dtype=jnp.bfloat16, exp_dtype=jnp.bfloat16):
    D = x.shape[-1]
    hd = D // n_heads
    # sqrt(1/sqrt(hd)) on each of Q and K (K aliases Q) -> full 1/sqrt(hd) on QK^T.
    rope_scale = float(hd) ** -0.25

    x_c = x.astype(compute_dtype)
    wq_c = wq.astype(compute_dtype)
    wv_c = wv.astype(compute_dtype)

    q, v = qkv_rope(x_c, wq_c, wv_c, cos, sin,
                    rope_scale=rope_scale, seq_block=seq_block)    # (B,S,D) each
    # Reference quirk: xk = self.query(x) == xq, so K aliases Q directly.
    return causal_sdpa(q, q, v, n_heads,
                       attn_block=attn_block, exp_dtype=exp_dtype)  # (B, S, D)


# ---------------------------------------------------------------------------
# Pure-JAX reference for correctness checking.
# ---------------------------------------------------------------------------
def attention_reference(x, cos, sin, wq, wv, n_heads):
    B, S, D = x.shape
    hd = D // n_heads
    hp = jax.lax.Precision.HIGHEST

    def rot_half(t):
        return jnp.concatenate([-t[..., D // 2:], t[..., :D // 2]], axis=-1)

    xq = jnp.einsum("bsd,ed->bse", x, wq, precision=hp)
    xv = jnp.einsum("bsd,ed->bse", x, wv, precision=hp)
    xq = xq * cos + rot_half(xq) * sin
    xk = xq                                     # key uses the query weights

    def split(t):
        return t.reshape(B, S, n_heads, hd).transpose(0, 2, 1, 3)

    qh, kh, vh = split(xq), split(xk), split(xv)
    scores = jnp.einsum("bhqd,bhkd->bhqk", qh, kh, precision=hp) / math.sqrt(hd)
    mask = jnp.tril(jnp.ones((S, S), dtype=bool))
    scores = jnp.where(mask, scores, -jnp.inf)
    p = jax.nn.softmax(scores, axis=-1)
    o = jnp.einsum("bhqk,bhkd->bhqd", p, vh, precision=hp)
    return o.transpose(0, 2, 1, 3).reshape(B, S, D)


if __name__ == "__main__":
    # head_dim = 256 // 2 = 128 (lane-dense head slicing); S = 512 with
    # attn_block = 256 gives 2 Q tiles -> 3 triangular steps per (batch, head),
    # so init / accumulate / finalize and the full/diagonal branches are all
    # exercised.
    B, S, dim, n_heads = 2, 512, 256, 2

    key = jax.random.PRNGKey(0)
    kx, kq, kv = jax.random.split(key, 3)

    x = jax.random.normal(kx, (B, S, dim), dtype=jnp.float32)
    # nn.Linear(dim, dim, bias=False) weights: (out_features, in_features)
    wq = jax.random.normal(kq, (dim, dim), dtype=jnp.float32) * (1.0 / math.sqrt(dim))
    wv = jax.random.normal(kv, (dim, dim), dtype=jnp.float32) * (1.0 / math.sqrt(dim))

    # RoPE tables over the full hidden dim (applied pre head-split).
    pos = jnp.arange(S, dtype=jnp.float32)[:, None]                     # (S, 1)
    inv_freq = 1.0 / (10000.0 ** (jnp.arange(0, dim, 2, dtype=jnp.float32) / dim))
    angles = pos * inv_freq[None, :]                                    # (S, dim/2)
    angles = jnp.concatenate([angles, angles], axis=-1)                 # (S, dim)
    cos = jnp.cos(angles)
    sin = jnp.sin(angles)

    out = attention_forward(x, cos, sin, wq, wv, n_heads)
    out = jax.block_until_ready(out)
    assert out.shape == (B, S, dim)

    # Reference uses the same bf16-quantized inputs as the kernel so the check
    # measures in-kernel rounding (bf16 MXU operands, bf16 exp, bf16 storage).
    x_q = x.astype(jnp.bfloat16).astype(jnp.float32)
    wq_q = wq.astype(jnp.bfloat16).astype(jnp.float32)
    wv_q = wv.astype(jnp.bfloat16).astype(jnp.float32)
    ref = attention_reference(x_q, cos, sin, wq_q, wv_q, n_heads)

    out_f32 = out.astype(jnp.float32)
    max_err = float(jnp.max(jnp.abs(out_f32 - ref)))
    # bf16 operands / bf16 exp / bf16 output ~> a few 1e-2 worst-case error.
    assert max_err < 1e-1, f"mismatch vs reference: max abs err {max_err}"

    print("KERNEL_OK")
</pallas_src>

<mosaic_0001>
module attributes {stable_mosaic.version = 11 : i64} {
  func.func @qkv_rope_kernel(%arg0: i32, %arg1: i32, %arg2: memref<1x512x256xbf16, #tpu.memory_space<vmem>>, %arg3: memref<256x512xbf16, #tpu.memory_space<vmem>>, %arg4: memref<512x256xf32, #tpu.memory_space<vmem>>, %arg5: memref<512x256xf32, #tpu.memory_space<vmem>>, %arg6: memref<1x512x256xbf16, #tpu.memory_space<vmem>>, %arg7: memref<1x512x256xbf16, #tpu.memory_space<vmem>>) attributes {dimension_semantics = [#tpu.dimension_semantics<parallel>, #tpu.dimension_semantics<parallel>], iteration_bounds = array<i64: 2, 1>, scalar_prefetch = 0 : i64, scratch_operands = 0 : i64, tpu.core_type = #tpu.core_type<tc>, window_params = [{transform_indices = @transform_0, window_bounds = array<i64: 1, 512, 256>}, {pipeline_mode = #tpu.pipeline_mode<synchronous>, transform_indices = @transform_1, window_bounds = array<i64: 256, 512>}, {transform_indices = @transform_2, window_bounds = array<i64: 512, 256>}, {transform_indices = @transform_3, window_bounds = array<i64: 512, 256>}, {transform_indices = @transform_4, window_bounds = array<i64: 1, 512, 256>}, {transform_indices = @transform_5, window_bounds = array<i64: 1, 512, 256>}]} {
    %c0 = arith.constant 0 : index
    %c0_0 = arith.constant 0 : index
    %c0_1 = arith.constant 0 : index
    %0 = vector.load %arg2[%c0, %c0_0, %c0_1] : memref<1x512x256xbf16, #tpu.memory_space<vmem>>, vector<1x512x256xbf16>
    %1 = vector.shape_cast %0 : vector<1x512x256xbf16> to vector<512x256xbf16>
    %c0_2 = arith.constant 0 : index
    %c0_3 = arith.constant 0 : index
    %2 = vector.load %arg3[%c0_2, %c0_3] : memref<256x512xbf16, #tpu.memory_space<vmem>>, vector<256x512xbf16>
    %cst = arith.constant dense<0.000000e+00> : vector<512x512xf32>
    %3 = tpu.matmul %1, %2, %cst {dimension_numbers = #tpu.dot_dimension_numbers<[1], [0], [0], [1], [0, 0, 1, 1], [], []>} : vector<512x256xbf16>, vector<256x512xbf16>, vector<512x512xf32> -> vector<512x512xf32>
    %4 = vector.extract_strided_slice %3 {offsets = [0, 0], sizes = [512, 256], strides = [1, 1]} : vector<512x512xf32> to vector<512x256xf32>
    %5 = vector.extract_strided_slice %3 {offsets = [0, 256], sizes = [512, 256], strides = [1, 1]} : vector<512x512xf32> to vector<512x256xf32>
    %6 = vector.extract_strided_slice %4 {offsets = [0, 128], sizes = [512, 128], strides = [1, 1]} : vector<512x256xf32> to vector<512x128xf32>
    %cst_4 = arith.constant 0.000000e+00 : f32
    %7 = vector.broadcast %cst_4 : f32 to vector<512x128xf32>
    %8 = arith.subf %7, %6 : vector<512x128xf32>
    %9 = vector.extract_strided_slice %4 {offsets = [0, 0], sizes = [512, 128], strides = [1, 1]} : vector<512x256xf32> to vector<512x128xf32>
    %10 = tpu.concatenate %8, %9 in 1 : vector<512x128xf32>, vector<512x128xf32> -> vector<512x256xf32>
    %c0_5 = arith.constant 0 : index
    %c0_6 = arith.constant 0 : index
    %11 = vector.load %arg4[%c0_5, %c0_6] : memref<512x256xf32, #tpu.memory_space<vmem>>, vector<512x256xf32>
    %12 = arith.mulf %4, %11 : vector<512x256xf32>
    %c0_7 = arith.constant 0 : index
    %c0_8 = arith.constant 0 : index
    %13 = vector.load %arg5[%c0_7, %c0_8] : memref<512x256xf32, #tpu.memory_space<vmem>>, vector<512x256xf32>
    %14 = arith.mulf %10, %13 : vector<512x256xf32>
    %15 = arith.addf %12, %14 : vector<512x256xf32>
    %16 = arith.truncf %15 : vector<512x256xf32> to vector<512x256xbf16>
    %c0_9 = arith.constant 0 : index
    %c0_10 = arith.constant 0 : index
    %c0_11 = arith.constant 0 : index
    %17 = vector.load %arg6[%c0_9, %c0_10, %c0_11] : memref<1x512x256xbf16, #tpu.memory_space<vmem>>, vector<1x512x256xbf16>
    %18 = vector.shape_cast %17 : vector<1x512x256xbf16> to vector<512x256xbf16>
    %19 = vector.shape_cast %16 : vector<512x256xbf16> to vector<1x512x256xbf16>
    tpu.vector_store %arg6[%c0_9, %c0_10, %c0_11], %19 {strides = array<i32>} : memref<1x512x256xbf16, #tpu.memory_space<vmem>>, vector<1x512x256xbf16>,
    %20 = arith.truncf %5 : vector<512x256xf32> to vector<512x256xbf16>
    %c0_12 = arith.constant 0 : index
    %c0_13 = arith.constant 0 : index
    %c0_14 = arith.constant 0 : index
    %21 = vector.load %arg7[%c0_12, %c0_13, %c0_14] : memref<1x512x256xbf16, #tpu.memory_space<vmem>>, vector<1x512x256xbf16>
    %22 = vector.shape_cast %21 : vector<1x512x256xbf16> to vector<512x256xbf16>
    %23 = vector.shape_cast %20 : vector<512x256xbf16> to vector<1x512x256xbf16>
    tpu.vector_store %arg7[%c0_12, %c0_13, %c0_14], %23 {strides = array<i32>} : memref<1x512x256xbf16, #tpu.memory_space<vmem>>, vector<1x512x256xbf16>,
    return
  }
  func.func @transform_0(%arg0: i32, %arg1: i32) -> (i32, i32, i32) {
    %c0_i32 = arith.constant 0 : i32
    %c0_i32_0 = arith.constant 0 : i32
    return %arg0, %arg1, %c0_i32 : i32, i32, i32
  }
  func.func @transform_1(%arg0: i32, %arg1: i32) -> (i32, i32) {
    %c0_i32 = arith.constant 0 : i32
    %c0_i32_0 = arith.constant 0 : i32
    %c0_i32_1 = arith.constant 0 : i32
    return %c0_i32, %c0_i32_0 : i32, i32
  }
  func.func @transform_2(%arg0: i32, %arg1: i32) -> (i32, i32) {
    %c0_i32 = arith.constant 0 : i32
    %c0_i32_0 = arith.constant 0 : i32
    return %arg1, %c0_i32 : i32, i32
  }
  func.func @transform_3(%arg0: i32, %arg1: i32) -> (i32, i32) {
    %c0_i32 = arith.constant 0 : i32
    %c0_i32_0 = arith.constant 0 : i32
    return %arg1, %c0_i32 : i32, i32
  }
  func.func @transform_4(%arg0: i32, %arg1: i32) -> (i32, i32, i32) {
    %c0_i32 = arith.constant 0 : i32
    %c0_i32_0 = arith.constant 0 : i32
    return %arg0, %arg1, %c0_i32 : i32, i32, i32
  }
  func.func @transform_5(%arg0: i32, %arg1: i32) -> (i32, i32, i32) {
    %c0_i32 = arith.constant 0 : i32
    %c0_i32_0 = arith.constant 0 : i32
    return %arg0, %arg1, %c0_i32 : i32, i32, i32
  }
}

</mosaic_0001>

<llo_original>
// kernel: tpu_custom_call.1
$region0: #{tpu_custom_call.1}
  #allocation0 [shape = 'u32[]', space=smem, size = 0x4, offset = 0x4, fixed_abs, tag = 'smem constant byte address 0x4 - core index']
  #allocation1 [shape = 'u32[144,128]{1,0:T(1,128)}', space=vmem, size = 0x12000, scoped, tag = 'internal scratch']
  %s0 = inlined_call_operand.hbm [shape: bf16[2,512,256], index: 0, kind: input, shape index: {}]
  %s1 = inlined_call_operand.hbm [shape: bf16[256,512], index: 1, kind: input, shape index: {}]
  %s2 = inlined_call_operand.hbm [shape: f32[512,256], index: 2, kind: input, shape index: {}]
  %s3 = inlined_call_operand.hbm [shape: f32[512,256], index: 3, kind: input, shape index: {}]
  %s4 = inlined_call_operand.hbm [shape: bf16[2,512,256], index: 4, kind: output, shape index: {0}]
  %s5 = inlined_call_operand.hbm [shape: bf16[2,512,256], index: 5, kind: output, shape index: {1}]
  %6 = xla_tuple %s4, %s5
  %s7 = sld [smem:[#allocation0]]
  $region73: #{tpu_custom_call.1} parent=0
    _
  %s9 = ssub.s32 1, %s7
  %s10 = scalar_select 0, %s9, %s7
  $region1: #{tpu_custom_call.1} parent=0
    #allocation2 [shape = 'u8[524288]{0}', space=vmem, size = 0x80000, scoped, tag = 'input window, operand 0']
    #allocation3 [shape = 's32[2]{0}', space=sflag, size = 0x8, scoped, tag = 'scoped memory for tpu_custom_call.1']
    #allocation4 [shape = 's32[2]{0}', space=sflag, size = 0x8, scoped, tag = 'scoped memory for tpu_custom_call.1']
    #allocation5 [shape = 'u8[262144]{0}', space=vmem, size = 0x40000, scoped, tag = 'input window, operand 1, single buffered']
    #allocation6 [shape = 's32[1]{0}', space=sflag, size = 0x4, scoped, tag = 'scoped memory for tpu_custom_call.1']
    #allocation7 [shape = 'u8[524288]{0}', space=vmem, size = 0x80000, scoped, tag = 'input window, operand 2, single buffered']
    #allocation8 [shape = 'u8[524288]{0}', space=vmem, size = 0x80000, scoped, tag = 'input window, operand 3, single buffered']
    #allocation9 [shape = 's32[1]{0}', space=sflag, size = 0x4, scoped, tag = 'scoped memory for tpu_custom_call.1']
    #allocation10 [shape = 'u8[524288]{0}', space=vmem, size = 0x80000, scoped, tag = 'output window, operand 0']
    #allocation11 [shape = 'u8[524288]{0}', space=vmem, size = 0x80000, scoped, tag = 'output window, operand 1']
    #allocation12 [shape = 's32[2]{0}', space=sflag, size = 0x8, scoped, tag = 'scoped memory for tpu_custom_call.1']
    %11 = vsyncpa [#allocation3], 0
    %s12 = scalar_lea.sflag [#allocation3], 1
    %13 = vsyncpa %s12, 0
    %14 = vsyncpa [#allocation6], 0
    %15 = vsyncpa [#allocation9], 0
    %16 = vsyncpa [#allocation4], 0
    %s17 = scalar_lea.sflag [#allocation4], 1
    %18 = vsyncpa %s17, 0
    %19 = vsyncpa [#allocation12], 0
    %s20 = scalar_lea.sflag [#allocation12], 1
    %21 = vsyncpa %s20, 0
    loop: start=0, step=1, limit=4
    $region2: #{tpu_custom_call.1} parent=1 // loop_pre_header
      _
    $region3: #{tpu_custom_call.1} parent=1 // loop_header
      %s23 = sphi 0, %s27
      %p24 = scmp.ge.s32.totalorder %s23, 4
      %s30 = sphi 0, %s42
      %s31 = sphi 0, %s38
      %s32 = sphi 0, %s30
      %s33 = sphi 0, %s31
      %s34 = sphi 0, %s32
      %s35 = sphi 0, %s33
      %s47 = sphi 0, %s49
      %s50 = sphi 0, %s47
      %s51 = sphi 0, %s50
      %s67 = sphi 0, %s51
      %s71 = sphi 0, %s71
      %s73 = sphi 0, %s71
      %s74 = sphi 0, %s73
      %s88 = sphi 0, %s74
      %s94 = sphi 0, %s96
      %s97 = sphi 0, %s94
      %s98 = sphi 0, %s97
      %s114 = sphi 0, %s98
      %s120 = sphi 0, %s122
      %s123 = sphi 0, %s120
      %s124 = sphi 0, %s123
      %s140 = sphi 0, %s124
      %s148 = sphi 0, %s150
      %s151 = sphi 0, %s148
      %s152 = sphi 0, %s151
      %s168 = sphi 0, %s152
      %s176 = sphi 0, %s178
      %s179 = sphi 0, %s176
      %s180 = sphi 0, %s179
      %s196 = sphi 0, %s180
    $region4: #{tpu_custom_call.1} parent=1 // loop_header_branch
      %26 = sbr.rel (%p24) target = $region8
    $region5: #{tpu_custom_call.1} parent=1 // loop_body
      %s28 = ssub.s32 %s23, 1
      %s29 = ssub.s32 %s23, 2
      %s36 = sadd.s32 1, %s31
      %p37 = scmp.ge.s32.totalorder %s36, 1
      %s38 = scalar_select %p37, 0, %s36
      %s39 = sadd.s32 1, %s30
      %s40 = scalar_select %p37, %s39, %s30
      %p41 = scmp.ge.s32.totalorder %s40, 2
      %s42 = scalar_select %p41, 0, %s40
      %s43 = ssub.s32 %s30, %s42
      %s44 = ssub.s32 %s31, %s38
      %s45 = sor.u32 %s43, %s44
      %p46 = scmp.eq.s32.totalorder %s45, 0
      %s48 = sadd.s32 %s47, 1
      %s49 = scalar_select %p46, %s47, %s48
      %p52 = pneg %p46
      %p53 = scmp.eq.s32.totalorder %s23, 1
      %p54 = por %p52, %p53
      %p55 = scmp.ne.s32.totalorder %s47, %s50
      %p56 = scmp.eq.s32.totalorder %s23, 0
      %p57 = por %p55, %p56
      %p58 = scmp.ne.s32.totalorder %s47, %s50
      %p59 = scmp.eq.s32.totalorder %s28, 1
      %p60 = por %p58, %p59
      %p61 = scmp.ne.s32.totalorder %s50, %s51
      %p62 = scmp.eq.s32.totalorder %s28, 0
      %p63 = por %p61, %p62
      %p64 = scmp.ne.s32.totalorder %s50, %s51
      %p65 = scmp.eq.s32.totalorder %s29, 1
      %p66 = por %p64, %p65
      %p68 = scmp.ne.s32.totalorder %s51, %s67
      %p69 = scmp.eq.s32.totalorder %s29, 0
      %p70 = por %p68, %p69
      %s72 = sadd.s32 %s71, 1
      %p75 = scmp.eq.s32.totalorder %s23, 1
      %p76 = scmp.ne.s32.totalorder %s71, %s73
      %p77 = scmp.eq.s32.totalorder %s23, 0
      %p78 = por %p76, %p77
      %p79 = scmp.ne.s32.totalorder %s71, %s73
      %p80 = scmp.eq.s32.totalorder %s28, 1
      %p81 = por %p79, %p80
      %p82 = scmp.ne.s32.totalorder %s73, %s74
      %p83 = scmp.eq.s32.totalorder %s28, 0
      %p84 = por %p82, %p83
      %p85 = scmp.ne.s32.totalorder %s73, %s74
      %p86 = scmp.eq.s32.totalorder %s29, 1
      %p87 = por %p85, %p86
      %p89 = scmp.ne.s32.totalorder %s74, %s88
      %p90 = scmp.eq.s32.totalorder %s29, 0
      %p91 = por %p89, %p90
      %s92 = ssub.s32 %s31, %s38
      %p93 = scmp.eq.s32.totalorder %s92, 0
      %s95 = sadd.s32 %s94, 1
      %s96 = scalar_select %p93, %s94, %s95
      %p99 = pneg %p93
      %p100 = scmp.eq.s32.totalorder %s23, 1
      %p101 = por %p99, %p100
      %p102 = scmp.ne.s32.totalorder %s94, %s97
      %p103 = scmp.eq.s32.totalorder %s23, 0
      %p104 = por %p102, %p103
      %p105 = scmp.ne.s32.totalorder %s94, %s97
      %p106 = scmp.eq.s32.totalorder %s28, 1
      %p107 = por %p105, %p106
      %p108 = scmp.ne.s32.totalorder %s97, %s98
      %p109 = scmp.eq.s32.totalorder %s28, 0
      %p110 = por %p108, %p109
      %p111 = scmp.ne.s32.totalorder %s97, %s98
      %p112 = scmp.eq.s32.totalorder %s29, 1
      %p113 = por %p111, %p112
      %p115 = scmp.ne.s32.totalorder %s98, %s114
      %p116 = scmp.eq.s32.totalorder %s29, 0
      %p117 = por %p115, %p116
      %s118 = ssub.s32 %s31, %s38
      %p119 = scmp.eq.s32.totalorder %s118, 0
      %s121 = sadd.s32 %s120, 1
      %s122 = scalar_select %p119, %s120, %s121
      %p125 = pneg %p119
      %p126 = scmp.eq.s32.totalorder %s23, 1
      %p127 = por %p125, %p126
      %p128 = scmp.ne.s32.totalorder %s120, %s123
      %p129 = scmp.eq.s32.totalorder %s23, 0
      %p130 = por %p128, %p129
      %p131 = scmp.ne.s32.totalorder %s120, %s123
      %p132 = scmp.eq.s32.totalorder %s28, 1
      %p133 = por %p131, %p132
      %p134 = scmp.ne.s32.totalorder %s123, %s124
      %p135 = scmp.eq.s32.totalorder %s28, 0
      %p136 = por %p134, %p135
      %p137 = scmp.ne.s32.totalorder %s123, %s124
      %p138 = scmp.eq.s32.totalorder %s29, 1
      %p139 = por %p137, %p138
      %p141 = scmp.ne.s32.totalorder %s124, %s140
      %p142 = scmp.eq.s32.totalorder %s29, 0
      %p143 = por %p141, %p142
      %s144 = ssub.s32 %s30, %s42
      %s145 = ssub.s32 %s31, %s38
      %s146 = sor.u32 %s144, %s145
      %p147 = scmp.eq.s32.totalorder %s146, 0
      %s149 = sadd.s32 %s148, 1
      %s150 = scalar_select %p147, %s148, %s149
      %p153 = pneg %p147
      %p154 = scmp.eq.s32.totalorder %s23, 1
      %p155 = por %p153, %p154
      %p156 = scmp.ne.s32.totalorder %s148, %s151
      %p157 = scmp.eq.s32.totalorder %s23, 0
      %p158 = por %p156, %p157
      %p159 = scmp.ne.s32.totalorder %s148, %s151
      %p160 = scmp.eq.s32.totalorder %s28, 1
      %p161 = por %p159, %p160
      %p162 = scmp.ne.s32.totalorder %s151, %s152
      %p163 = scmp.eq.s32.totalorder %s28, 0
      %p164 = por %p162, %p163
      %p165 = scmp.ne.s32.totalorder %s151, %s152
      %p166 = scmp.eq.s32.totalorder %s29, 1
      %p167 = por %p165, %p166
      %p169 = scmp.ne.s32.totalorder %s152, %s168
      %p170 = scmp.eq.s32.totalorder %s29, 0
      %p171 = por %p169, %p170
      %s172 = ssub.s32 %s30, %s42
      %s173 = ssub.s32 %s31, %s38
      %s174 = sor.u32 %s172, %s173
      %p175 = scmp.eq.s32.totalorder %s174, 0
      %s177 = sadd.s32 %s176, 1
      %s178 = scalar_select %p175, %s176, %s177
      %p181 = pneg %p175
      %p182 = scmp.eq.s32.totalorder %s23, 1
      %p183 = por %p181, %p182
      %p184 = scmp.ne.s32.totalorder %s176, %s179
      %p185 = scmp.eq.s32.totalorder %s23, 0
      %p186 = por %p184, %p185
      %p187 = scmp.ne.s32.totalorder %s176, %s179
      %p188 = scmp.eq.s32.totalorder %s28, 1
      %p189 = por %p187, %p188
      %p190 = scmp.ne.s32.totalorder %s179, %s180
      %p191 = scmp.eq.s32.totalorder %s28, 0
      %p192 = por %p190, %p191
      %p193 = scmp.ne.s32.totalorder %s179, %s180
      %p194 = scmp.eq.s32.totalorder %s29, 1
      %p195 = por %p193, %p194
      %p197 = scmp.ne.s32.totalorder %s180, %s196
      %p198 = scmp.eq.s32.totalorder %s29, 0
      %p199 = por %p197, %p198
      %p200 = scmp.le.s32.totalorder 1, %s23
      %p201 = scmp.lt.s32.totalorder %s23, 3
      %p202 = pnand %p200, %p201
      %p203 = pneg %p202
      // Predicated region
      $region9: #{tpu_custom_call.1} parent=5 // pred_check
        _
      $region10: #{tpu_custom_call.1} parent=5 // pred_check_branch
        %205 = sbr.rel (%p202) target = $region12
      $region11: #{tpu_custom_call.1} parent=5 // pred_region
        %s206 = ssub.s32 %s23, 1
        // Predicated region
        $region13: #{tpu_custom_call.1} parent=11 // pred_check
          %p207 = pneg %p84
        $region14: #{tpu_custom_call.1} parent=11 // pred_check_branch
          %209 = sbr.rel (%p207) target = $region16
        $region15: #{tpu_custom_call.1} parent=11 // pred_region
          %s211 = ssub.s32 8192, 8192
          %212 = vsyncadd [#allocation6], %s211
          %s213 = sshll.u32 [#allocation5], 4
          %s214 = int_to_ptr.vmem [resolvable:$true] %s213
          %219 = dma.hbm_to_vmem [thread:$0]  %s1, 8192, %s214, [#allocation6], 256, 256, 16
        $region16: #{tpu_custom_call.1} parent=11 // pred_fallthru
          _
        // Predicated region
        $region17: #{tpu_custom_call.1} parent=11 // pred_check
          %p220 = pneg %p110
        $region18: #{tpu_custom_call.1} parent=11 // pred_check_branch
          %222 = sbr.rel (%p220) target = $region20
        $region19: #{tpu_custom_call.1} parent=11 // pred_region
          %s223 = smul.u32 64, %s33
          %s225 = ssub.s32 16384, 16384
          %226 = vsyncadd [#allocation6], %s225
          %s227 = smul.addr %s223, 2
          %s228 = smul.addr %s227, 128
          %s229 = scalar_lea.hbm %s2, %s228
          %s230 = sshll.u32 [#allocation7], 4
          %s231 = int_to_ptr.vmem [resolvable:$true] %s230
          %236 = dma.hbm_to_vmem [thread:$0]  %s229, 16384, %s231, [#allocation6], 256, 256, 16
        $region20: #{tpu_custom_call.1} parent=11 // pred_fallthru
          _
        // Predicated region
        $region21: #{tpu_custom_call.1} parent=11 // pred_check
          %p237 = pneg %p136
        $region22: #{tpu_custom_call.1} parent=11 // pred_check_branch
          %239 = sbr.rel (%p237) target = $region24
        $region23: #{tpu_custom_call.1} parent=11 // pred_region
          %s240 = smul.u32 64, %s33
          %s242 = ssub.s32 16384, 16384
          %243 = vsyncadd [#allocation9], %s242
          %s244 = smul.addr %s240, 2
          %s245 = smul.addr %s244, 128
          %s246 = scalar_lea.hbm %s3, %s245
          %s247 = sshll.u32 [#allocation8], 4
          %s248 = int_to_ptr.vmem [resolvable:$true] %s247
          %253 = dma.hbm_to_vmem [thread:$0]  %s246, 16384, %s248, [#allocation9], 256, 256, 16
        $region24: #{tpu_custom_call.1} parent=11 // pred_fallthru
          _
      $region12: #{tpu_custom_call.1} parent=5 // pred_fallthru
        _
      %p254 = scmp.lt.s32.totalorder %s23, 2
      // Predicated region
      $region25: #{tpu_custom_call.1} parent=5 // pred_check
        %p255 = pneg %p254
      $region26: #{tpu_custom_call.1} parent=5 // pred_check_branch
        %257 = sbr.rel (%p255) target = $region28
      $region27: #{tpu_custom_call.1} parent=5 // pred_region
        // Predicated region
        $region29: #{tpu_custom_call.1} parent=27 // pred_check
          %p258 = pneg %p57
        $region30: #{tpu_custom_call.1} parent=27 // pred_check_branch
          %260 = sbr.rel (%p258) target = $region32
        $region31: #{tpu_custom_call.1} parent=27 // pred_region
          %s261 = sand.u32 %s47, 1
          %s262 = scalar_lea.sflag [#allocation3], %s261
          %s263 = sand.u32 %s47, 1
          %s264 = smul.addr %s263, 512
          %s265 = scalar_lea.vmem [#allocation2], %s264
          %s266 = smul.u32 64, %s31
          %s268 = ssub.s32 8192, 8192
          %269 = vsyncadd %s262, %s268
          %s270 = smul.addr %s266, 2
          %s271 = smul.addr %s30, 128
          %s272 = sadd.s32 %s270, %s271
          %s273 = smul.addr %s272, 64
          %s274 = scalar_lea.hbm %s0, %s273
          %s275 = sshll.u32 %s265, 4
          %s276 = int_to_ptr.vmem [resolvable:$true] %s275
          %281 = dma.hbm_to_vmem [thread:$0]  %s274, 8192, %s276, %s262, 128, 128, 8
        $region32: #{tpu_custom_call.1} parent=27 // pred_fallthru
          _
      $region28: #{tpu_custom_call.1} parent=5 // pred_fallthru
        _
      %p282 = scmp.le.s32.totalorder 1, %s23
      %p283 = scmp.lt.s32.totalorder %s23, 3
      %p284 = pnand %p282, %p283
      %p285 = pneg %p284
      // Predicated region
      $region33: #{tpu_custom_call.1} parent=5 // pred_check
        _
      $region34: #{tpu_custom_call.1} parent=5 // pred_check_branch
        %287 = sbr.rel (%p284) target = $region36
      $region35: #{tpu_custom_call.1} parent=5 // pred_region
        %s288 = ssub.s32 %s23, 1
        %s289 = sand.u32 %s50, 1
        %s290 = scalar_lea.sflag [#allocation3], %s289
        %s291 = sand.u32 %s50, 1
        %s292 = smul.addr %s291, 512
        %s293 = scalar_lea.vmem [#allocation2], %s292
        // Predicated region
        $region37: #{tpu_custom_call.1} parent=35 // pred_check
          %p294 = pneg %p63
        $region38: #{tpu_custom_call.1} parent=35 // pred_check_branch
          %296 = sbr.rel (%p294) target = $region40
        $region39: #{tpu_custom_call.1} parent=35 // pred_region
          %297 = dma.done %s290, 8192
        $region40: #{tpu_custom_call.1} parent=35 // pred_fallthru
          _
        // Predicated region
        $region41: #{tpu_custom_call.1} parent=35 // pred_check
          %p298 = pneg %p84
        $region42: #{tpu_custom_call.1} parent=35 // pred_check_branch
          %300 = sbr.rel (%p298) target = $region44
        $region43: #{tpu_custom_call.1} parent=35 // pred_region
          %301 = dma.done [#allocation6], 8192
        $region44: #{tpu_custom_call.1} parent=35 // pred_fallthru
          _
        // Predicated region
        $region45: #{tpu_custom_call.1} parent=35 // pred_check
          %p302 = pneg %p110
        $region46: #{tpu_custom_call.1} parent=35 // pred_check_branch
          %304 = sbr.rel (%p302) target = $region48
        $region47: #{tpu_custom_call.1} parent=35 // pred_region
          %305 = dma.done [#allocation6], 16384
        $region48: #{tpu_custom_call.1} parent=35 // pred_fallthru
          _
        // Predicated region
        $region49: #{tpu_custom_call.1} parent=35 // pred_check
          %p306 = pneg %p136
        $region50: #{tpu_custom_call.1} parent=35 // pred_check_branch
          %308 = sbr.rel (%p306) target = $region52
        $region51: #{tpu_custom_call.1} parent=35 // pred_region
          %309 = dma.done [#allocation9], 16384
        $region52: #{tpu_custom_call.1} parent=35 // pred_fallthru
          _
        %s310 = sand.u32 %s50, 1
        %s311 = scalar_lea.sflag [#allocation3], %s310
        %s312 = sand.u32 %s50, 1
        %s313 = smul.addr %s312, 512
        %s314 = scalar_lea.vmem [#allocation2], %s313
        %p315 = pneg %p63
        %p316 = pneg %p60
        %p317 = pneg %p84
        %p318 = pneg %p81
        %p319 = pneg %p110
        %p320 = pneg %p107
        %p321 = pneg %p136
        %p322 = pneg %p133
        %p323 = pneg %p164
        %p324 = pneg %p161
        %s325 = sand.u32 %s151, 1
        %s326 = scalar_lea.sflag [#allocation4], %s325
        %s327 = sand.u32 %s151, 1
        %s328 = smul.addr %s327, 512
        %s329 = scalar_lea.vmem [#allocation10], %s328
        %p330 = pneg %p192
        %p331 = pneg %p189
        %s332 = sand.u32 %s179, 1
        %s333 = scalar_lea.sflag [#allocation12], %s332
        %s334 = sand.u32 %s179, 1
        %s335 = smul.addr %s334, 512
        %s336 = scalar_lea.vmem [#allocation11], %s335
        %s337 = smul.u32 64, %s33
        %s338 = smul.u32 64, %s33
        %s339 = smul.u32 64, %s33
        %s340 = smul.u32 64, %s33
        %s341 = smul.u32 64, %s33
        %v342 = vld [vmem:[%s293] sm:$0xff]
        %v343 = vld [vmem:[%s293 + $0x8] sm:$0xff]
        %v344 = vld [vmem:[%s293 + $0x10] sm:$0xff]
        %v345 = vld [vmem:[%s293 + $0x18] sm:$0xff]
        %v346 = vld [vmem:[%s293 + $0x20] sm:$0xff]
        %v347 = vld [vmem:[%s293 + $0x28] sm:$0xff]
        %v348 = vld [vmem:[%s293 + $0x30] sm:$0xff]
        %v349 = vld [vmem:[%s293 + $0x38] sm:$0xff]
        %v350 = vld [vmem:[%s293 + $0x40] sm:$0xff]
        %v351 = vld [vmem:[%s293 + $0x48] sm:$0xff]
        %v352 = vld [vmem:[%s293 + $0x50] sm:$0xff]
        %v353 = vld [vmem:[%s293 + $0x58] sm:$0xff]
        %v354 = vld [vmem:[%s293 + $0x60] sm:$0xff]
        %v355 = vld [vmem:[%s293 + $0x68] sm:$0xff]
        %v356 = vld [vmem:[%s293 + $0x70] sm:$0xff]
        %v357 = vld [vmem:[%s293 + $0x78] sm:$0xff]
        %v358 = vld [vmem:[%s293 + $0x80] sm:$0xff]
        %v359 = vld [vmem:[%s293 + $0x88] sm:$0xff]
        %v360 = vld [vmem:[%s293 + $0x90] sm:$0xff]
        %v361 = vld [vmem:[%s293 + $0x98] sm:$0xff]
        %v362 = vld [vmem:[%s293 + $0xa0] sm:$0xff]
        %v363 = vld [vmem:[%s293 + $0xa8] sm:$0xff]
        %v364 = vld [vmem:[%s293 + $0xb0] sm:$0xff]
        %v365 = vld [vmem:[%s293 + $0xb8] sm:$0xff]
        %v366 = vld [vmem:[%s293 + $0xc0] sm:$0xff]
        %v367 = vld [vmem:[%s293 + $0xc8] sm:$0xff]
        %v368 = vld [vmem:[%s293 + $0xd0] sm:$0xff]
        %v369 = vld [vmem:[%s293 + $0xd8] sm:$0xff]
        %v370 = vld [vmem:[%s293 + $0xe0] sm:$0xff]
        %v371 = vld [vmem:[%s293 + $0xe8] sm:$0xff]
        %v372 = vld [vmem:[%s293 + $0xf0] sm:$0xff]
        %v373 = vld [vmem:[%s293 + $0xf8] sm:$0xff]
        %v374 = vld [vmem:[%s293 + $0x100] sm:$0xff]
        %v375 = vld [vmem:[%s293 + $0x108] sm:$0xff]
        %v376 = vld [vmem:[%s293 + $0x110] sm:$0xff]
        %v377 = vld [vmem:[%s293 + $0x118] sm:$0xff]
        %v378 = vld [vmem:[%s293 + $0x120] sm:$0xff]
        %v379 = vld [vmem:[%s293 + $0x128] sm:$0xff]
        %v380 = vld [vmem:[%s293 + $0x130] sm:$0xff]
        %v381 = vld [vmem:[%s293 + $0x138] sm:$0xff]
        %v382 = vld [vmem:[%s293 + $0x140] sm:$0xff]
        %v383 = vld [vmem:[%s293 + $0x148] sm:$0xff]
        %v384 = vld [vmem:[%s293 + $0x150] sm:$0xff]
        %v385 = vld [vmem:[%s293 + $0x158] sm:$0xff]
        %v386 = vld [vmem:[%s293 + $0x160] sm:$0xff]
        %v387 = vld [vmem:[%s293 + $0x168] sm:$0xff]
        %v388 = vld [vmem:[%s293 + $0x170] sm:$0xff]
        %v389 = vld [vmem:[%s293 + $0x178] sm:$0xff]
        %v390 = vld [vmem:[%s293 + $0x180] sm:$0xff]
        %v391 = vld [vmem:[%s293 + $0x188] sm:$0xff]
        %v392 = vld [vmem:[%s293 + $0x190] sm:$0xff]
        %v393 = vld [vmem:[%s293 + $0x198] sm:$0xff]
        %v394 = vld [vmem:[%s293 + $0x1a0] sm:$0xff]
        %v395 = vld [vmem:[%s293 + $0x1a8] sm:$0xff]
        %v396 = vld [vmem:[%s293 + $0x1b0] sm:$0xff]
        %v397 = vld [vmem:[%s293 + $0x1b8] sm:$0xff]
        %v398 = vld [vmem:[%s293 + $0x1c0] sm:$0xff]
        %v399 = vld [vmem:[%s293 + $0x1c8] sm:$0xff]
        %v400 = vld [vmem:[%s293 + $0x1d0] sm:$0xff]
        %v401 = vld [vmem:[%s293 + $0x1d8] sm:$0xff]
        %v402 = vld [vmem:[%s293 + $0x1e0] sm:$0xff]
        %v403 = vld [vmem:[%s293 + $0x1e8] sm:$0xff]
        %v404 = vld [vmem:[%s293 + $0x1f0] sm:$0xff]
        %v405 = vld [vmem:[%s293 + $0x1f8] sm:$0xff]
        %v406 = vld [vmem:[#allocation5] sm:$0xff]
        %v407 = vld [vmem:[#allocation5 + $0x8] sm:$0xff]
        %v408 = vld [vmem:[#allocation5 + $0x10] sm:$0xff]
        %v409 = vld [vmem:[#allocation5 + $0x18] sm:$0xff]
        %v410 = vld [vmem:[#allocation5 + $0x20] sm:$0xff]
        %v411 = vld [vmem:[#allocation5 + $0x28] sm:$0xff]
        %v412 = vld [vmem:[#allocation5 + $0x30] sm:$0xff]
        %v413 = vld [vmem:[#allocation5 + $0x38] sm:$0xff]
        %v414 = vld [vmem:[#allocation5 + $0x40] sm:$0xff]
        %v415 = vld [vmem:[#allocation5 + $0x48] sm:$0xff]
        %v416 = vld [vmem:[#allocation5 + $0x50] sm:$0xff]
        %v417 = vld [vmem:[#allocation5 + $0x58] sm:$0xff]
        %v418 = vld [vmem:[#allocation5 + $0x60] sm:$0xff]
        %v419 = vld [vmem:[#allocation5 + $0x68] sm:$0xff]
        %v420 = vld [vmem:[#allocation5 + $0x70] sm:$0xff]
        %v421 = vld [vmem:[#allocation5 + $0x78] sm:$0xff]
        %v422 = vld [vmem:[#allocation5 + $0x80] sm:$0xff]
        %v423 = vld [vmem:[#allocation5 + $0x88] sm:$0xff]
        %v424 = vld [vmem:[#allocation5 + $0x90] sm:$0xff]
        %v425 = vld [vmem:[#allocation5 + $0x98] sm:$0xff]
        %v426 = vld [vmem:[#allocation5 + $0xa0] sm:$0xff]
        %v427 = vld [vmem:[#allocation5 + $0xa8] sm:$0xff]
        %v428 = vld [vmem:[#allocation5 + $0xb0] sm:$0xff]
        %v429 = vld [vmem:[#allocation5 + $0xb8] sm:$0xff]
        %v430 = vld [vmem:[#allocation5 + $0xc0] sm:$0xff]
        %v431 = vld [vmem:[#allocation5 + $0xc8] sm:$0xff]
        %v432 = vld [vmem:[#allocation5 + $0xd0] sm:$0xff]
        %v433 = vld [vmem:[#allocation5 + $0xd8] sm:$0xff]
        %v434 = vld [vmem:[#allocation5 + $0xe0] sm:$0xff]
        %v435 = vld [vmem:[#allocation5 + $0xe8] sm:$0xff]
        %v436 = vld [vmem:[#allocation5 + $0xf0] sm:$0xff]
        %v437 = vld [vmem:[#allocation5 + $0xf8] sm:$0xff]
        %v438 = vld [vmem:[#allocation5 + $0x100] sm:$0xff]
        %v439 = vld [vmem:[#allocation5 + $0x108] sm:$0xff]
        %v440 = vld [vmem:[#allocation5 + $0x110] sm:$0xff]
        %v441 = vld [vmem:[#allocation5 + $0x118] sm:$0xff]
        %v442 = vld [vmem:[#allocation5 + $0x120] sm:$0xff]
        %v443 = vld [vmem:[#allocation5 + $0x128] sm:$0xff]
        %v444 = vld [vmem:[#allocation5 + $0x130] sm:$0xff]
        %v445 = vld [vmem:[#allocation5 + $0x138] sm:$0xff]
        %v446 = vld [vmem:[#allocation5 + $0x140] sm:$0xff]
        %v447 = vld [vmem:[#allocation5 + $0x148] sm:$0xff]
        %v448 = vld [vmem:[#allocation5 + $0x150] sm:$0xff]
        %v449 = vld [vmem:[#allocation5 + $0x158] sm:$0xff]
        %v450 = vld [vmem:[#allocation5 + $0x160] sm:$0xff]
        %v451 = vld [vmem:[#allocation5 + $0x168] sm:$0xff]
        %v452 = vld [vmem:[#allocation5 + $0x170] sm:$0xff]
        %v453 = vld [vmem:[#allocation5 + $0x178] sm:$0xff]
        %v454 = vld [vmem:[#allocation5 + $0x180] sm:$0xff]
        %v455 = vld [vmem:[#allocation5 + $0x188] sm:$0xff]
        %v456 = vld [vmem:[#allocation5 + $0x190] sm:$0xff]
        %v457 = vld [vmem:[#allocation5 + $0x198] sm:$0xff]
        %v458 = vld [vmem:[#allocation5 + $0x1a0] sm:$0xff]
        %v459 = vld [vmem:[#allocation5 + $0x1a8] sm:$0xff]
        %v460 = vld [vmem:[#allocation5 + $0x1b0] sm:$0xff]
        %v461 = vld [vmem:[#allocation5 + $0x1b8] sm:$0xff]
        %v462 = vld [vmem:[#allocation5 + $0x1c0] sm:$0xff]
        %v463 = vld [vmem:[#allocation5 + $0x1c8] sm:$0xff]
        %v464 = vld [vmem:[#allocation5 + $0x1d0] sm:$0xff]
        %v465 = vld [vmem:[#allocation5 + $0x1d8] sm:$0xff]
        %v466 = vld [vmem:[#allocation5 + $0x1e0] sm:$0xff]
        %v467 = vld [vmem:[#allocation5 + $0x1e8] sm:$0xff]
        %v468 = vld [vmem:[#allocation5 + $0x1f0] sm:$0xff]
        %v469 = vld [vmem:[#allocation5 + $0x1f8] sm:$0xff]
        %v534 = vunpack.c.l.b16 %v342
        %v535 = vunpack.c.h.b16 %v342
        %v536 = vunpack.c.l.b16 %v343
        %v537 = vunpack.c.h.b16 %v343
        %v538 = vunpack.c.l.b16 %v344
        %v539 = vunpack.c.h.b16 %v344
        %v540 = vunpack.c.l.b16 %v345
        %v541 = vunpack.c.h.b16 %v345
        %v542 = vunpack.c.l.b16 %v346
        %v543 = vunpack.c.h.b16 %v346
        %v544 = vunpack.c.l.b16 %v347
        %v545 = vunpack.c.h.b16 %v347
        %v546 = vunpack.c.l.b16 %v348
        %v547 = vunpack.c.h.b16 %v348
        %v548 = vunpack.c.l.b16 %v349
        %v549 = vunpack.c.h.b16 %v349
        %v550 = vunpack.c.l.b16 %v350
        %v551 = vunpack.c.h.b16 %v350
        %v552 = vunpack.c.l.b16 %v351
        %v553 = vunpack.c.h.b16 %v351
        %v554 = vunpack.c.l.b16 %v352
        %v555 = vunpack.c.h.b16 %v352
        %v556 = vunpack.c.l.b16 %v353
        %v557 = vunpack.c.h.b16 %v353
        %v558 = vunpack.c.l.b16 %v354
        %v559 = vunpack.c.h.b16 %v354
        %v560 = vunpack.c.l.b16 %v355
        %v561 = vunpack.c.h.b16 %v355
        %v562 = vunpack.c.l.b16 %v356
        %v563 = vunpack.c.h.b16 %v356
        %v564 = vunpack.c.l.b16 %v357
        %v565 = vunpack.c.h.b16 %v357
        %v566 = vunpack.c.l.b16 %v358
        %v567 = vunpack.c.h.b16 %v358
        %v568 = vunpack.c.l.b16 %v359
        %v569 = vunpack.c.h.b16 %v359
        %v570 = vunpack.c.l.b16 %v360
        %v571 = vunpack.c.h.b16 %v360
        %v572 = vunpack.c.l.b16 %v361
        %v573 = vunpack.c.h.b16 %v361
        %v574 = vunpack.c.l.b16 %v362
        %v575 = vunpack.c.h.b16 %v362
        %v576 = vunpack.c.l.b16 %v363
        %v577 = vunpack.c.h.b16 %v363
        %v578 = vunpack.c.l.b16 %v364
        %v579 = vunpack.c.h.b16 %v364
        %v580 = vunpack.c.l.b16 %v365
        %v581 = vunpack.c.h.b16 %v365
        %v582 = vunpack.c.l.b16 %v366
        %v583 = vunpack.c.h.b16 %v366
        %v584 = vunpack.c.l.b16 %v367
        %v585 = vunpack.c.h.b16 %v367
        %v586 = vunpack.c.l.b16 %v368
        %v587 = vunpack.c.h.b16 %v368
        %v588 = vunpack.c.l.b16 %v369
        %v589 = vunpack.c.h.b16 %v369
        %v590 = vunpack.c.l.b16 %v370
        %v591 = vunpack.c.h.b16 %v370
        %v592 = vunpack.c.l.b16 %v371
        %v593 = vunpack.c.h.b16 %v371
        %v594 = vunpack.c.l.b16 %v372
        %v595 = vunpack.c.h.b16 %v372
        %v596 = vunpack.c.l.b16 %v373
        %v597 = vunpack.c.h.b16 %v373
        %v598 = vunpack.c.l.b16 %v374
        %v599 = vunpack.c.h.b16 %v374
        %v600 = vunpack.c.l.b16 %v375
        %v601 = vunpack.c.h.b16 %v375
        %v602 = vunpack.c.l.b16 %v376
        %v603 = vunpack.c.h.b16 %v376
        %v604 = vunpack.c.l.b16 %v377
        %v605 = vunpack.c.h.b16 %v377
        %v606 = vunpack.c.l.b16 %v378
        %v607 = vunpack.c.h.b16 %v378
        %v608 = vunpack.c.l.b16 %v379
        %v609 = vunpack.c.h.b16 %v379
        %v610 = vunpack.c.l.b16 %v380
        %v611 = vunpack.c.h.b16 %v380
        %v612 = vunpack.c.l.b16 %v381
        %v613 = vunpack.c.h.b16 %v381
        %v614 = vunpack.c.l.b16 %v382
        %v615 = vunpack.c.h.b16 %v382
        %v616 = vunpack.c.l.b16 %v383
        %v617 = vunpack.c.h.b16 %v383
        %v618 = vunpack.c.l.b16 %v384
        %v619 = vunpack.c.h.b16 %v384
        %v620 = vunpack.c.l.b16 %v385
        %v621 = vunpack.c.h.b16 %v385
        %v622 = vunpack.c.l.b16 %v386
        %v623 = vunpack.c.h.b16 %v386
        %v624 = vunpack.c.l.b16 %v387
        %v625 = vunpack.c.h.b16 %v387
        %v626 = vunpack.c.l.b16 %v388
        %v627 = vunpack.c.h.b16 %v388
        %v628 = vunpack.c.l.b16 %v389
        %v629 = vunpack.c.h.b16 %v389
        %v630 = vunpack.c.l.b16 %v390
        %v631 = vunpack.c.h.b16 %v390
        %v632 = vunpack.c.l.b16 %v391
        %v633 = vunpack.c.h.b16 %v391
        %v634 = vunpack.c.l.b16 %v392
        %v635 = vunpack.c.h.b16 %v392
        %v636 = vunpack.c.l.b16 %v393
        %v637 = vunpack.c.h.b16 %v393
        %v638 = vunpack.c.l.b16 %v394
        %v639 = vunpack.c.h.b16 %v394
        %v640 = vunpack.c.l.b16 %v395
        %v641 = vunpack.c.h.b16 %v395
        %v642 = vunpack.c.l.b16 %v396
        %v643 = vunpack.c.h.b16 %v396
        %v644 = vunpack.c.l.b16 %v397
        %v645 = vunpack.c.h.b16 %v397
        %v646 = vunpack.c.l.b16 %v398
        %v647 = vunpack.c.h.b16 %v398
        %v648 = vunpack.c.l.b16 %v399
        %v649 = vunpack.c.h.b16 %v399
        %v650 = vunpack.c.l.b16 %v400
        %v651 = vunpack.c.h.b16 %v400
        %v652 = vunpack.c.l.b16 %v401
        %v653 = vunpack.c.h.b16 %v401
        %v654 = vunpack.c.l.b16 %v402
        %v655 = vunpack.c.h.b16 %v402
        %v656 = vunpack.c.l.b16 %v403
        %v657 = vunpack.c.h.b16 %v403
        %v658 = vunpack.c.l.b16 %v404
        %v659 = vunpack.c.h.b16 %v404
        %v660 = vunpack.c.l.b16 %v405
        %v661 = vunpack.c.h.b16 %v405
        %v662 = vpack.c.b16 %v536, %v534
        %v663 = vpack.c.b16 %v537, %v535
        %v664 = vpack.c.b16 %v540, %v538
        %v665 = vpack.c.b16 %v541, %v539
        %v666 = vpack.c.b16 %v544, %v542
        %v667 = vpack.c.b16 %v545, %v543
        %v668 = vpack.c.b16 %v548, %v546
        %v669 = vpack.c.b16 %v549, %v547
        %v670 = vpack.c.b16 %v552, %v550
        %v671 = vpack.c.b16 %v553, %v551
        %v672 = vpack.c.b16 %v556, %v554
        %v673 = vpack.c.b16 %v557, %v555
        %v674 = vpack.c.b16 %v560, %v558
        %v675 = vpack.c.b16 %v561, %v559
        %v676 = vpack.c.b16 %v564, %v562
        %v677 = vpack.c.b16 %v565, %v563
        %v678 = vpack.c.b16 %v568, %v566
        %v679 = vpack.c.b16 %v569, %v567
        %v680 = vpack.c.b16 %v572, %v570
        %v681 = vpack.c.b16 %v573, %v571
        %v682 = vpack.c.b16 %v576, %v574
        %v683 = vpack.c.b16 %v577, %v575
        %v684 = vpack.c.b16 %v580, %v578
        %v685 = vpack.c.b16 %v581, %v579
        %v686 = vpack.c.b16 %v584, %v582
        %v687 = vpack.c.b16 %v585, %v583
        %v688 = vpack.c.b16 %v588, %v586
        %v689 = vpack.c.b16 %v589, %v587
        %v690 = vpack.c.b16 %v592, %v590
        %v691 = vpack.c.b16 %v593, %v591
        %v692 = vpack.c.b16 %v596, %v594
        %v693 = vpack.c.b16 %v597, %v595
        %v694 = vpack.c.b16 %v600, %v598
        %v695 = vpack.c.b16 %v601, %v599
        %v696 = vpack.c.b16 %v604, %v602
        %v697 = vpack.c.b16 %v605, %v603
        %v698 = vpack.c.b16 %v608, %v606
        %v699 = vpack.c.b16 %v609, %v607
        %v700 = vpack.c.b16 %v612, %v610
        %v701 = vpack.c.b16 %v613, %v611
        %v702 = vpack.c.b16 %v616, %v614
        %v703 = vpack.c.b16 %v617, %v615
        %v704 = vpack.c.b16 %v620, %v618
        %v705 = vpack.c.b16 %v621, %v619
        %v706 = vpack.c.b16 %v624, %v622
        %v707 = vpack.c.b16 %v625, %v623
        %v708 = vpack.c.b16 %v628, %v626
        %v709 = vpack.c.b16 %v629, %v627
        %v710 = vpack.c.b16 %v632, %v630
        %v711 = vpack.c.b16 %v633, %v631
        %v712 = vpack.c.b16 %v636, %v634
        %v713 = vpack.c.b16 %v637, %v635
        %v714 = vpack.c.b16 %v640, %v638
        %v715 = vpack.c.b16 %v641, %v639
        %v716 = vpack.c.b16 %v644, %v642
        %v717 = vpack.c.b16 %v645, %v643
        %v718 = vpack.c.b16 %v648, %v646
        %v719 = vpack.c.b16 %v649, %v647
        %v720 = vpack.c.b16 %v652, %v650
        %v721 = vpack.c.b16 %v653, %v651
        %v722 = vpack.c.b16 %v656, %v654
        %v723 = vpack.c.b16 %v657, %v655
        %v724 = vpack.c.b16 %v660, %v658
        %v725 = vpack.c.b16 %v661, %v659
        %v854 = vunpack.c.l.b16 %v406
        %v855 = vunpack.c.h.b16 %v406
        %v856 = vunpack.c.l.b16 %v407
        %v857 = vunpack.c.h.b16 %v407
        %v858 = vunpack.c.l.b16 %v408
        %v859 = vunpack.c.h.b16 %v408
        %v860 = vunpack.c.l.b16 %v409
        %v861 = vunpack.c.h.b16 %v409
        %v862 = vunpack.c.l.b16 %v410
        %v863 = vunpack.c.h.b16 %v410
        %v864 = vunpack.c.l.b16 %v411
        %v865 = vunpack.c.h.b16 %v411
        %v866 = vunpack.c.l.b16 %v412
        %v867 = vunpack.c.h.b16 %v412
        %v868 = vunpack.c.l.b16 %v413
        %v869 = vunpack.c.h.b16 %v413
        %v870 = vunpack.c.l.b16 %v414
        %v871 = vunpack.c.h.b16 %v414
        %v872 = vunpack.c.l.b16 %v415
        %v873 = vunpack.c.h.b16 %v415
        %v874 = vunpack.c.l.b16 %v416
        %v875 = vunpack.c.h.b16 %v416
        %v876 = vunpack.c.l.b16 %v417
        %v877 = vunpack.c.h.b16 %v417
        %v878 = vunpack.c.l.b16 %v418
        %v879 = vunpack.c.h.b16 %v418
        %v880 = vunpack.c.l.b16 %v419
        %v881 = vunpack.c.h.b16 %v419
        %v882 = vunpack.c.l.b16 %v420
        %v883 = vunpack.c.h.b16 %v420
        %v884 = vunpack.c.l.b16 %v421
        %v885 = vunpack.c.h.b16 %v421
        %v886 = vunpack.c.l.b16 %v422
        %v887 = vunpack.c.h.b16 %v422
        %v888 = vunpack.c.l.b16 %v423
        %v889 = vunpack.c.h.b16 %v423
        %v890 = vunpack.c.l.b16 %v424
        %v891 = vunpack.c.h.b16 %v424
        %v892 = vunpack.c.l.b16 %v425
        %v893 = vunpack.c.h.b16 %v425
        %v894 = vunpack.c.l.b16 %v426
        %v895 = vunpack.c.h.b16 %v426
        %v896 = vunpack.c.l.b16 %v427
        %v897 = vunpack.c.h.b16 %v427
        %v898 = vunpack.c.l.b16 %v428
        %v899 = vunpack.c.h.b16 %v428
        %v900 = vunpack.c.l.b16 %v429
        %v901 = vunpack.c.h.b16 %v429
        %v902 = vunpack.c.l.b16 %v430
        %v903 = vunpack.c.h.b16 %v430
        %v904 = vunpack.c.l.b16 %v431
        %v905 = vunpack.c.h.b16 %v431
        %v906 = vunpack.c.l.b16 %v432
        %v907 = vunpack.c.h.b16 %v432
        %v908 = vunpack.c.l.b16 %v433
        %v909 = vunpack.c.h.b16 %v433
        %v910 = vunpack.c.l.b16 %v434
        %v911 = vunpack.c.h.b16 %v434
        %v912 = vunpack.c.l.b16 %v435
        %v913 = vunpack.c.h.b16 %v435
        %v914 = vunpack.c.l.b16 %v436
        %v915 = vunpack.c.h.b16 %v436
        %v916 = vunpack.c.l.b16 %v437
        %v917 = vunpack.c.h.b16 %v437
        %v918 = vunpack.c.l.b16 %v438
        %v919 = vunpack.c.h.b16 %v438
        %v920 = vunpack.c.l.b16 %v439
        %v921 = vunpack.c.h.b16 %v439
        %v922 = vunpack.c.l.b16 %v440
        %v923 = vunpack.c.h.b16 %v440
        %v924 = vunpack.c.l.b16 %v441
        %v925 = vunpack.c.h.b16 %v441
        %v926 = vunpack.c.l.b16 %v442
        %v927 = vunpack.c.h.b16 %v442
        %v928 = vunpack.c.l.b16 %v443
        %v929 = vunpack.c.h.b16 %v443
        %v930 = vunpack.c.l.b16 %v444
        %v931 = vunpack.c.h.b16 %v444
        %v932 = vunpack.c.l.b16 %v445
        %v933 = vunpack.c.h.b16 %v445
        %v934 = vunpack.c.l.b16 %v446
        %v935 = vunpack.c.h.b16 %v446
        %v936 = vunpack.c.l.b16 %v447
        %v937 = vunpack.c.h.b16 %v447
        %v938 = vunpack.c.l.b16 %v448
        %v939 = vunpack.c.h.b16 %v448
        %v940 = vunpack.c.l.b16 %v449
        %v941 = vunpack.c.h.b16 %v449
        %v942 = vunpack.c.l.b16 %v450
        %v943 = vunpack.c.h.b16 %v450
        %v944 = vunpack.c.l.b16 %v451
        %v945 = vunpack.c.h.b16 %v451
        %v946 = vunpack.c.l.b16 %v452
        %v947 = vunpack.c.h.b16 %v452
        %v948 = vunpack.c.l.b16 %v453
        %v949 = vunpack.c.h.b16 %v453
        %v950 = vunpack.c.l.b16 %v454
        %v951 = vunpack.c.h.b16 %v454
        %v952 = vunpack.c.l.b16 %v455
        %v953 = vunpack.c.h.b16 %v455
        %v954 = vunpack.c.l.b16 %v456
        %v955 = vunpack.c.h.b16 %v456
        %v956 = vunpack.c.l.b16 %v457
        %v957 = vunpack.c.h.b16 %v457
        %v958 = vunpack.c.l.b16 %v458
        %v959 = vunpack.c.h.b16 %v458
        %v960 = vunpack.c.l.b16 %v459
        %v961 = vunpack.c.h.b16 %v459
        %v962 = vunpack.c.l.b16 %v460
        %v963 = vunpack.c.h.b16 %v460
        %v964 = vunpack.c.l.b16 %v461
        %v965 = vunpack.c.h.b16 %v461
        %v966 = vunpack.c.l.b16 %v462
        %v967 = vunpack.c.h.b16 %v462
        %v968 = vunpack.c.l.b16 %v463
        %v969 = vunpack.c.h.b16 %v463
        %v970 = vunpack.c.l.b16 %v464
        %v971 = vunpack.c.h.b16 %v464
        %v972 = vunpack.c.l.b16 %v465
        %v973 = vunpack.c.h.b16 %v465
        %v974 = vunpack.c.l.b16 %v466
        %v975 = vunpack.c.h.b16 %v466
        %v976 = vunpack.c.l.b16 %v467
        %v977 = vunpack.c.h.b16 %v467
        %v978 = vunpack.c.l.b16 %v468
        %v979 = vunpack.c.h.b16 %v468
        %v980 = vunpack.c.l.b16 %v469
        %v981 = vunpack.c.h.b16 %v469
        %v982 = vpack.c.b16 %v858, %v854
        %v983 = vpack.c.b16 %v859, %v855
        %v984 = vpack.c.b16 %v860, %v856
        %v985 = vpack.c.b16 %v861, %v857
        %v986 = vpack.c.b16 %v866, %v862
        %v987 = vpack.c.b16 %v867, %v863
        %v988 = vpack.c.b16 %v868, %v864
        %v989 = vpack.c.b16 %v869, %v865
        %v990 = vpack.c.b16 %v874, %v870
        %v991 = vpack.c.b16 %v875, %v871
        %v992 = vpack.c.b16 %v876, %v872
        %v993 = vpack.c.b16 %v877, %v873
        %v994 = vpack.c.b16 %v882, %v878
        %v995 = vpack.c.b16 %v883, %v879
        %v996 = vpack.c.b16 %v884, %v880
        %v997 = vpack.c.b16 %v885, %v881
        %v998 = vpack.c.b16 %v890, %v886
        %v999 = vpack.c.b16 %v891, %v887
        %v1000 = vpack.c.b16 %v892, %v888
        %v1001 = vpack.c.b16 %v893, %v889
        %v1002 = vpack.c.b16 %v898, %v894
        %v1003 = vpack.c.b16 %v899, %v895
        %v1004 = vpack.c.b16 %v900, %v896
        %v1005 = vpack.c.b16 %v901, %v897
        %v1006 = vpack.c.b16 %v906, %v902
        %v1007 = vpack.c.b16 %v907, %v903
        %v1008 = vpack.c.b16 %v908, %v904
        %v1009 = vpack.c.b16 %v909, %v905
        %v1010 = vpack.c.b16 %v914, %v910
        %v1011 = vpack.c.b16 %v915, %v911
        %v1012 = vpack.c.b16 %v916, %v912
        %v1013 = vpack.c.b16 %v917, %v913
        %v1014 = vpack.c.b16 %v922, %v918
        %v1015 = vpack.c.b16 %v923, %v919
        %v1016 = vpack.c.b16 %v924, %v920
        %v1017 = vpack.c.b16 %v925, %v921
        %v1018 = vpack.c.b16 %v930, %v926
        %v1019 = vpack.c.b16 %v931, %v927
        %v1020 = vpack.c.b16 %v932, %v928
        %v1021 = vpack.c.b16 %v933, %v929
        %v1022 = vpack.c.b16 %v938, %v934
        %v1023 = vpack.c.b16 %v939, %v935
        %v1024 = vpack.c.b16 %v940, %v936
        %v1025 = vpack.c.b16 %v941, %v937
        %v1026 = vpack.c.b16 %v946, %v942
        %v1027 = vpack.c.b16 %v947, %v943
        %v1028 = vpack.c.b16 %v948, %v944
        %v1029 = vpack.c.b16 %v949, %v945
        %v1030 = vpack.c.b16 %v954, %v950
        %v1031 = vpack.c.b16 %v955, %v951
        %v1032 = vpack.c.b16 %v956, %v952
        %v1033 = vpack.c.b16 %v957, %v953
        %v1034 = vpack.c.b16 %v962, %v958
        %v1035 = vpack.c.b16 %v963, %v959
        %v1036 = vpack.c.b16 %v964, %v960
        %v1037 = vpack.c.b16 %v965, %v961
        %v1038 = vpack.c.b16 %v970, %v966
        %v1039 = vpack.c.b16 %v971, %v967
        %v1040 = vpack.c.b16 %v972, %v968
        %v1041 = vpack.c.b16 %v973, %v969
        %v1042 = vpack.c.b16 %v978, %v974
        %v1043 = vpack.c.b16 %v979, %v975
        %v1044 = vpack.c.b16 %v980, %v976
        %v1045 = vpack.c.b16 %v981, %v977
        %1110 = vmatprep.subr.bf16.mxu0 %v1011
        %1111 = vmatpush1.bf16.msra.mxu0 %v1010
        %1112 = vmatprep.subr.bf16.mxu0 %v1007
        %1113 = vmatpush1.bf16.msra.mxu0 %v1006
        %1114 = vmatprep.subr.bf16.mxu0 %v1003
        %1115 = vmatpush1.bf16.msra.mxu0 %v1002
        %1116 = vmatprep.subr.bf16.mxu0 %v999
        %1117 = vmatpush1.bf16.msra.mxu0 %v998
        %1118 = vmatprep.subr.bf16.mxu0 %v995
        %1119 = vmatpush1.bf16.msra.mxu0 %v994
        %1120 = vmatprep.subr.bf16.mxu0 %v991
        %1121 = vmatpush1.bf16.msra.mxu0 %v990
        %1122 = vmatprep.subr.bf16.mxu0 %v987
        %1123 = vmatpush1.bf16.msra.mxu0 %v986
        %1124 = vmatprep.subr.bf16.mxu0 %v983
        %1125 = vmatpush1.bf16.msra.mxu0 %v982
        %1126 = vmatprep.subr.bf16.mxu0 %v1043
        %1127 = vmatpush2.bf16.msra.mxu0 %v1042
        %1128 = vmatprep.subr.bf16.mxu0 %v1039
        %1129 = vmatpush2.bf16.msra.mxu0 %v1038
        %1130 = vmatprep.subr.bf16.mxu0 %v1035
        %1131 = vmatpush2.bf16.msra.mxu0 %v1034
        %1132 = vmatprep.subr.bf16.mxu0 %v1031
        %1133 = vmatpush2.bf16.msra.mxu0 %v1030
        %1134 = vmatprep.subr.bf16.mxu0 %v1027
        %1135 = vmatpush2.bf16.msra.mxu0 %v1026
        %1136 = vmatprep.subr.bf16.mxu0 %v1023
        %1137 = vmatpush2.bf16.msra.mxu0 %v1022
        %1138 = vmatprep.subr.bf16.mxu0 %v1019
        %1139 = vmatpush2.bf16.msra.mxu0 %v1018
        %1140 = vmatprep.subr.bf16.mxu0 %v1015
        %1141 = vmatpush2.bf16.msra.mxu0 %v1014
        %1142 = vmatprep.mubr.bf16.mxu0 %v663
        %1143 = vmatmul.mubr.bf16.gmra.mxu0 %v662
        %v1144 = vpop.f32.mrf.mxu0
        %v1145 = vadd.f32 0.0, %v1144
        %v1146 = vpop.f32.mrf.mxu0
        %v1147 = vadd.f32 0.0, %v1146
        %v1148 = vpop.f32.mrf.mxu0
        %v1149 = vadd.f32 0.0, %v1148
        %v1150 = vpop.f32.mrf.mxu0
        %v1151 = vadd.f32 0.0, %v1150
        %1152 = vmatprep.mubr.bf16.mxu0 %v665
        %1153 = vmatmul.mubr.bf16.gmra.mxu0 %v664
        %v1154 = vpop.f32.mrf.mxu0
        %v1155 = vadd.f32 0.0, %v1154
        %v1156 = vpop.f32.mrf.mxu0
        %v1157 = vadd.f32 0.0, %v1156
        %v1158 = vpop.f32.mrf.mxu0
        %v1159 = vadd.f32 0.0, %v1158
        %v1160 = vpop.f32.mrf.mxu0
        %v1161 = vadd.f32 0.0, %v1160
        %1162 = vmatprep.mubr.bf16.mxu0 %v667
        %1163 = vmatmul.mubr.bf16.gmra.mxu0 %v666
        %v1164 = vpop.f32.mrf.mxu0
        %v1165 = vadd.f32 0.0, %v1164
        %v1166 = vpop.f32.mrf.mxu0
        %v1167 = vadd.f32 0.0, %v1166
        %v1168 = vpop.f32.mrf.mxu0
        %v1169 = vadd.f32 0.0, %v1168
        %v1170 = vpop.f32.mrf.mxu0
        %v1171 = vadd.f32 0.0, %v1170
        %1172 = vmatprep.mubr.bf16.mxu0 %v669
        %1173 = vmatmul.mubr.bf16.gmra.mxu0 %v668
        %v1174 = vpop.f32.mrf.mxu0
        %v1175 = vadd.f32 0.0, %v1174
        %v1176 = vpop.f32.mrf.mxu0
        %v1177 = vadd.f32 0.0, %v1176
        %v1178 = vpop.f32.mrf.mxu0
        %v1179 = vadd.f32 0.0, %v1178
        %v1180 = vpop.f32.mrf.mxu0
        %v1181 = vadd.f32 0.0, %v1180
        %1182 = vmatprep.mubr.bf16.mxu0 %v671
        %1183 = vmatmul.mubr.bf16.gmra.mxu0 %v670
        %v1184 = vpop.f32.mrf.mxu0
        %v1185 = vadd.f32 0.0, %v1184
        %v1186 = vpop.f32.mrf.mxu0
        %v1187 = vadd.f32 0.0, %v1186
        %v1188 = vpop.f32.mrf.mxu0
        %v1189 = vadd.f32 0.0, %v1188
        %v1190 = vpop.f32.mrf.mxu0
        %v1191 = vadd.f32 0.0, %v1190
        %1192 = vmatprep.mubr.bf16.mxu0 %v673
        %1193 = vmatmul.mubr.bf16.gmra.mxu0 %v672
        %v1194 = vpop.f32.mrf.mxu0
        %v1195 = vadd.f32 0.0, %v1194
        %v1196 = vpop.f32.mrf.mxu0
        %v1197 = vadd.f32 0.0, %v1196
        %v1198 = vpop.f32.mrf.mxu0
        %v1199 = vadd.f32 0.0, %v1198
        %v1200 = vpop.f32.mrf.mxu0
        %v1201 = vadd.f32 0.0, %v1200
        %1202 = vmatprep.mubr.bf16.mxu0 %v675
        %1203 = vmatmul.mubr.bf16.gmra.mxu0 %v674
        %v1204 = vpop.f32.mrf.mxu0
        %v1205 = vadd.f32 0.0, %v1204
        %v1206 = vpop.f32.mrf.mxu0
        %v1207 = vadd.f32 0.0, %v1206
        %v1208 = vpop.f32.mrf.mxu0
        %v1209 = vadd.f32 0.0, %v1208
        %v1210 = vpop.f32.mrf.mxu0
        %v1211 = vadd.f32 0.0, %v1210
        %1212 = vmatprep.mubr.bf16.mxu0 %v677
        %1213 = vmatmul.mubr.bf16.gmra.mxu0 %v676
        %v1214 = vpop.f32.mrf.mxu0
        %v1215 = vadd.f32 0.0, %v1214
        %v1216 = vpop.f32.mrf.mxu0
        %v1217 = vadd.f32 0.0, %v1216
        %v1218 = vpop.f32.mrf.mxu0
        %v1219 = vadd.f32 0.0, %v1218
        %v1220 = vpop.f32.mrf.mxu0
        %v1221 = vadd.f32 0.0, %v1220
        %1222 = vmatprep.mubr.bf16.mxu0 %v679
        %1223 = vmatmul.mubr.bf16.gmra.mxu0 %v678
        %v1224 = vpop.f32.mrf.mxu0
        %v1225 = vadd.f32 0.0, %v1224
        %v1226 = vpop.f32.mrf.mxu0
        %v1227 = vadd.f32 0.0, %v1226
        %v1228 = vpop.f32.mrf.mxu0
        %v1229 = vadd.f32 0.0, %v1228
        %v1230 = vpop.f32.mrf.mxu0
        %v1231 = vadd.f32 0.0, %v1230
        %1232 = vmatprep.mubr.bf16.mxu0 %v681
        %1233 = vmatmul.mubr.bf16.gmra.mxu0 %v680
        %v1234 = vpop.f32.mrf.mxu0
        %v1235 = vadd.f32 0.0, %v1234
        %v1236 = vpop.f32.mrf.mxu0
        %v1237 = vadd.f32 0.0, %v1236
        %v1238 = vpop.f32.mrf.mxu0
        %v1239 = vadd.f32 0.0, %v1238
        %v1240 = vpop.f32.mrf.mxu0
        %v1241 = vadd.f32 0.0, %v1240
        %1242 = vmatprep.mubr.bf16.mxu0 %v683
        %1243 = vmatmul.mubr.bf16.gmra.mxu0 %v682
        %v1244 = vpop.f32.mrf.mxu0
        %v1245 = vadd.f32 0.0, %v1244
        %v1246 = vpop.f32.mrf.mxu0
        %v1247 = vadd.f32 0.0, %v1246
        %v1248 = vpop.f32.mrf.mxu0
        %v1249 = vadd.f32 0.0, %v1248
        %v1250 = vpop.f32.mrf.mxu0
        %v1251 = vadd.f32 0.0, %v1250
        %1252 = vmatprep.mubr.bf16.mxu0 %v685
        %1253 = vmatmul.mubr.bf16.gmra.mxu0 %v684
        %v1254 = vpop.f32.mrf.mxu0
        %v1255 = vadd.f32 0.0, %v1254
        %v1256 = vpop.f32.mrf.mxu0
        %v1257 = vadd.f32 0.0, %v1256
        %v1258 = vpop.f32.mrf.mxu0
        %v1259 = vadd.f32 0.0, %v1258
        %v1260 = vpop.f32.mrf.mxu0
        %v1261 = vadd.f32 0.0, %v1260
        %1262 = vmatprep.mubr.bf16.mxu0 %v687
        %1263 = vmatmul.mubr.bf16.gmra.mxu0 %v686
        %v1264 = vpop.f32.mrf.mxu0
        %v1265 = vadd.f32 0.0, %v1264
        %v1266 = vpop.f32.mrf.mxu0
        %v1267 = vadd.f32 0.0, %v1266
        %v1268 = vpop.f32.mrf.mxu0
        %v1269 = vadd.f32 0.0, %v1268
        %v1270 = vpop.f32.mrf.mxu0
        %v1271 = vadd.f32 0.0, %v1270
        %1272 = vmatprep.mubr.bf16.mxu0 %v689
        %1273 = vmatmul.mubr.bf16.gmra.mxu0 %v688
        %v1274 = vpop.f32.mrf.mxu0
        %v1275 = vadd.f32 0.0, %v1274
        %v1276 = vpop.f32.mrf.mxu0
        %v1277 = vadd.f32 0.0, %v1276
        %v1278 = vpop.f32.mrf.mxu0
        %v1279 = vadd.f32 0.0, %v1278
        %v1280 = vpop.f32.mrf.mxu0
        %v1281 = vadd.f32 0.0, %v1280
        %1282 = vmatprep.mubr.bf16.mxu0 %v691
        %1283 = vmatmul.mubr.bf16.gmra.mxu0 %v690
        %v1284 = vpop.f32.mrf.mxu0
        %v1285 = vadd.f32 0.0, %v1284
        %v1286 = vpop.f32.mrf.mxu0
        %v1287 = vadd.f32 0.0, %v1286
        %v1288 = vpop.f32.mrf.mxu0
        %v1289 = vadd.f32 0.0, %v1288
        %v1290 = vpop.f32.mrf.mxu0
        %v1291 = vadd.f32 0.0, %v1290
        %1292 = vmatprep.mubr.bf16.mxu0 %v693
        %1293 = vmatmul.mubr.bf16.gmra.mxu0 %v692
        %v1294 = vpop.f32.mrf.mxu0
        %v1295 = vadd.f32 0.0, %v1294
        %v1296 = vpop.f32.mrf.mxu0
        %v1297 = vadd.f32 0.0, %v1296
        %v1298 = vpop.f32.mrf.mxu0
        %v1299 = vadd.f32 0.0, %v1298
        %v1300 = vpop.f32.mrf.mxu0
        %v1301 = vadd.f32 0.0, %v1300
        %1302 = vmatprep.mubr.bf16.mxu0 %v695
        %1303 = vmatmul.mubr.bf16.gmra.mxu0 %v694
        %v1304 = vpop.f32.mrf.mxu0
        %v1305 = vadd.f32 0.0, %v1304
        %v1306 = vpop.f32.mrf.mxu0
        %v1307 = vadd.f32 0.0, %v1306
        %v1308 = vpop.f32.mrf.mxu0
        %v1309 = vadd.f32 0.0, %v1308
        %v1310 = vpop.f32.mrf.mxu0
        %v1311 = vadd.f32 0.0, %v1310
        %1312 = vmatprep.mubr.bf16.mxu0 %v697
        %1313 = vmatmul.mubr.bf16.gmra.mxu0 %v696
        %v1314 = vpop.f32.mrf.mxu0
        %v1315 = vadd.f32 0.0, %v1314
        %v1316 = vpop.f32.mrf.mxu0
        %v1317 = vadd.f32 0.0, %v1316
        %v1318 = vpop.f32.mrf.mxu0
        %v1319 = vadd.f32 0.0, %v1318
        %v1320 = vpop.f32.mrf.mxu0
        %v1321 = vadd.f32 0.0, %v1320
        %1322 = vmatprep.mubr.bf16.mxu0 %v699
        %1323 = vmatmul.mubr.bf16.gmra.mxu0 %v698
        %v1324 = vpop.f32.mrf.mxu0
        %v1325 = vadd.f32 0.0, %v1324
        %v1326 = vpop.f32.mrf.mxu0
        %v1327 = vadd.f32 0.0, %v1326
        %v1328 = vpop.f32.mrf.mxu0
        %v1329 = vadd.f32 0.0, %v1328
        %v1330 = vpop.f32.mrf.mxu0
        %v1331 = vadd.f32 0.0, %v1330
        %1332 = vmatprep.mubr.bf16.mxu0 %v701
        %1333 = vmatmul.mubr.bf16.gmra.mxu0 %v700
        %v1334 = vpop.f32.mrf.mxu0
        %v1335 = vadd.f32 0.0, %v1334
        %v1336 = vpop.f32.mrf.mxu0
        %v1337 = vadd.f32 0.0, %v1336
        %v1338 = vpop.f32.mrf.mxu0
        %v1339 = vadd.f32 0.0, %v1338
        %v1340 = vpop.f32.mrf.mxu0
        %v1341 = vadd.f32 0.0, %v1340
        %1342 = vmatprep.mubr.bf16.mxu0 %v703
        %1343 = vmatmul.mubr.bf16.gmra.mxu0 %v702
        %v1344 = vpop.f32.mrf.mxu0
        %v1345 = vadd.f32 0.0, %v1344
        %v1346 = vpop.f32.mrf.mxu0
        %v1347 = vadd.f32 0.0, %v1346
        %v1348 = vpop.f32.mrf.mxu0
        %v1349 = vadd.f32 0.0, %v1348
        %v1350 = vpop.f32.mrf.mxu0
        %v1351 = vadd.f32 0.0, %v1350
        %1352 = vmatprep.mubr.bf16.mxu0 %v705
        %1353 = vmatmul.mubr.bf16.gmra.mxu0 %v704
        %v1354 = vpop.f32.mrf.mxu0
        %v1355 = vadd.f32 0.0, %v1354
        %v1356 = vpop.f32.mrf.mxu0
        %v1357 = vadd.f32 0.0, %v1356
        %v1358 = vpop.f32.mrf.mxu0
        %v1359 = vadd.f32 0.0, %v1358
        %v1360 = vpop.f32.mrf.mxu0
        %v1361 = vadd.f32 0.0, %v1360
        %1362 = vmatprep.mubr.bf16.mxu0 %v707
        %1363 = vmatmul.mubr.bf16.gmra.mxu0 %v706
        %v1364 = vpop.f32.mrf.mxu0
        %v1365 = vadd.f32 0.0, %v1364
        %v1366 = vpop.f32.mrf.mxu0
        %v1367 = vadd.f32 0.0, %v1366
        %v1368 = vpop.f32.mrf.mxu0
        %v1369 = vadd.f32 0.0, %v1368
        %v1370 = vpop.f32.mrf.mxu0
        %v1371 = vadd.f32 0.0, %v1370
        %1372 = vmatprep.mubr.bf16.mxu0 %v709
        %1373 = vmatmul.mubr.bf16.gmra.mxu0 %v708
        %v1374 = vpop.f32.mrf.mxu0
        %v1375 = vadd.f32 0.0, %v1374
        %v1376 = vpop.f32.mrf.mxu0
        %v1377 = vadd.f32 0.0, %v1376
        %v1378 = vpop.f32.mrf.mxu0
        %v1379 = vadd.f32 0.0, %v1378
        %v1380 = vpop.f32.mrf.mxu0
        %v1381 = vadd.f32 0.0, %v1380
        %1382 = vmatprep.mubr.bf16.mxu0 %v711
        %1383 = vmatmul.mubr.bf16.gmra.mxu0 %v710
        %v1384 = vpop.f32.mrf.mxu0
        %v1385 = vadd.f32 0.0, %v1384
        %v1386 = vpop.f32.mrf.mxu0
        %v1387 = vadd.f32 0.0, %v1386
        %v1388 = vpop.f32.mrf.mxu0
        %v1389 = vadd.f32 0.0, %v1388
        %v1390 = vpop.f32.mrf.mxu0
        %v1391 = vadd.f32 0.0, %v1390
        %1392 = vmatprep.mubr.bf16.mxu0 %v713
        %1393 = vmatmul.mubr.bf16.gmra.mxu0 %v712
        %v1394 = vpop.f32.mrf.mxu0
        %v1395 = vadd.f32 0.0, %v1394
        %v1396 = vpop.f32.mrf.mxu0
        %v1397 = vadd.f32 0.0, %v1396
        %v1398 = vpop.f32.mrf.mxu0
        %v1399 = vadd.f32 0.0, %v1398
        %v1400 = vpop.f32.mrf.mxu0
        %v1401 = vadd.f32 0.0, %v1400
        %1402 = vmatprep.mubr.bf16.mxu0 %v715
        %1403 = vmatmul.mubr.bf16.gmra.mxu0 %v714
        %v1404 = vpop.f32.mrf.mxu0
        %v1405 = vadd.f32 0.0, %v1404
        %v1406 = vpop.f32.mrf.mxu0
        %v1407 = vadd.f32 0.0, %v1406
        %v1408 = vpop.f32.mrf.mxu0
        %v1409 = vadd.f32 0.0, %v1408
        %v1410 = vpop.f32.mrf.mxu0
        %v1411 = vadd.f32 0.0, %v1410
        %1412 = vmatprep.mubr.bf16.mxu0 %v717
        %1413 = vmatmul.mubr.bf16.gmra.mxu0 %v716
        %v1414 = vpop.f32.mrf.mxu0
        %v1415 = vadd.f32 0.0, %v1414
        %v1416 = vpop.f32.mrf.mxu0
        %v1417 = vadd.f32 0.0, %v1416
        %v1418 = vpop.f32.mrf.mxu0
        %v1419 = vadd.f32 0.0, %v1418
        %v1420 = vpop.f32.mrf.mxu0
        %v1421 = vadd.f32 0.0, %v1420
        %1422 = vmatprep.mubr.bf16.mxu0 %v719
        %1423 = vmatmul.mubr.bf16.gmra.mxu0 %v718
        %v1424 = vpop.f32.mrf.mxu0
        %v1425 = vadd.f32 0.0, %v1424
        %v1426 = vpop.f32.mrf.mxu0
        %v1427 = vadd.f32 0.0, %v1426
        %v1428 = vpop.f32.mrf.mxu0
        %v1429 = vadd.f32 0.0, %v1428
        %v1430 = vpop.f32.mrf.mxu0
        %v1431 = vadd.f32 0.0, %v1430
        %1432 = vmatprep.mubr.bf16.mxu0 %v721
        %1433 = vmatmul.mubr.bf16.gmra.mxu0 %v720
        %v1434 = vpop.f32.mrf.mxu0
        %v1435 = vadd.f32 0.0, %v1434
        %v1436 = vpop.f32.mrf.mxu0
        %v1437 = vadd.f32 0.0, %v1436
        %v1438 = vpop.f32.mrf.mxu0
        %v1439 = vadd.f32 0.0, %v1438
        %v1440 = vpop.f32.mrf.mxu0
        %v1441 = vadd.f32 0.0, %v1440
        %1442 = vmatprep.mubr.bf16.mxu0 %v723
        %1443 = vmatmul.mubr.bf16.gmra.mxu0 %v722
        %v1444 = vpop.f32.mrf.mxu0
        %v1445 = vadd.f32 0.0, %v1444
        %v1446 = vpop.f32.mrf.mxu0
        %v1447 = vadd.f32 0.0, %v1446
        %v1448 = vpop.f32.mrf.mxu0
        %v1449 = vadd.f32 0.0, %v1448
        %v1450 = vpop.f32.mrf.mxu0
        %v1451 = vadd.f32 0.0, %v1450
        %1452 = vmatprep.mubr.bf16.mxu0 %v725
        %1453 = vmatmul.mubr.bf16.gmra.mxu0 %v724
        %v1454 = vpop.f32.mrf.mxu0
        %v1455 = vadd.f32 0.0, %v1454
        %v1456 = vpop.f32.mrf.mxu0
        %v1457 = vadd.f32 0.0, %v1456
        %v1458 = vpop.f32.mrf.mxu0
        %v1459 = vadd.f32 0.0, %v1458
        %v1460 = vpop.f32.mrf.mxu0
        %v1461 = vadd.f32 0.0, %v1460
        %1462 = vdwg.mxu0
        %1463 = vmatprep.subr.bf16.mxu0 %v1013
        %1464 = vmatpush1.bf16.msra.mxu0 %v1012
        %1465 = vmatprep.subr.bf16.mxu0 %v1009
        %1466 = vmatpush1.bf16.msra.mxu0 %v1008
        %1467 = vmatprep.subr.bf16.mxu0 %v1005
        %1468 = vmatpush1.bf16.msra.mxu0 %v1004
        %1469 = vmatprep.subr.bf16.mxu0 %v1001
        %1470 = vmatpush1.bf16.msra.mxu0 %v1000
        %1471 = vmatprep.subr.bf16.mxu0 %v997
        %1472 = vmatpush1.bf16.msra.mxu0 %v996
        %1473 = vmatprep.subr.bf16.mxu0 %v993
        %1474 = vmatpush1.bf16.msra.mxu0 %v992
        %1475 = vmatprep.subr.bf16.mxu0 %v989
        %1476 = vmatpush1.bf16.msra.mxu0 %v988
        %1477 = vmatprep.subr.bf16.mxu0 %v985
        %1478 = vmatpush1.bf16.msra.mxu0 %v984
        %1479 = vmatprep.subr.bf16.mxu0 %v1045
        %1480 = vmatpush2.bf16.msra.mxu0 %v1044
        %1481 = vmatprep.subr.bf16.mxu0 %v1041
        %1482 = vmatpush2.bf16.msra.mxu0 %v1040
        %1483 = vmatprep.subr.bf16.mxu0 %v1037
        %1484 = vmatpush2.bf16.msra.mxu0 %v1036
        %1485 = vmatprep.subr.bf16.mxu0 %v1033
        %1486 = vmatpush2.bf16.msra.mxu0 %v1032
        %1487 = vmatprep.subr.bf16.mxu0 %v1029
        %1488 = vmatpush2.bf16.msra.mxu0 %v1028
        %1489 = vmatprep.subr.bf16.mxu0 %v1025
        %1490 = vmatpush2.bf16.msra.mxu0 %v1024
        %1491 = vmatprep.subr.bf16.mxu0 %v1021
        %1492 = vmatpush2.bf16.msra.mxu0 %v1020
        %1493 = vmatprep.subr.bf16.mxu0 %v1017
        %1494 = vmatpush2.bf16.msra.mxu0 %v1016
        %1495 = vmatprep.mubr.bf16.mxu0 %v663
        %1496 = vmatmul.mubr.bf16.gmra.mxu0 %v662
        %v1497 = vpop.f32.mrf.mxu0
        %v1498 = vadd.f32 0.0, %v1497
        %v1499 = vpop.f32.mrf.mxu0
        %v1500 = vadd.f32 0.0, %v1499
        %v1501 = vpop.f32.mrf.mxu0
        %v1502 = vadd.f32 0.0, %v1501
        %v1503 = vpop.f32.mrf.mxu0
        %v1504 = vadd.f32 0.0, %v1503
        %1505 = vmatprep.mubr.bf16.mxu0 %v665
        %1506 = vmatmul.mubr.bf16.gmra.mxu0 %v664
        %v1507 = vpop.f32.mrf.mxu0
        %v1508 = vadd.f32 0.0, %v1507
        %v1509 = vpop.f32.mrf.mxu0
        %v1510 = vadd.f32 0.0, %v1509
        %v1511 = vpop.f32.mrf.mxu0
        %v1512 = vadd.f32 0.0, %v1511
        %v1513 = vpop.f32.mrf.mxu0
        %v1514 = vadd.f32 0.0, %v1513
        %1515 = vmatprep.mubr.bf16.mxu0 %v667
        %1516 = vmatmul.mubr.bf16.gmra.mxu0 %v666
        %v1517 = vpop.f32.mrf.mxu0
        %v1518 = vadd.f32 0.0, %v1517
        %v1519 = vpop.f32.mrf.mxu0
        %v1520 = vadd.f32 0.0, %v1519
        %v1521 = vpop.f32.mrf.mxu0
        %v1522 = vadd.f32 0.0, %v1521
        %v1523 = vpop.f32.mrf.mxu0
        %v1524 = vadd.f32 0.0, %v1523
        %1525 = vmatprep.mubr.bf16.mxu0 %v669
        %1526 = vmatmul.mubr.bf16.gmra.mxu0 %v668
        %v1527 = vpop.f32.mrf.mxu0
        %v1528 = vadd.f32 0.0, %v1527
        %v1529 = vpop.f32.mrf.mxu0
        %v1530 = vadd.f32 0.0, %v1529
        %v1531 = vpop.f32.mrf.mxu0
        %v1532 = vadd.f32 0.0, %v1531
        %v1533 = vpop.f32.mrf.mxu0
        %v1534 = vadd.f32 0.0, %v1533
        %1535 = vmatprep.mubr.bf16.mxu0 %v671
        %1536 = vmatmul.mubr.bf16.gmra.mxu0 %v670
        %v1537 = vpop.f32.mrf.mxu0
        %v1538 = vadd.f32 0.0, %v1537
        %v1539 = vpop.f32.mrf.mxu0
        %v1540 = vadd.f32 0.0, %v1539
        %v1541 = vpop.f32.mrf.mxu0
        %v1542 = vadd.f32 0.0, %v1541
        %v1543 = vpop.f32.mrf.mxu0
        %v1544 = vadd.f32 0.0, %v1543
        %1545 = vmatprep.mubr.bf16.mxu0 %v673
        %1546 = vmatmul.mubr.bf16.gmra.mxu0 %v672
        %v1547 = vpop.f32.mrf.mxu0
        %v1548 = vadd.f32 0.0, %v1547
        %v1549 = vpop.f32.mrf.mxu0
        %v1550 = vadd.f32 0.0, %v1549
        %v1551 = vpop.f32.mrf.mxu0
        %v1552 = vadd.f32 0.0, %v1551
        %v1553 = vpop.f32.mrf.mxu0
        %v1554 = vadd.f32 0.0, %v1553
        %1555 = vmatprep.mubr.bf16.mxu0 %v675
        %1556 = vmatmul.mubr.bf16.gmra.mxu0 %v674
        %v1557 = vpop.f32.mrf.mxu0
        %v1558 = vadd.f32 0.0, %v1557
        %v1559 = vpop.f32.mrf.mxu0
        %v1560 = vadd.f32 0.0, %v1559
        %v1561 = vpop.f32.mrf.mxu0
        %v1562 = vadd.f32 0.0, %v1561
        %v1563 = vpop.f32.mrf.mxu0
        %v1564 = vadd.f32 0.0, %v1563
        %1565 = vmatprep.mubr.bf16.mxu0 %v677
        %1566 = vmatmul.mubr.bf16.gmra.mxu0 %v676
        %v1567 = vpop.f32.mrf.mxu0
        %v1568 = vadd.f32 0.0, %v1567
        %v1569 = vpop.f32.mrf.mxu0
        %v1570 = vadd.f32 0.0, %v1569
        %v1571 = vpop.f32.mrf.mxu0
        %v1572 = vadd.f32 0.0, %v1571
        %v1573 = vpop.f32.mrf.mxu0
        %v1574 = vadd.f32 0.0, %v1573
        %1575 = vmatprep.mubr.bf16.mxu0 %v679
        %1576 = vmatmul.mubr.bf16.gmra.mxu0 %v678
        %v1577 = vpop.f32.mrf.mxu0
        %v1578 = vadd.f32 0.0, %v1577
        %v1579 = vpop.f32.mrf.mxu0
        %v1580 = vadd.f32 0.0, %v1579
        %v1581 = vpop.f32.mrf.mxu0
        %v1582 = vadd.f32 0.0, %v1581
        %v1583 = vpop.f32.mrf.mxu0
        %v1584 = vadd.f32 0.0, %v1583
        %1585 = vmatprep.mubr.bf16.mxu0 %v681
        %1586 = vmatmul.mubr.bf16.gmra.mxu0 %v680
        %v1587 = vpop.f32.mrf.mxu0
        %v1588 = vadd.f32 0.0, %v1587
        %v1589 = vpop.f32.mrf.mxu0
        %v1590 = vadd.f32 0.0, %v1589
        %v1591 = vpop.f32.mrf.mxu0
        %v1592 = vadd.f32 0.0, %v1591
        %v1593 = vpop.f32.mrf.mxu0
        %v1594 = vadd.f32 0.0, %v1593
        %1595 = vmatprep.mubr.bf16.mxu0 %v683
        %1596 = vmatmul.mubr.bf16.gmra.mxu0 %v682
        %v1597 = vpop.f32.mrf.mxu0
        %v1598 = vadd.f32 0.0, %v1597
        %v1599 = vpop.f32.mrf.mxu0
        %v1600 = vadd.f32 0.0, %v1599
        %v1601 = vpop.f32.mrf.mxu0
        %v1602 = vadd.f32 0.0, %v1601
        %v1603 = vpop.f32.mrf.mxu0
        %v1604 = vadd.f32 0.0, %v1603
        %1605 = vmatprep.mubr.bf16.mxu0 %v685
        %1606 = vmatmul.mubr.bf16.gmra.mxu0 %v684
        %v1607 = vpop.f32.mrf.mxu0
        %v1608 = vadd.f32 0.0, %v1607
        %v1609 = vpop.f32.mrf.mxu0
        %v1610 = vadd.f32 0.0, %v1609
        %v1611 = vpop.f32.mrf.mxu0
        %v1612 = vadd.f32 0.0, %v1611
        %v1613 = vpop.f32.mrf.mxu0
        %v1614 = vadd.f32 0.0, %v1613
        %1615 = vmatprep.mubr.bf16.mxu0 %v687
        %1616 = vmatmul.mubr.bf16.gmra.mxu0 %v686
        %v1617 = vpop.f32.mrf.mxu0
        %v1618 = vadd.f32 0.0, %v1617
        %v1619 = vpop.f32.mrf.mxu0
        %v1620 = vadd.f32 0.0, %v1619
        %v1621 = vpop.f32.mrf.mxu0
        %v1622 = vadd.f32 0.0, %v1621
        %v1623 = vpop.f32.mrf.mxu0
        %v1624 = vadd.f32 0.0, %v1623
        %1625 = vmatprep.mubr.bf16.mxu0 %v689
        %1626 = vmatmul.mubr.bf16.gmra.mxu0 %v688
        %v1627 = vpop.f32.mrf.mxu0
        %v1628 = vadd.f32 0.0, %v1627
        %v1629 = vpop.f32.mrf.mxu0
        %v1630 = vadd.f32 0.0, %v1629
        %v1631 = vpop.f32.mrf.mxu0
        %v1632 = vadd.f32 0.0, %v1631
        %v1633 = vpop.f32.mrf.mxu0
        %v1634 = vadd.f32 0.0, %v1633
        %1635 = vmatprep.mubr.bf16.mxu0 %v691
        %1636 = vmatmul.mubr.bf16.gmra.mxu0 %v690
        %v1637 = vpop.f32.mrf.mxu0
        %v1638 = vadd.f32 0.0, %v1637
        %v1639 = vpop.f32.mrf.mxu0
        %v1640 = vadd.f32 0.0, %v1639
        %v1641 = vpop.f32.mrf.mxu0
        %v1642 = vadd.f32 0.0, %v1641
        %v1643 = vpop.f32.mrf.mxu0
        %v1644 = vadd.f32 0.0, %v1643
        %1645 = vmatprep.mubr.bf16.mxu0 %v693
        %1646 = vmatmul.mubr.bf16.gmra.mxu0 %v692
        %v1647 = vpop.f32.mrf.mxu0
        %v1648 = vadd.f32 0.0, %v1647
        %v1649 = vpop.f32.mrf.mxu0
        %v1650 = vadd.f32 0.0, %v1649
        %v1651 = vpop.f32.mrf.mxu0
        %v1652 = vadd.f32 0.0, %v1651
        %v1653 = vpop.f32.mrf.mxu0
        %v1654 = vadd.f32 0.0, %v1653
        %1655 = vmatprep.mubr.bf16.mxu0 %v695
        %1656 = vmatmul.mubr.bf16.gmra.mxu0 %v694
        %v1657 = vpop.f32.mrf.mxu0
        %v1658 = vadd.f32 0.0, %v1657
        %v1659 = vpop.f32.mrf.mxu0
        %v1660 = vadd.f32 0.0, %v1659
        %v1661 = vpop.f32.mrf.mxu0
        %v1662 = vadd.f32 0.0, %v1661
        %v1663 = vpop.f32.mrf.mxu0
        %v1664 = vadd.f32 0.0, %v1663
        %1665 = vmatprep.mubr.bf16.mxu0 %v697
        %1666 = vmatmul.mubr.bf16.gmra.mxu0 %v696
        %v1667 = vpop.f32.mrf.mxu0
        %v1668 = vadd.f32 0.0, %v1667
        %v1669 = vpop.f32.mrf.mxu0
        %v1670 = vadd.f32 0.0, %v1669
        %v1671 = vpop.f32.mrf.mxu0
        %v1672 = vadd.f32 0.0, %v1671
        %v1673 = vpop.f32.mrf.mxu0
        %v1674 = vadd.f32 0.0, %v1673
        %1675 = vmatprep.mubr.bf16.mxu0 %v699
        %1676 = vmatmul.mubr.bf16.gmra.mxu0 %v698
        %v1677 = vpop.f32.mrf.mxu0
        %v1678 = vadd.f32 0.0, %v1677
        %v1679 = vpop.f32.mrf.mxu0
        %v1680 = vadd.f32 0.0, %v1679
        %v1681 = vpop.f32.mrf.mxu0
        %v1682 = vadd.f32 0.0, %v1681
        %v1683 = vpop.f32.mrf.mxu0
        %v1684 = vadd.f32 0.0, %v1683
        %1685 = vmatprep.mubr.bf16.mxu0 %v701
        %1686 = vmatmul.mubr.bf16.gmra.mxu0 %v700
        %v1687 = vpop.f32.mrf.mxu0
        %v1688 = vadd.f32 0.0, %v1687
        %v1689 = vpop.f32.mrf.mxu0
        %v1690 = vadd.f32 0.0, %v1689
        %v1691 = vpop.f32.mrf.mxu0
        %v1692 = vadd.f32 0.0, %v1691
        %v1693 = vpop.f32.mrf.mxu0
        %v1694 = vadd.f32 0.0, %v1693
        %1695 = vmatprep.mubr.bf16.mxu0 %v703
        %1696 = vmatmul.mubr.bf16.gmra.mxu0 %v702
        %v1697 = vpop.f32.mrf.mxu0
        %v1698 = vadd.f32 0.0, %v1697
        %v1699 = vpop.f32.mrf.mxu0
        %v1700 = vadd.f32 0.0, %v1699
        %v1701 = vpop.f32.mrf.mxu0
        %v1702 = vadd.f32 0.0, %v1701
        %v1703 = vpop.f32.mrf.mxu0
        %v1704 = vadd.f32 0.0, %v1703
        %1705 = vmatprep.mubr.bf16.mxu0 %v705
        %1706 = vmatmul.mubr.bf16.gmra.mxu0 %v704
        %v1707 = vpop.f32.mrf.mxu0
        %v1708 = vadd.f32 0.0, %v1707
        %v1709 = vpop.f32.mrf.mxu0
        %v1710 = vadd.f32 0.0, %v1709
        %v1711 = vpop.f32.mrf.mxu0
        %v1712 = vadd.f32 0.0, %v1711
        %v1713 = vpop.f32.mrf.mxu0
        %v1714 = vadd.f32 0.0, %v1713
        %1715 = vmatprep.mubr.bf16.mxu0 %v707
        %1716 = vmatmul.mubr.bf16.gmra.mxu0 %v706
        %v1717 = vpop.f32.mrf.mxu0
        %v1718 = vadd.f32 0.0, %v1717
        %v1719 = vpop.f32.mrf.mxu0
        %v1720 = vadd.f32 0.0, %v1719
        %v1721 = vpop.f32.mrf.mxu0
        %v1722 = vadd.f32 0.0, %v1721
        %v1723 = vpop.f32.mrf.mxu0
        %v1724 = vadd.f32 0.0, %v1723
        %1725 = vmatprep.mubr.bf16.mxu0 %v709
        %1726 = vmatmul.mubr.bf16.gmra.mxu0 %v708
        %v1727 = vpop.f32.mrf.mxu0
        %v1728 = vadd.f32 0.0, %v1727
        %v1729 = vpop.f32.mrf.mxu0
        %v1730 = vadd.f32 0.0, %v1729
        %v1731 = vpop.f32.mrf.mxu0
        %v1732 = vadd.f32 0.0, %v1731
        %v1733 = vpop.f32.mrf.mxu0
        %v1734 = vadd.f32 0.0, %v1733
        %1735 = vmatprep.mubr.bf16.mxu0 %v711
        %1736 = vmatmul.mubr.bf16.gmra.mxu0 %v710
        %v1737 = vpop.f32.mrf.mxu0
        %v1738 = vadd.f32 0.0, %v1737
        %v1739 = vpop.f32.mrf.mxu0
        %v1740 = vadd.f32 0.0, %v1739
        %v1741 = vpop.f32.mrf.mxu0
        %v1742 = vadd.f32 0.0, %v1741
        %v1743 = vpop.f32.mrf.mxu0
        %v1744 = vadd.f32 0.0, %v1743
        %1745 = vmatprep.mubr.bf16.mxu0 %v713
        %1746 = vmatmul.mubr.bf16.gmra.mxu0 %v712
        %v1747 = vpop.f32.mrf.mxu0
        %v1748 = vadd.f32 0.0, %v1747
        %v1749 = vpop.f32.mrf.mxu0
        %v1750 = vadd.f32 0.0, %v1749
        %v1751 = vpop.f32.mrf.mxu0
        %v1752 = vadd.f32 0.0, %v1751
        %v1753 = vpop.f32.mrf.mxu0
        %v1754 = vadd.f32 0.0, %v1753
        %1755 = vmatprep.mubr.bf16.mxu0 %v715
        %1756 = vmatmul.mubr.bf16.gmra.mxu0 %v714
        %v1757 = vpop.f32.mrf.mxu0
        %v1758 = vadd.f32 0.0, %v1757
        %v1759 = vpop.f32.mrf.mxu0
        %v1760 = vadd.f32 0.0, %v1759
        %v1761 = vpop.f32.mrf.mxu0
        %v1762 = vadd.f32 0.0, %v1761
        %v1763 = vpop.f32.mrf.mxu0
        %v1764 = vadd.f32 0.0, %v1763
        %1765 = vmatprep.mubr.bf16.mxu0 %v717
        %1766 = vmatmul.mubr.bf16.gmra.mxu0 %v716
        %v1767 = vpop.f32.mrf.mxu0
        %v1768 = vadd.f32 0.0, %v1767
        %v1769 = vpop.f32.mrf.mxu0
        %v1770 = vadd.f32 0.0, %v1769
        %v1771 = vpop.f32.mrf.mxu0
        %v1772 = vadd.f32 0.0, %v1771
        %v1773 = vpop.f32.mrf.mxu0
        %v1774 = vadd.f32 0.0, %v1773
        %1775 = vmatprep.mubr.bf16.mxu0 %v719
        %1776 = vmatmul.mubr.bf16.gmra.mxu0 %v718
        %v1777 = vpop.f32.mrf.mxu0
        %v1778 = vadd.f32 0.0, %v1777
        %v1779 = vpop.f32.mrf.mxu0
        %v1780 = vadd.f32 0.0, %v1779
        %v1781 = vpop.f32.mrf.mxu0
        %v1782 = vadd.f32 0.0, %v1781
        %v1783 = vpop.f32.mrf.mxu0
        %v1784 = vadd.f32 0.0, %v1783
        %1785 = vmatprep.mubr.bf16.mxu0 %v721
        %1786 = vmatmul.mubr.bf16.gmra.mxu0 %v720
        %v1787 = vpop.f32.mrf.mxu0
        %v1788 = vadd.f32 0.0, %v1787
        %v1789 = vpop.f32.mrf.mxu0
        %v1790 = vadd.f32 0.0, %v1789
        %v1791 = vpop.f32.mrf.mxu0
        %v1792 = vadd.f32 0.0, %v1791
        %v1793 = vpop.f32.mrf.mxu0
        %v1794 = vadd.f32 0.0, %v1793
        %1795 = vmatprep.mubr.bf16.mxu0 %v723
        %1796 = vmatmul.mubr.bf16.gmra.mxu0 %v722
        %v1797 = vpop.f32.mrf.mxu0
        %v1798 = vadd.f32 0.0, %v1797
        %v1799 = vpop.f32.mrf.mxu0
        %v1800 = vadd.f32 0.0, %v1799
        %v1801 = vpop.f32.mrf.mxu0
        %v1802 = vadd.f32 0.0, %v1801
        %v1803 = vpop.f32.mrf.mxu0
        %v1804 = vadd.f32 0.0, %v1803
        %1805 = vmatprep.mubr.bf16.mxu0 %v725
        %1806 = vmatmul.mubr.bf16.gmra.mxu0 %v724
        %v1807 = vpop.f32.mrf.mxu0
        %v1808 = vadd.f32 0.0, %v1807
        %v1809 = vpop.f32.mrf.mxu0
        %v1810 = vadd.f32 0.0, %v1809
        %v1811 = vpop.f32.mrf.mxu0
        %v1812 = vadd.f32 0.0, %v1811
        %v1813 = vpop.f32.mrf.mxu0
        %v1814 = vadd.f32 0.0, %v1813
        %1815 = vdwg.mxu0
        %v1816 = vsub.f32 0.0, %v1147
        %v1817 = vsub.f32 0.0, %v1151
        %v1818 = vsub.f32 0.0, %v1157
        %v1819 = vsub.f32 0.0, %v1161
        %v1820 = vsub.f32 0.0, %v1167
        %v1821 = vsub.f32 0.0, %v1171
        %v1822 = vsub.f32 0.0, %v1177
        %v1823 = vsub.f32 0.0, %v1181
        %v1824 = vsub.f32 0.0, %v1187
        %v1825 = vsub.f32 0.0, %v1191
        %v1826 = vsub.f32 0.0, %v1197
        %v1827 = vsub.f32 0.0, %v1201
        %v1828 = vsub.f32 0.0, %v1207
        %v1829 = vsub.f32 0.0, %v1211
        %v1830 = vsub.f32 0.0, %v1217
        %v1831 = vsub.f32 0.0, %v1221
        %v1832 = vsub.f32 0.0, %v1227
        %v1833 = vsub.f32 0.0, %v1231
        %v1834 = vsub.f32 0.0, %v1237
        %v1835 = vsub.f32 0.0, %v1241
        %v1836 = vsub.f32 0.0, %v1247
        %v1837 = vsub.f32 0.0, %v1251
        %v1838 = vsub.f32 0.0, %v1257
        %v1839 = vsub.f32 0.0, %v1261
        %v1840 = vsub.f32 0.0, %v1267
        %v1841 = vsub.f32 0.0, %v1271
        %v1842 = vsub.f32 0.0, %v1277
        %v1843 = vsub.f32 0.0, %v1281
        %v1844 = vsub.f32 0.0, %v1287
        %v1845 = vsub.f32 0.0, %v1291
        %v1846 = vsub.f32 0.0, %v1297
        %v1847 = vsub.f32 0.0, %v1301
        %v1848 = vsub.f32 0.0, %v1307
        %v1849 = vsub.f32 0.0, %v1311
        %v1850 = vsub.f32 0.0, %v1317
        %v1851 = vsub.f32 0.0, %v1321
        %v1852 = vsub.f32 0.0, %v1327
        %v1853 = vsub.f32 0.0, %v1331
        %v1854 = vsub.f32 0.0, %v1337
        %v1855 = vsub.f32 0.0, %v1341
        %v1856 = vsub.f32 0.0, %v1347
        %v1857 = vsub.f32 0.0, %v1351
        %v1858 = vsub.f32 0.0, %v1357
        %v1859 = vsub.f32 0.0, %v1361
        %v1860 = vsub.f32 0.0, %v1367
        %v1861 = vsub.f32 0.0, %v1371
        %v1862 = vsub.f32 0.0, %v1377
        %v1863 = vsub.f32 0.0, %v1381
        %v1864 = vsub.f32 0.0, %v1387
        %v1865 = vsub.f32 0.0, %v1391
        %v1866 = vsub.f32 0.0, %v1397
        %v1867 = vsub.f32 0.0, %v1401
        %v1868 = vsub.f32 0.0, %v1407
        %v1869 = vsub.f32 0.0, %v1411
        %v1870 = vsub.f32 0.0, %v1417
        %v1871 = vsub.f32 0.0, %v1421
        %v1872 = vsub.f32 0.0, %v1427
        %v1873 = vsub.f32 0.0, %v1431
        %v1874 = vsub.f32 0.0, %v1437
        %v1875 = vsub.f32 0.0, %v1441
        %v1876 = vsub.f32 0.0, %v1447
        %v1877 = vsub.f32 0.0, %v1451
        %v1878 = vsub.f32 0.0, %v1457
        %v1879 = vsub.f32 0.0, %v1461
        %v1880 = vld [vmem:[#allocation7] sm:$0xff]
        %v1881 = vld [vmem:[#allocation7 + $0x8] sm:$0xff]
        %v1882 = vld [vmem:[#allocation7 + $0x10] sm:$0xff]
        %v1883 = vld [vmem:[#allocation7 + $0x18] sm:$0xff]
        %v1884 = vld [vmem:[#allocation7 + $0x20] sm:$0xff]
        %v1885 = vld [vmem:[#allocation7 + $0x28] sm:$0xff]
        %v1886 = vld [vmem:[#allocation7 + $0x30] sm:$0xff]
        %v1887 = vld [vmem:[#allocation7 + $0x38] sm:$0xff]
        %v1888 = vld [vmem:[#allocation7 + $0x40] sm:$0xff]
        %v1889 = vld [vmem:[#allocation7 + $0x48] sm:$0xff]
        %v1890 = vld [vmem:[#allocation7 + $0x50] sm:$0xff]
        %v1891 = vld [vmem:[#allocation7 + $0x58] sm:$0xff]
        %v1892 = vld [vmem:[#allocation7 + $0x60] sm:$0xff]
        %v1893 = vld [vmem:[#allocation7 + $0x68] sm:$0xff]
        %v1894 = vld [vmem:[#allocation7 + $0x70] sm:$0xff]
        %v1895 = vld [vmem:[#allocation7 + $0x78] sm:$0xff]
        %v1896 = vld [vmem:[#allocation7 + $0x80] sm:$0xff]
        %v1897 = vld [vmem:[#allocation7 + $0x88] sm:$0xff]
        %v1898 = vld [vmem:[#allocation7 + $0x90] sm:$0xff]
        %v1899 = vld [vmem:[#allocation7 + $0x98] sm:$0xff]
        %v1900 = vld [vmem:[#allocation7 + $0xa0] sm:$0xff]
        %v1901 = vld [vmem:[#allocation7 + $0xa8] sm:$0xff]
        %v1902 = vld [vmem:[#allocation7 + $0xb0] sm:$0xff]
        %v1903 = vld [vmem:[#allocation7 + $0xb8] sm:$0xff]
        %v1904 = vld [vmem:[#allocation7 + $0xc0] sm:$0xff]
        %v1905 = vld [vmem:[#allocation7 + $0xc8] sm:$0xff]
        %v1906 = vld [vmem:[#allocation7 + $0xd0] sm:$0xff]
        %v1907 = vld [vmem:[#allocation7 + $0xd8] sm:$0xff]
        %v1908 = vld [vmem:[#allocation7 + $0xe0] sm:$0xff]
        %v1909 = vld [vmem:[#allocation7 + $0xe8] sm:$0xff]
        %v1910 = vld [vmem:[#allocation7 + $0xf0] sm:$0xff]
        %v1911 = vld [vmem:[#allocation7 + $0xf8] sm:$0xff]
        %v1912 = vld [vmem:[#allocation7 + $0x100] sm:$0xff]
        %v1913 = vld [vmem:[#allocation7 + $0x108] sm:$0xff]
        %v1914 = vld [vmem:[#allocation7 + $0x110] sm:$0xff]
        %v1915 = vld [vmem:[#allocation7 + $0x118] sm:$0xff]
        %v1916 = vld [vmem:[#allocation7 + $0x120] sm:$0xff]
        %v1917 = vld [vmem:[#allocation7 + $0x128] sm:$0xff]
        %v1918 = vld [vmem:[#allocation7 + $0x130] sm:$0xff]
        %v1919 = vld [vmem:[#allocation7 + $0x138] sm:$0xff]
        %v1920 = vld [vmem:[#allocation7 + $0x140] sm:$0xff]
        %v1921 = vld [vmem:[#allocation7 + $0x148] sm:$0xff]
        %v1922 = vld [vmem:[#allocation7 + $0x150] sm:$0xff]
        %v1923 = vld [vmem:[#allocation7 + $0x158] sm:$0xff]
        %v1924 = vld [vmem:[#allocation7 + $0x160] sm:$0xff]
        %v1925 = vld [vmem:[#allocation7 + $0x168] sm:$0xff]
        %v1926 = vld [vmem:[#allocation7 + $0x170] sm:$0xff]
        %v1927 = vld [vmem:[#allocation7 + $0x178] sm:$0xff]
        %v1928 = vld [vmem:[#allocation7 + $0x180] sm:$0xff]
        %v1929 = vld [vmem:[#allocation7 + $0x188] sm:$0xff]
        %v1930 = vld [vmem:[#allocation7 + $0x190] sm:$0xff]
        %v1931 = vld [vmem:[#allocation7 + $0x198] sm:$0xff]
        %v1932 = vld [vmem:[#allocation7 + $0x1a0] sm:$0xff]
        %v1933 = vld [vmem:[#allocation7 + $0x1a8] sm:$0xff]
        %v1934 = vld [vmem:[#allocation7 + $0x1b0] sm:$0xff]
        %v1935 = vld [vmem:[#allocation7 + $0x1b8] sm:$0xff]
        %v1936 = vld [vmem:[#allocation7 + $0x1c0] sm:$0xff]
        %v1937 = vld [vmem:[#allocation7 + $0x1c8] sm:$0xff]
        %v1938 = vld [vmem:[#allocation7 + $0x1d0] sm:$0xff]
        %v1939 = vld [vmem:[#allocation7 + $0x1d8] sm:$0xff]
        %v1940 = vld [vmem:[#allocation7 + $0x1e0] sm:$0xff]
        %v1941 = vld [vmem:[#allocation7 + $0x1e8] sm:$0xff]
        %v1942 = vld [vmem:[#allocation7 + $0x1f0] sm:$0xff]
        %v1943 = vld [vmem:[#allocation7 + $0x1f8] sm:$0xff]
        %v1944 = vld [vmem:[#allocation7 + $0x200] sm:$0xff]
        %v1945 = vld [vmem:[#allocation7 + $0x208] sm:$0xff]
        %v1946 = vld [vmem:[#allocation7 + $0x210] sm:$0xff]
        %v1947 = vld [vmem:[#allocation7 + $0x218] sm:$0xff]
        %v1948 = vld [vmem:[#allocation7 + $0x220] sm:$0xff]
        %v1949 = vld [vmem:[#allocation7 + $0x228] sm:$0xff]
        %v1950 = vld [vmem:[#allocation7 + $0x230] sm:$0xff]
        %v1951 = vld [vmem:[#allocation7 + $0x238] sm:$0xff]
        %v1952 = vld [vmem:[#allocation7 + $0x240] sm:$0xff]
        %v1953 = vld [vmem:[#allocation7 + $0x248] sm:$0xff]
        %v1954 = vld [vmem:[#allocation7 + $0x250] sm:$0xff]
        %v1955 = vld [vmem:[#allocation7 + $0x258] sm:$0xff]
        %v1956 = vld [vmem:[#allocation7 + $0x260] sm:$0xff]
        %v1957 = vld [vmem:[#allocation7 + $0x268] sm:$0xff]
        %v1958 = vld [vmem:[#allocation7 + $0x270] sm:$0xff]
        %v1959 = vld [vmem:[#allocation7 + $0x278] sm:$0xff]
        %v1960 = vld [vmem:[#allocation7 + $0x280] sm:$0xff]
        %v1961 = vld [vmem:[#allocation7 + $0x288] sm:$0xff]
        %v1962 = vld [vmem:[#allocation7 + $0x290] sm:$0xff]
        %v1963 = vld [vmem:[#allocation7 + $0x298] sm:$0xff]
        %v1964 = vld [vmem:[#allocation7 + $0x2a0] sm:$0xff]
        %v1965 = vld [vmem:[#allocation7 + $0x2a8] sm:$0xff]
        %v1966 = vld [vmem:[#allocation7 + $0x2b0] sm:$0xff]
        %v1967 = vld [vmem:[#allocation7 + $0x2b8] sm:$0xff]
        %v1968 = vld [vmem:[#allocation7 + $0x2c0] sm:$0xff]
        %v1969 = vld [vmem:[#allocation7 + $0x2c8] sm:$0xff]
        %v1970 = vld [vmem:[#allocation7 + $0x2d0] sm:$0xff]
        %v1971 = vld [vmem:[#allocation7 + $0x2d8] sm:$0xff]
        %v1972 = vld [vmem:[#allocation7 + $0x2e0] sm:$0xff]
        %v1973 = vld [vmem:[#allocation7 + $0x2e8] sm:$0xff]
        %v1974 = vld [vmem:[#allocation7 + $0x2f0] sm:$0xff]
        %v1975 = vld [vmem:[#allocation7 + $0x2f8] sm:$0xff]
        %v1976 = vld [vmem:[#allocation7 + $0x300] sm:$0xff]
        %v1977 = vld [vmem:[#allocation7 + $0x308] sm:$0xff]
        %v1978 = vld [vmem:[#allocation7 + $0x310] sm:$0xff]
        %v1979 = vld [vmem:[#allocation7 + $0x318] sm:$0xff]
        %v1980 = vld [vmem:[#allocation7 + $0x320] sm:$0xff]
        %v1981 = vld [vmem:[#allocation7 + $0x328] sm:$0xff]
        %v1982 = vld [vmem:[#allocation7 + $0x330] sm:$0xff]
        %v1983 = vld [vmem:[#allocation7 + $0x338] sm:$0xff]
        %v1984 = vld [vmem:[#allocation7 + $0x340] sm:$0xff]
        %v1985 = vld [vmem:[#allocation7 + $0x348] sm:$0xff]
        %v1986 = vld [vmem:[#allocation7 + $0x350] sm:$0xff]
        %v1987 = vld [vmem:[#allocation7 + $0x358] sm:$0xff]
        %v1988 = vld [vmem:[#allocation7 + $0x360] sm:$0xff]
        %v1989 = vld [vmem:[#allocation7 + $0x368] sm:$0xff]
        %v1990 = vld [vmem:[#allocation7 + $0x370] sm:$0xff]
        %v1991 = vld [vmem:[#allocation7 + $0x378] sm:$0xff]
        %v1992 = vld [vmem:[#allocation7 + $0x380] sm:$0xff]
        %v1993 = vld [vmem:[#allocation7 + $0x388] sm:$0xff]
        %v1994 = vld [vmem:[#allocation7 + $0x390] sm:$0xff]
        %v1995 = vld [vmem:[#allocation7 + $0x398] sm:$0xff]
        %v1996 = vld [vmem:[#allocation7 + $0x3a0] sm:$0xff]
        %v1997 = vld [vmem:[#allocation7 + $0x3a8] sm:$0xff]
        %v1998 = vld [vmem:[#allocation7 + $0x3b0] sm:$0xff]
        %v1999 = vld [vmem:[#allocation7 + $0x3b8] sm:$0xff]
        %v2000 = vld [vmem:[#allocation7 + $0x3c0] sm:$0xff]
        %v2001 = vld [vmem:[#allocation7 + $0x3c8] sm:$0xff]
        %v2002 = vld [vmem:[#allocation7 + $0x3d0] sm:$0xff]
        %v2003 = vld [vmem:[#allocation7 + $0x3d8] sm:$0xff]
        %v2004 = vld [vmem:[#allocation7 + $0x3e0] sm:$0xff]
        %v2005 = vld [vmem:[#allocation7 + $0x3e8] sm:$0xff]
        %v2006 = vld [vmem:[#allocation7 + $0x3f0] sm:$0xff]
        %v2007 = vld [vmem:[#allocation7 + $0x3f8] sm:$0xff]
        %v2008 = vmul.f32 %v1145, %v1880
        %v2009 = vmul.f32 %v1147, %v1881
        %v2010 = vmul.f32 %v1149, %v1882
        %v2011 = vmul.f32 %v1151, %v1883
        %v2012 = vmul.f32 %v1155, %v1884
        %v2013 = vmul.f32 %v1157, %v1885
        %v2014 = vmul.f32 %v1159, %v1886
        %v2015 = vmul.f32 %v1161, %v1887
        %v2016 = vmul.f32 %v1165, %v1888
        %v2017 = vmul.f32 %v1167, %v1889
        %v2018 = vmul.f32 %v1169, %v1890
        %v2019 = vmul.f32 %v1171, %v1891
        %v2020 = vmul.f32 %v1175, %v1892
        %v2021 = vmul.f32 %v1177, %v1893
        %v2022 = vmul.f32 %v1179, %v1894
        %v2023 = vmul.f32 %v1181, %v1895
        %v2024 = vmul.f32 %v1185, %v1896
        %v2025 = vmul.f32 %v1187, %v1897
        %v2026 = vmul.f32 %v1189, %v1898
        %v2027 = vmul.f32 %v1191, %v1899
        %v2028 = vmul.f32 %v1195, %v1900
        %v2029 = vmul.f32 %v1197, %v1901
        %v2030 = vmul.f32 %v1199, %v1902
        %v2031 = vmul.f32 %v1201, %v1903
        %v2032 = vmul.f32 %v1205, %v1904
        %v2033 = vmul.f32 %v1207, %v1905
        %v2034 = vmul.f32 %v1209, %v1906
        %v2035 = vmul.f32 %v1211, %v1907
        %v2036 = vmul.f32 %v1215, %v1908
        %v2037 = vmul.f32 %v1217, %v1909
        %v2038 = vmul.f32 %v1219, %v1910
        %v2039 = vmul.f32 %v1221, %v1911
        %v2040 = vmul.f32 %v1225, %v1912
        %v2041 = vmul.f32 %v1227, %v1913
        %v2042 = vmul.f32 %v1229, %v1914
        %v2043 = vmul.f32 %v1231, %v1915
        %v2044 = vmul.f32 %v1235, %v1916
        %v2045 = vmul.f32 %v1237, %v1917
        %v2046 = vmul.f32 %v1239, %v1918
        %v2047 = vmul.f32 %v1241, %v1919
        %v2048 = vmul.f32 %v1245, %v1920
        %v2049 = vmul.f32 %v1247, %v1921
        %v2050 = vmul.f32 %v1249, %v1922
        %v2051 = vmul.f32 %v1251, %v1923
        %v2052 = vmul.f32 %v1255, %v1924
        %v2053 = vmul.f32 %v1257, %v1925
        %v2054 = vmul.f32 %v1259, %v1926
        %v2055 = vmul.f32 %v1261, %v1927
        %v2056 = vmul.f32 %v1265, %v1928
        %v2057 = vmul.f32 %v1267, %v1929
        %v2058 = vmul.f32 %v1269, %v1930
        %v2059 = vmul.f32 %v1271, %v1931
        %v2060 = vmul.f32 %v1275, %v1932
        %v2061 = vmul.f32 %v1277, %v1933
        %v2062 = vmul.f32 %v1279, %v1934
        %v2063 = vmul.f32 %v1281, %v1935
        %v2064 = vmul.f32 %v1285, %v1936
        %v2065 = vmul.f32 %v1287, %v1937
        %v2066 = vmul.f32 %v1289, %v1938
        %v2067 = vmul.f32 %v1291, %v1939
        %v2068 = vmul.f32 %v1295, %v1940
        %v2069 = vmul.f32 %v1297, %v1941
        %v2070 = vmul.f32 %v1299, %v1942
        %v2071 = vmul.f32 %v1301, %v1943
        %v2072 = vmul.f32 %v1305, %v1944
        %v2073 = vmul.f32 %v1307, %v1945
        %v2074 = vmul.f32 %v1309, %v1946
        %v2075 = vmul.f32 %v1311, %v1947
        %v2076 = vmul.f32 %v1315, %v1948
        %v2077 = vmul.f32 %v1317, %v1949
        %v2078 = vmul.f32 %v1319, %v1950
        %v2079 = vmul.f32 %v1321, %v1951
        %v2080 = vmul.f32 %v1325, %v1952
        %v2081 = vmul.f32 %v1327, %v1953
        %v2082 = vmul.f32 %v1329, %v1954
        %v2083 = vmul.f32 %v1331, %v1955
        %v2084 = vmul.f32 %v1335, %v1956
        %v2085 = vmul.f32 %v1337, %v1957
        %v2086 = vmul.f32 %v1339, %v1958
        %v2087 = vmul.f32 %v1341, %v1959
        %v2088 = vmul.f32 %v1345, %v1960
        %v2089 = vmul.f32 %v1347, %v1961
        %v2090 = vmul.f32 %v1349, %v1962
        %v2091 = vmul.f32 %v1351, %v1963
        %v2092 = vmul.f32 %v1355, %v1964
        %v2093 = vmul.f32 %v1357, %v1965
        %v2094 = vmul.f32 %v1359, %v1966
        %v2095 = vmul.f32 %v1361, %v1967
        %v2096 = vmul.f32 %v1365, %v1968
        %v2097 = vmul.f32 %v1367, %v1969
        %v2098 = vmul.f32 %v1369, %v1970
        %v2099 = vmul.f32 %v1371, %v1971
        %v2100 = vmul.f32 %v1375, %v1972
        %v2101 = vmul.f32 %v1377, %v1973
        %v2102 = vmul.f32 %v1379, %v1974
        %v2103 = vmul.f32 %v1381, %v1975
        %v2104 = vmul.f32 %v1385, %v1976
        %v2105 = vmul.f32 %v1387, %v1977
        %v2106 = vmul.f32 %v1389, %v1978
        %v2107 = vmul.f32 %v1391, %v1979
        %v2108 = vmul.f32 %v1395, %v1980
        %v2109 = vmul.f32 %v1397, %v1981
        %v2110 = vmul.f32 %v1399, %v1982
        %v2111 = vmul.f32 %v1401, %v1983
        %v2112 = vmul.f32 %v1405, %v1984
        %v2113 = vmul.f32 %v1407, %v1985
        %v2114 = vmul.f32 %v1409, %v1986
        %v2115 = vmul.f32 %v1411, %v1987
        %v2116 = vmul.f32 %v1415, %v1988
        %v2117 = vmul.f32 %v1417, %v1989
        %v2118 = vmul.f32 %v1419, %v1990
        %v2119 = vmul.f32 %v1421, %v1991
        %v2120 = vmul.f32 %v1425, %v1992
        %v2121 = vmul.f32 %v1427, %v1993
        %v2122 = vmul.f32 %v1429, %v1994
        %v2123 = vmul.f32 %v1431, %v1995
        %v2124 = vmul.f32 %v1435, %v1996
        %v2125 = vmul.f32 %v1437, %v1997
        %v2126 = vmul.f32 %v1439, %v1998
        %v2127 = vmul.f32 %v1441, %v1999
        %v2128 = vmul.f32 %v1445, %v2000
        %v2129 = vmul.f32 %v1447, %v2001
        %v2130 = vmul.f32 %v1449, %v2002
        %v2131 = vmul.f32 %v1451, %v2003
        %v2132 = vmul.f32 %v1455, %v2004
        %v2133 = vmul.f32 %v1457, %v2005
        %v2134 = vmul.f32 %v1459, %v2006
        %v2135 = vmul.f32 %v1461, %v2007
        %v2136 = vld [vmem:[#allocation8] sm:$0xff]
        %v2137 = vld [vmem:[#allocation8 + $0x8] sm:$0xff]
        %v2138 = vld [vmem:[#allocation8 + $0x10] sm:$0xff]
        %v2139 = vld [vmem:[#allocation8 + $0x18] sm:$0xff]
        %v2140 = vld [vmem:[#allocation8 + $0x20] sm:$0xff]
        %v2141 = vld [vmem:[#allocation8 + $0x28] sm:$0xff]
        %v2142 = vld [vmem:[#allocation8 + $0x30] sm:$0xff]
        %v2143 = vld [vmem:[#allocation8 + $0x38] sm:$0xff]
        %v2144 = vld [vmem:[#allocation8 + $0x40] sm:$0xff]
        %v2145 = vld [vmem:[#allocation8 + $0x48] sm:$0xff]
        %v2146 = vld [vmem:[#allocation8 + $0x50] sm:$0xff]
        %v2147 = vld [vmem:[#allocation8 + $0x58] sm:$0xff]
        %v2148 = vld [vmem:[#allocation8 + $0x60] sm:$0xff]
        %v2149 = vld [vmem:[#allocation8 + $0x68] sm:$0xff]
        %v2150 = vld [vmem:[#allocation8 + $0x70] sm:$0xff]
        %v2151 = vld [vmem:[#allocation8 + $0x78] sm:$0xff]
        %v2152 = vld [vmem:[#allocation8 + $0x80] sm:$0xff]
        %v2153 = vld [vmem:[#allocation8 + $0x88] sm:$0xff]
        %v2154 = vld [vmem:[#allocation8 + $0x90] sm:$0xff]
        %v2155 = vld [vmem:[#allocation8 + $0x98] sm:$0xff]
        %v2156 = vld [vmem:[#allocation8 + $0xa0] sm:$0xff]
        %v2157 = vld [vmem:[#allocation8 + $0xa8] sm:$0xff]
        %v2158 = vld [vmem:[#allocation8 + $0xb0] sm:$0xff]
        %v2159 = vld [vmem:[#allocation8 + $0xb8] sm:$0xff]
        %v2160 = vld [vmem:[#allocation8 + $0xc0] sm:$0xff]
        %v2161 = vld [vmem:[#allocation8 + $0xc8] sm:$0xff]
        %v2162 = vld [vmem:[#allocation8 + $0xd0] sm:$0xff]
        %v2163 = vld [vmem:[#allocation8 + $0xd8] sm:$0xff]
        %v2164 = vld [vmem:[#allocation8 + $0xe0] sm:$0xff]
        %v2165 = vld [vmem:[#allocation8 + $0xe8] sm:$0xff]
        %v2166 = vld [vmem:[#allocation8 + $0xf0] sm:$0xff]
        %v2167 = vld [vmem:[#allocation8 + $0xf8] sm:$0xff]
        %v2168 = vld [vmem:[#allocation8 + $0x100] sm:$0xff]
        %v2169 = vld [vmem:[#allocation8 + $0x108] sm:$0xff]
        %v2170 = vld [vmem:[#allocation8 + $0x110] sm:$0xff]
        %v2171 = vld [vmem:[#allocation8 + $0x118] sm:$0xff]
        %v2172 = vld [vmem:[#allocation8 + $0x120] sm:$0xff]
        %v2173 = vld [vmem:[#allocation8 + $0x128] sm:$0xff]
        %v2174 = vld [vmem:[#allocation8 + $0x130] sm:$0xff]
        %v2175 = vld [vmem:[#allocation8 + $0x138] sm:$0xff]
        %v2176 = vld [vmem:[#allocation8 + $0x140] sm:$0xff]
        %v2177 = vld [vmem:[#allocation8 + $0x148] sm:$0xff]
        %v2178 = vld [vmem:[#allocation8 + $0x150] sm:$0xff]
        %v2179 = vld [vmem:[#allocation8 + $0x158] sm:$0xff]
        %v2180 = vld [vmem:[#allocation8 + $0x160] sm:$0xff]
        %v2181 = vld [vmem:[#allocation8 + $0x168] sm:$0xff]
        %v2182 = vld [vmem:[#allocation8 + $0x170] sm:$0xff]
        %v2183 = vld [vmem:[#allocation8 + $0x178] sm:$0xff]
        %v2184 = vld [vmem:[#allocation8 + $0x180] sm:$0xff]
        %v2185 = vld [vmem:[#allocation8 + $0x188] sm:$0xff]
        %v2186 = vld [vmem:[#allocation8 + $0x190] sm:$0xff]
        %v2187 = vld [vmem:[#allocation8 + $0x198] sm:$0xff]
        %v2188 = vld [vmem:[#allocation8 + $0x1a0] sm:$0xff]
        %v2189 = vld [vmem:[#allocation8 + $0x1a8] sm:$0xff]
        %v2190 = vld [vmem:[#allocation8 + $0x1b0] sm:$0xff]
        %v2191 = vld [vmem:[#allocation8 + $0x1b8] sm:$0xff]
        %v2192 = vld [vmem:[#allocation8 + $0x1c0] sm:$0xff]
        %v2193 = vld [vmem:[#allocation8 + $0x1c8] sm:$0xff]
        %v2194 = vld [vmem:[#allocation8 + $0x1d0] sm:$0xff]
        %v2195 = vld [vmem:[#allocation8 + $0x1d8] sm:$0xff]
        %v2196 = vld [vmem:[#allocation8 + $0x1e0] sm:$0xff]
        %v2197 = vld [vmem:[#allocation8 + $0x1e8] sm:$0xff]
        %v2198 = vld [vmem:[#allocation8 + $0x1f0] sm:$0xff]
        %v2199 = vld [vmem:[#allocation8 + $0x1f8] sm:$0xff]
        %v2200 = vld [vmem:[#allocation8 + $0x200] sm:$0xff]
        %v2201 = vld [vmem:[#allocation8 + $0x208] sm:$0xff]
        %v2202 = vld [vmem:[#allocation8 + $0x210] sm:$0xff]
        %v2203 = vld [vmem:[#allocation8 + $0x218] sm:$0xff]
        %v2204 = vld [vmem:[#allocation8 + $0x220] sm:$0xff]
        %v2205 = vld [vmem:[#allocation8 + $0x228] sm:$0xff]
        %v2206 = vld [vmem:[#allocation8 + $0x230] sm:$0xff]
        %v2207 = vld [vmem:[#allocation8 + $0x238] sm:$0xff]
        %v2208 = vld [vmem:[#allocation8 + $0x240] sm:$0xff]
        %v2209 = vld [vmem:[#allocation8 + $0x248] sm:$0xff]
        %v2210 = vld [vmem:[#allocation8 + $0x250] sm:$0xff]
        %v2211 = vld [vmem:[#allocation8 + $0x258] sm:$0xff]
        %v2212 = vld [vmem:[#allocation8 + $0x260] sm:$0xff]
        %v2213 = vld [vmem:[#allocation8 + $0x268] sm:$0xff]
        %v2214 = vld [vmem:[#allocation8 + $0x270] sm:$0xff]
        %v2215 = vld [vmem:[#allocation8 + $0x278] sm:$0xff]
        %v2216 = vld [vmem:[#allocation8 + $0x280] sm:$0xff]
        %v2217 = vld [vmem:[#allocation8 + $0x288] sm:$0xff]
        %v2218 = vld [vmem:[#allocation8 + $0x290] sm:$0xff]
        %v2219 = vld [vmem:[#allocation8 + $0x298] sm:$0xff]
        %v2220 = vld [vmem:[#allocation8 + $0x2a0] sm:$0xff]
        %v2221 = vld [vmem:[#allocation8 + $0x2a8] sm:$0xff]
        %v2222 = vld [vmem:[#allocation8 + $0x2b0] sm:$0xff]
        %v2223 = vld [vmem:[#allocation8 + $0x2b8] sm:$0xff]
        %v2224 = vld [vmem:[#allocation8 + $0x2c0] sm:$0xff]
        %v2225 = vld [vmem:[#allocation8 + $0x2c8] sm:$0xff]
        %v2226 = vld [vmem:[#allocation8 + $0x2d0] sm:$0xff]
        %v2227 = vld [vmem:[#allocation8 + $0x2d8] sm:$0xff]
        %v2228 = vld [vmem:[#allocation8 + $0x2e0] sm:$0xff]
        %v2229 = vld [vmem:[#allocation8 + $0x2e8] sm:$0xff]
        %v2230 = vld [vmem:[#allocation8 + $0x2f0] sm:$0xff]
        %v2231 = vld [vmem:[#allocation8 + $0x2f8] sm:$0xff]
        %v2232 = vld [vmem:[#allocation8 + $0x300] sm:$0xff]
        %v2233 = vld [vmem:[#allocation8 + $0x308] sm:$0xff]
        %v2234 = vld [vmem:[#allocation8 + $0x310] sm:$0xff]
        %v2235 = vld [vmem:[#allocation8 + $0x318] sm:$0xff]
        %v2236 = vld [vmem:[#allocation8 + $0x320] sm:$0xff]
        %v2237 = vld [vmem:[#allocation8 + $0x328] sm:$0xff]
        %v2238 = vld [vmem:[#allocation8 + $0x330] sm:$0xff]
        %v2239 = vld [vmem:[#allocation8 + $0x338] sm:$0xff]
        %v2240 = vld [vmem:[#allocation8 + $0x340] sm:$0xff]
        %v2241 = vld [vmem:[#allocation8 + $0x348] sm:$0xff]
        %v2242 = vld [vmem:[#allocation8 + $0x350] sm:$0xff]
        %v2243 = vld [vmem:[#allocation8 + $0x358] sm:$0xff]
        %v2244 = vld [vmem:[#allocation8 + $0x360] sm:$0xff]
        %v2245 = vld [vmem:[#allocation8 + $0x368] sm:$0xff]
        %v2246 = vld [vmem:[#allocation8 + $0x370] sm:$0xff]
        %v2247 = vld [vmem:[#allocation8 + $0x378] sm:$0xff]
        %v2248 = vld [vmem:[#allocation8 + $0x380] sm:$0xff]
        %v2249 = vld [vmem:[#allocation8 + $0x388] sm:$0xff]
        %v2250 = vld [vmem:[#allocation8 + $0x390] sm:$0xff]
        %v2251 = vld [vmem:[#allocation8 + $0x398] sm:$0xff]
        %v2252 = vld [vmem:[#allocation8 + $0x3a0] sm:$0xff]
        %v2253 = vld [vmem:[#allocation8 + $0x3a8] sm:$0xff]
        %v2254 = vld [vmem:[#allocation8 + $0x3b0] sm:$0xff]
        %v2255 = vld [vmem:[#allocation8 + $0x3b8] sm:$0xff]
        %v2256 = vld [vmem:[#allocation8 + $0x3c0] sm:$0xff]
        %v2257 = vld [vmem:[#allocation8 + $0x3c8] sm:$0xff]
        %v2258 = vld [vmem:[#allocation8 + $0x3d0] sm:$0xff]
        %v2259 = vld [vmem:[#allocation8 + $0x3d8] sm:$0xff]
        %v2260 = vld [vmem:[#allocation8 + $0x3e0] sm:$0xff]
        %v2261 = vld [vmem:[#allocation8 + $0x3e8] sm:$0xff]
        %v2262 = vld [vmem:[#allocation8 + $0x3f0] sm:$0xff]
        %v2263 = vld [vmem:[#allocation8 + $0x3f8] sm:$0xff]
        %v2264 = vmul.f32 %v1816, %v2136
        %v2265 = vmul.f32 %v1145, %v2137
        %v2266 = vmul.f32 %v1817, %v2138
        %v2267 = vmul.f32 %v1149, %v2139
        %v2268 = vmul.f32 %v1818, %v2140
        %v2269 = vmul.f32 %v1155, %v2141
        %v2270 = vmul.f32 %v1819, %v2142
        %v2271 = vmul.f32 %v1159, %v2143
        %v2272 = vmul.f32 %v1820, %v2144
        %v2273 = vmul.f32 %v1165, %v2145
        %v2274 = vmul.f32 %v1821, %v2146
        %v2275 = vmul.f32 %v1169, %v2147
        %v2276 = vmul.f32 %v1822, %v2148
        %v2277 = vmul.f32 %v1175, %v2149
        %v2278 = vmul.f32 %v1823, %v2150
        %v2279 = vmul.f32 %v1179, %v2151
        %v2280 = vmul.f32 %v1824, %v2152
        %v2281 = vmul.f32 %v1185, %v2153
        %v2282 = vmul.f32 %v1825, %v2154
        %v2283 = vmul.f32 %v1189, %v2155
        %v2284 = vmul.f32 %v1826, %v2156
        %v2285 = vmul.f32 %v1195, %v2157
        %v2286 = vmul.f32 %v1827, %v2158
        %v2287 = vmul.f32 %v1199, %v2159
        %v2288 = vmul.f32 %v1828, %v2160
        %v2289 = vmul.f32 %v1205, %v2161
        %v2290 = vmul.f32 %v1829, %v2162
        %v2291 = vmul.f32 %v1209, %v2163
        %v2292 = vmul.f32 %v1830, %v2164
        %v2293 = vmul.f32 %v1215, %v2165
        %v2294 = vmul.f32 %v1831, %v2166
        %v2295 = vmul.f32 %v1219, %v2167
        %v2296 = vmul.f32 %v1832, %v2168
        %v2297 = vmul.f32 %v1225, %v2169
        %v2298 = vmul.f32 %v1833, %v2170
        %v2299 = vmul.f32 %v1229, %v2171
        %v2300 = vmul.f32 %v1834, %v2172
        %v2301 = vmul.f32 %v1235, %v2173
        %v2302 = vmul.f32 %v1835, %v2174
        %v2303 = vmul.f32 %v1239, %v2175
        %v2304 = vmul.f32 %v1836, %v2176
        %v2305 = vmul.f32 %v1245, %v2177
        %v2306 = vmul.f32 %v1837, %v2178
        %v2307 = vmul.f32 %v1249, %v2179
        %v2308 = vmul.f32 %v1838, %v2180
        %v2309 = vmul.f32 %v1255, %v2181
        %v2310 = vmul.f32 %v1839, %v2182
        %v2311 = vmul.f32 %v1259, %v2183
        %v2312 = vmul.f32 %v1840, %v2184
        %v2313 = vmul.f32 %v1265, %v2185
        %v2314 = vmul.f32 %v1841, %v2186
        %v2315 = vmul.f32 %v1269, %v2187
        %v2316 = vmul.f32 %v1842, %v2188
        %v2317 = vmul.f32 %v1275, %v2189
        %v2318 = vmul.f32 %v1843, %v2190
        %v2319 = vmul.f32 %v1279, %v2191
        %v2320 = vmul.f32 %v1844, %v2192
        %v2321 = vmul.f32 %v1285, %v2193
        %v2322 = vmul.f32 %v1845, %v2194
        %v2323 = vmul.f32 %v1289, %v2195
        %v2324 = vmul.f32 %v1846, %v2196
        %v2325 = vmul.f32 %v1295, %v2197
        %v2326 = vmul.f32 %v1847, %v2198
        %v2327 = vmul.f32 %v1299, %v2199
        %v2328 = vmul.f32 %v1848, %v2200
        %v2329 = vmul.f32 %v1305, %v2201
        %v2330 = vmul.f32 %v1849, %v2202
        %v2331 = vmul.f32 %v1309, %v2203
        %v2332 = vmul.f32 %v1850, %v2204
        %v2333 = vmul.f32 %v1315, %v2205
        %v2334 = vmul.f32 %v1851, %v2206
        %v2335 = vmul.f32 %v1319, %v2207
        %v2336 = vmul.f32 %v1852, %v2208
        %v2337 = vmul.f32 %v1325, %v2209
        %v2338 = vmul.f32 %v1853, %v2210
        %v2339 = vmul.f32 %v1329, %v2211
        %v2340 = vmul.f32 %v1854, %v2212
        %v2341 = vmul.f32 %v1335, %v2213
        %v2342 = vmul.f32 %v1855, %v2214
        %v2343 = vmul.f32 %v1339, %v2215
        %v2344 = vmul.f32 %v1856, %v2216
        %v2345 = vmul.f32 %v1345, %v2217
        %v2346 = vmul.f32 %v1857, %v2218
        %v2347 = vmul.f32 %v1349, %v2219
        %v2348 = vmul.f32 %v1858, %v2220
        %v2349 = vmul.f32 %v1355, %v2221
        %v2350 = vmul.f32 %v1859, %v2222
        %v2351 = vmul.f32 %v1359, %v2223
        %v2352 = vmul.f32 %v1860, %v2224
        %v2353 = vmul.f32 %v1365, %v2225
        %v2354 = vmul.f32 %v1861, %v2226
        %v2355 = vmul.f32 %v1369, %v2227
        %v2356 = vmul.f32 %v1862, %v2228
        %v2357 = vmul.f32 %v1375, %v2229
        %v2358 = vmul.f32 %v1863, %v2230
        %v2359 = vmul.f32 %v1379, %v2231
        %v2360 = vmul.f32 %v1864, %v2232
        %v2361 = vmul.f32 %v1385, %v2233
        %v2362 = vmul.f32 %v1865, %v2234
        %v2363 = vmul.f32 %v1389, %v2235
        %v2364 = vmul.f32 %v1866, %v2236
        %v2365 = vmul.f32 %v1395, %v2237
        %v2366 = vmul.f32 %v1867, %v2238
        %v2367 = vmul.f32 %v1399, %v2239
        %v2368 = vmul.f32 %v1868, %v2240
        %v2369 = vmul.f32 %v1405, %v2241
        %v2370 = vmul.f32 %v1869, %v2242
        %v2371 = vmul.f32 %v1409, %v2243
        %v2372 = vmul.f32 %v1870, %v2244
        %v2373 = vmul.f32 %v1415, %v2245
        %v2374 = vmul.f32 %v1871, %v2246
        %v2375 = vmul.f32 %v1419, %v2247
        %v2376 = vmul.f32 %v1872, %v2248
        %v2377 = vmul.f32 %v1425, %v2249
        %v2378 = vmul.f32 %v1873, %v2250
        %v2379 = vmul.f32 %v1429, %v2251
        %v2380 = vmul.f32 %v1874, %v2252
        %v2381 = vmul.f32 %v1435, %v2253
        %v2382 = vmul.f32 %v1875, %v2254
        %v2383 = vmul.f32 %v1439, %v2255
        %v2384 = vmul.f32 %v1876, %v2256
        %v2385 = vmul.f32 %v1445, %v2257
        %v2386 = vmul.f32 %v1877, %v2258
        %v2387 = vmul.f32 %v1449, %v2259
        %v2388 = vmul.f32 %v1878, %v2260
        %v2389 = vmul.f32 %v1455, %v2261
        %v2390 = vmul.f32 %v1879, %v2262
        %v2391 = vmul.f32 %v1459, %v2263
        %v2392 = vadd.f32 %v2008, %v2264
        %v2393 = vadd.f32 %v2009, %v2265
        %v2394 = vadd.f32 %v2010, %v2266
        %v2395 = vadd.f32 %v2011, %v2267
        %v2396 = vadd.f32 %v2012, %v2268
        %v2397 = vadd.f32 %v2013, %v2269
        %v2398 = vadd.f32 %v2014, %v2270
        %v2399 = vadd.f32 %v2015, %v2271
        %v2400 = vadd.f32 %v2016, %v2272
        %v2401 = vadd.f32 %v2017, %v2273
        %v2402 = vadd.f32 %v2018, %v2274
        %v2403 = vadd.f32 %v2019, %v2275
        %v2404 = vadd.f32 %v2020, %v2276
        %v2405 = vadd.f32 %v2021, %v2277
        %v2406 = vadd.f32 %v2022, %v2278
        %v2407 = vadd.f32 %v2023, %v2279
        %v2408 = vadd.f32 %v2024, %v2280
        %v2409 = vadd.f32 %v2025, %v2281
        %v2410 = vadd.f32 %v2026, %v2282
        %v2411 = vadd.f32 %v2027, %v2283
        %v2412 = vadd.f32 %v2028, %v2284
        %v2413 = vadd.f32 %v2029, %v2285
        %v2414 = vadd.f32 %v2030, %v2286
        %v2415 = vadd.f32 %v2031, %v2287
        %v2416 = vadd.f32 %v2032, %v2288
        %v2417 = vadd.f32 %v2033, %v2289
        %v2418 = vadd.f32 %v2034, %v2290
        %v2419 = vadd.f32 %v2035, %v2291
        %v2420 = vadd.f32 %v2036, %v2292
        %v2421 = vadd.f32 %v2037, %v2293
        %v2422 = vadd.f32 %v2038, %v2294
        %v2423 = vadd.f32 %v2039, %v2295
        %v2424 = vadd.f32 %v2040, %v2296
        %v2425 = vadd.f32 %v2041, %v2297
        %v2426 = vadd.f32 %v2042, %v2298
        %v2427 = vadd.f32 %v2043, %v2299
        %v2428 = vadd.f32 %v2044, %v2300
        %v2429 = vadd.f32 %v2045, %v2301
        %v2430 = vadd.f32 %v2046, %v2302
        %v2431 = vadd.f32 %v2047, %v2303
        %v2432 = vadd.f32 %v2048, %v2304
        %v2433 = vadd.f32 %v2049, %v2305
        %v2434 = vadd.f32 %v2050, %v2306
        %v2435 = vadd.f32 %v2051, %v2307
        %v2436 = vadd.f32 %v2052, %v2308
        %v2437 = vadd.f32 %v2053, %v2309
        %v2438 = vadd.f32 %v2054, %v2310
        %v2439 = vadd.f32 %v2055, %v2311
        %v2440 = vadd.f32 %v2056, %v2312
        %v2441 = vadd.f32 %v2057, %v2313
        %v2442 = vadd.f32 %v2058, %v2314
        %v2443 = vadd.f32 %v2059, %v2315
        %v2444 = vadd.f32 %v2060, %v2316
        %v2445 = vadd.f32 %v2061, %v2317
        %v2446 = vadd.f32 %v2062, %v2318
        %v2447 = vadd.f32 %v2063, %v2319
        %v2448 = vadd.f32 %v2064, %v2320
        %v2449 = vadd.f32 %v2065, %v2321
        %v2450 = vadd.f32 %v2066, %v2322
        %v2451 = vadd.f32 %v2067, %v2323
        %v2452 = vadd.f32 %v2068, %v2324
        %v2453 = vadd.f32 %v2069, %v2325
        %v2454 = vadd.f32 %v2070, %v2326
        %v2455 = vadd.f32 %v2071, %v2327
        %v2456 = vadd.f32 %v2072, %v2328
        %v2457 = vadd.f32 %v2073, %v2329
        %v2458 = vadd.f32 %v2074, %v2330
        %v2459 = vadd.f32 %v2075, %v2331
        %v2460 = vadd.f32 %v2076, %v2332
        %v2461 = vadd.f32 %v2077, %v2333
        %v2462 = vadd.f32 %v2078, %v2334
        %v2463 = vadd.f32 %v2079, %v2335
        %v2464 = vadd.f32 %v2080, %v2336
        %v2465 = vadd.f32 %v2081, %v2337
        %v2466 = vadd.f32 %v2082, %v2338
        %v2467 = vadd.f32 %v2083, %v2339
        %v2468 = vadd.f32 %v2084, %v2340
        %v2469 = vadd.f32 %v2085, %v2341
        %v2470 = vadd.f32 %v2086, %v2342
        %v2471 = vadd.f32 %v2087, %v2343
        %v2472 = vadd.f32 %v2088, %v2344
        %v2473 = vadd.f32 %v2089, %v2345
        %v2474 = vadd.f32 %v2090, %v2346
        %v2475 = vadd.f32 %v2091, %v2347
        %v2476 = vadd.f32 %v2092, %v2348
        %v2477 = vadd.f32 %v2093, %v2349
        %v2478 = vadd.f32 %v2094, %v2350
        %v2479 = vadd.f32 %v2095, %v2351
        %v2480 = vadd.f32 %v2096, %v2352
        %v2481 = vadd.f32 %v2097, %v2353
        %v2482 = vadd.f32 %v2098, %v2354
        %v2483 = vadd.f32 %v2099, %v2355
        %v2484 = vadd.f32 %v2100, %v2356
        %v2485 = vadd.f32 %v2101, %v2357
        %v2486 = vadd.f32 %v2102, %v2358
        %v2487 = vadd.f32 %v2103, %v2359
        %v2488 = vadd.f32 %v2104, %v2360
        %v2489 = vadd.f32 %v2105, %v2361
        %v2490 = vadd.f32 %v2106, %v2362
        %v2491 = vadd.f32 %v2107, %v2363
        %v2492 = vadd.f32 %v2108, %v2364
        %v2493 = vadd.f32 %v2109, %v2365
        %v2494 = vadd.f32 %v2110, %v2366
        %v2495 = vadd.f32 %v2111, %v2367
        %v2496 = vadd.f32 %v2112, %v2368
        %v2497 = vadd.f32 %v2113, %v2369
        %v2498 = vadd.f32 %v2114, %v2370
        %v2499 = vadd.f32 %v2115, %v2371
        %v2500 = vadd.f32 %v2116, %v2372
        %v2501 = vadd.f32 %v2117, %v2373
        %v2502 = vadd.f32 %v2118, %v2374
        %v2503 = vadd.f32 %v2119, %v2375
        %v2504 = vadd.f32 %v2120, %v2376
        %v2505 = vadd.f32 %v2121, %v2377
        %v2506 = vadd.f32 %v2122, %v2378
        %v2507 = vadd.f32 %v2123, %v2379
        %v2508 = vadd.f32 %v2124, %v2380
        %v2509 = vadd.f32 %v2125, %v2381
        %v2510 = vadd.f32 %v2126, %v2382
        %v2511 = vadd.f32 %v2127, %v2383
        %v2512 = vadd.f32 %v2128, %v2384
        %v2513 = vadd.f32 %v2129, %v2385
        %v2514 = vadd.f32 %v2130, %v2386
        %v2515 = vadd.f32 %v2131, %v2387
        %v2516 = vadd.f32 %v2132, %v2388
        %v2517 = vadd.f32 %v2133, %v2389
        %v2518 = vadd.f32 %v2134, %v2390
        %v2519 = vadd.f32 %v2135, %v2391
        %v2520 = vpack.c.bf16 %v2394, %v2392
        %v2521 = vpack.c.bf16 %v2395, %v2393
        %v2522 = vpack.c.bf16 %v2398, %v2396
        %v2523 = vpack.c.bf16 %v2399, %v2397
        %v2524 = vpack.c.bf16 %v2402, %v2400
        %v2525 = vpack.c.bf16 %v2403, %v2401
        %v2526 = vpack.c.bf16 %v2406, %v2404
        %v2527 = vpack.c.bf16 %v2407, %v2405
        %v2528 = vpack.c.bf16 %v2410, %v2408
        %v2529 = vpack.c.bf16 %v2411, %v2409
        %v2530 = vpack.c.bf16 %v2414, %v2412
        %v2531 = vpack.c.bf16 %v2415, %v2413
        %v2532 = vpack.c.bf16 %v2418, %v2416
        %v2533 = vpack.c.bf16 %v2419, %v2417
        %v2534 = vpack.c.bf16 %v2422, %v2420
        %v2535 = vpack.c.bf16 %v2423, %v2421
        %v2536 = vpack.c.bf16 %v2426, %v2424
        %v2537 = vpack.c.bf16 %v2427, %v2425
        %v2538 = vpack.c.bf16 %v2430, %v2428
        %v2539 = vpack.c.bf16 %v2431, %v2429
        %v2540 = vpack.c.bf16 %v2434, %v2432
        %v2541 = vpack.c.bf16 %v2435, %v2433
        %v2542 = vpack.c.bf16 %v2438, %v2436
        %v2543 = vpack.c.bf16 %v2439, %v2437
        %v2544 = vpack.c.bf16 %v2442, %v2440
        %v2545 = vpack.c.bf16 %v2443, %v2441
        %v2546 = vpack.c.bf16 %v2446, %v2444
        %v2547 = vpack.c.bf16 %v2447, %v2445
        %v2548 = vpack.c.bf16 %v2450, %v2448
        %v2549 = vpack.c.bf16 %v2451, %v2449
        %v2550 = vpack.c.bf16 %v2454, %v2452
        %v2551 = vpack.c.bf16 %v2455, %v2453
        %v2552 = vpack.c.bf16 %v2458, %v2456
        %v2553 = vpack.c.bf16 %v2459, %v2457
        %v2554 = vpack.c.bf16 %v2462, %v2460
        %v2555 = vpack.c.bf16 %v2463, %v2461
        %v2556 = vpack.c.bf16 %v2466, %v2464
        %v2557 = vpack.c.bf16 %v2467, %v2465
        %v2558 = vpack.c.bf16 %v2470, %v2468
        %v2559 = vpack.c.bf16 %v2471, %v2469
        %v2560 = vpack.c.bf16 %v2474, %v2472
        %v2561 = vpack.c.bf16 %v2475, %v2473
        %v2562 = vpack.c.bf16 %v2478, %v2476
        %v2563 = vpack.c.bf16 %v2479, %v2477
        %v2564 = vpack.c.bf16 %v2482, %v2480
        %v2565 = vpack.c.bf16 %v2483, %v2481
        %v2566 = vpack.c.bf16 %v2486, %v2484
        %v2567 = vpack.c.bf16 %v2487, %v2485
        %v2568 = vpack.c.bf16 %v2490, %v2488
        %v2569 = vpack.c.bf16 %v2491, %v2489
        %v2570 = vpack.c.bf16 %v2494, %v2492
        %v2571 = vpack.c.bf16 %v2495, %v2493
        %v2572 = vpack.c.bf16 %v2498, %v2496
        %v2573 = vpack.c.bf16 %v2499, %v2497
        %v2574 = vpack.c.bf16 %v2502, %v2500
        %v2575 = vpack.c.bf16 %v2503, %v2501
        %v2576 = vpack.c.bf16 %v2506, %v2504
        %v2577 = vpack.c.bf16 %v2507, %v2505
        %v2578 = vpack.c.bf16 %v2510, %v2508
        %v2579 = vpack.c.bf16 %v2511, %v2509
        %v2580 = vpack.c.bf16 %v2514, %v2512
        %v2581 = vpack.c.bf16 %v2515, %v2513
        %v2582 = vpack.c.bf16 %v2518, %v2516
        %v2583 = vpack.c.bf16 %v2519, %v2517
        %v2648 = vunpack.c.l.b16 %v2520
        %v2649 = vunpack.c.l.b16 %v2521
        %v2650 = vunpack.c.h.b16 %v2520
        %v2651 = vunpack.c.h.b16 %v2521
        %v2652 = vunpack.c.l.b16 %v2522
        %v2653 = vunpack.c.l.b16 %v2523
        %v2654 = vunpack.c.h.b16 %v2522
        %v2655 = vunpack.c.h.b16 %v2523
        %v2656 = vunpack.c.l.b16 %v2524
        %v2657 = vunpack.c.l.b16 %v2525
        %v2658 = vunpack.c.h.b16 %v2524
        %v2659 = vunpack.c.h.b16 %v2525
        %v2660 = vunpack.c.l.b16 %v2526
        %v2661 = vunpack.c.l.b16 %v2527
        %v2662 = vunpack.c.h.b16 %v2526
        %v2663 = vunpack.c.h.b16 %v2527
        %v2664 = vunpack.c.l.b16 %v2528
        %v2665 = vunpack.c.l.b16 %v2529
        %v2666 = vunpack.c.h.b16 %v2528
        %v2667 = vunpack.c.h.b16 %v2529
        %v2668 = vunpack.c.l.b16 %v2530
        %v2669 = vunpack.c.l.b16 %v2531
        %v2670 = vunpack.c.h.b16 %v2530
        %v2671 = vunpack.c.h.b16 %v2531
        %v2672 = vunpack.c.l.b16 %v2532
        %v2673 = vunpack.c.l.b16 %v2533
        %v2674 = vunpack.c.h.b16 %v2532
        %v2675 = vunpack.c.h.b16 %v2533
        %v2676 = vunpack.c.l.b16 %v2534
        %v2677 = vunpack.c.l.b16 %v2535
        %v2678 = vunpack.c.h.b16 %v2534
        %v2679 = vunpack.c.h.b16 %v2535
        %v2680 = vunpack.c.l.b16 %v2536
        %v2681 = vunpack.c.l.b16 %v2537
        %v2682 = vunpack.c.h.b16 %v2536
        %v2683 = vunpack.c.h.b16 %v2537
        %v2684 = vunpack.c.l.b16 %v2538
        %v2685 = vunpack.c.l.b16 %v2539
        %v2686 = vunpack.c.h.b16 %v2538
        %v2687 = vunpack.c.h.b16 %v2539
        %v2688 = vunpack.c.l.b16 %v2540
        %v2689 = vunpack.c.l.b16 %v2541
        %v2690 = vunpack.c.h.b16 %v2540
        %v2691 = vunpack.c.h.b16 %v2541
        %v2692 = vunpack.c.l.b16 %v2542
        %v2693 = vunpack.c.l.b16 %v2543
        %v2694 = vunpack.c.h.b16 %v2542
        %v2695 = vunpack.c.h.b16 %v2543
        %v2696 = vunpack.c.l.b16 %v2544
        %v2697 = vunpack.c.l.b16 %v2545
        %v2698 = vunpack.c.h.b16 %v2544
        %v2699 = vunpack.c.h.b16 %v2545
        %v2700 = vunpack.c.l.b16 %v2546
        %v2701 = vunpack.c.l.b16 %v2547
        %v2702 = vunpack.c.h.b16 %v2546
        %v2703 = vunpack.c.h.b16 %v2547
        %v2704 = vunpack.c.l.b16 %v2548
        %v2705 = vunpack.c.l.b16 %v2549
        %v2706 = vunpack.c.h.b16 %v2548
        %v2707 = vunpack.c.h.b16 %v2549
        %v2708 = vunpack.c.l.b16 %v2550
        %v2709 = vunpack.c.l.b16 %v2551
        %v2710 = vunpack.c.h.b16 %v2550
        %v2711 = vunpack.c.h.b16 %v2551
        %v2712 = vunpack.c.l.b16 %v2552
        %v2713 = vunpack.c.l.b16 %v2553
        %v2714 = vunpack.c.h.b16 %v2552
        %v2715 = vunpack.c.h.b16 %v2553
        %v2716 = vunpack.c.l.b16 %v2554
        %v2717 = vunpack.c.l.b16 %v2555
        %v2718 = vunpack.c.h.b16 %v2554
        %v2719 = vunpack.c.h.b16 %v2555
        %v2720 = vunpack.c.l.b16 %v2556
        %v2721 = vunpack.c.l.b16 %v2557
        %v2722 = vunpack.c.h.b16 %v2556
        %v2723 = vunpack.c.h.b16 %v2557
        %v2724 = vunpack.c.l.b16 %v2558
        %v2725 = vunpack.c.l.b16 %v2559
        %v2726 = vunpack.c.h.b16 %v2558
        %v2727 = vunpack.c.h.b16 %v2559
        %v2728 = vunpack.c.l.b16 %v2560
        %v2729 = vunpack.c.l.b16 %v2561
        %v2730 = vunpack.c.h.b16 %v2560
        %v2731 = vunpack.c.h.b16 %v2561
        %v2732 = vunpack.c.l.b16 %v2562
        %v2733 = vunpack.c.l.b16 %v2563
        %v2734 = vunpack.c.h.b16 %v2562
        %v2735 = vunpack.c.h.b16 %v2563
        %v2736 = vunpack.c.l.b16 %v2564
        %v2737 = vunpack.c.l.b16 %v2565
        %v2738 = vunpack.c.h.b16 %v2564
        %v2739 = vunpack.c.h.b16 %v2565
        %v2740 = vunpack.c.l.b16 %v2566
        %v2741 = vunpack.c.l.b16 %v2567
        %v2742 = vunpack.c.h.b16 %v2566
        %v2743 = vunpack.c.h.b16 %v2567
        %v2744 = vunpack.c.l.b16 %v2568
        %v2745 = vunpack.c.l.b16 %v2569
        %v2746 = vunpack.c.h.b16 %v2568
        %v2747 = vunpack.c.h.b16 %v2569
        %v2748 = vunpack.c.l.b16 %v2570
        %v2749 = vunpack.c.l.b16 %v2571
        %v2750 = vunpack.c.h.b16 %v2570
        %v2751 = vunpack.c.h.b16 %v2571
        %v2752 = vunpack.c.l.b16 %v2572
        %v2753 = vunpack.c.l.b16 %v2573
        %v2754 = vunpack.c.h.b16 %v2572
        %v2755 = vunpack.c.h.b16 %v2573
        %v2756 = vunpack.c.l.b16 %v2574
        %v2757 = vunpack.c.l.b16 %v2575
        %v2758 = vunpack.c.h.b16 %v2574
        %v2759 = vunpack.c.h.b16 %v2575
        %v2760 = vunpack.c.l.b16 %v2576
        %v2761 = vunpack.c.l.b16 %v2577
        %v2762 = vunpack.c.h.b16 %v2576
        %v2763 = vunpack.c.h.b16 %v2577
        %v2764 = vunpack.c.l.b16 %v2578
        %v2765 = vunpack.c.l.b16 %v2579
        %v2766 = vunpack.c.h.b16 %v2578
        %v2767 = vunpack.c.h.b16 %v2579
        %v2768 = vunpack.c.l.b16 %v2580
        %v2769 = vunpack.c.l.b16 %v2581
        %v2770 = vunpack.c.h.b16 %v2580
        %v2771 = vunpack.c.h.b16 %v2581
        %v2772 = vunpack.c.l.b16 %v2582
        %v2773 = vunpack.c.l.b16 %v2583
        %v2774 = vunpack.c.h.b16 %v2582
        %v2775 = vunpack.c.h.b16 %v2583
        %v2776 = vpack.c.b16 %v2649, %v2648
        %v2777 = vpack.c.b16 %v2651, %v2650
        %v2778 = vpack.c.b16 %v2653, %v2652
        %v2779 = vpack.c.b16 %v2655, %v2654
        %v2780 = vpack.c.b16 %v2657, %v2656
        %v2781 = vpack.c.b16 %v2659, %v2658
        %v2782 = vpack.c.b16 %v2661, %v2660
        %v2783 = vpack.c.b16 %v2663, %v2662
        %v2784 = vpack.c.b16 %v2665, %v2664
        %v2785 = vpack.c.b16 %v2667, %v2666
        %v2786 = vpack.c.b16 %v2669, %v2668
        %v2787 = vpack.c.b16 %v2671, %v2670
        %v2788 = vpack.c.b16 %v2673, %v2672
        %v2789 = vpack.c.b16 %v2675, %v2674
        %v2790 = vpack.c.b16 %v2677, %v2676
        %v2791 = vpack.c.b16 %v2679, %v2678
        %v2792 = vpack.c.b16 %v2681, %v2680
        %v2793 = vpack.c.b16 %v2683, %v2682
        %v2794 = vpack.c.b16 %v2685, %v2684
        %v2795 = vpack.c.b16 %v2687, %v2686
        %v2796 = vpack.c.b16 %v2689, %v2688
        %v2797 = vpack.c.b16 %v2691, %v2690
        %v2798 = vpack.c.b16 %v2693, %v2692
        %v2799 = vpack.c.b16 %v2695, %v2694
        %v2800 = vpack.c.b16 %v2697, %v2696
        %v2801 = vpack.c.b16 %v2699, %v2698
        %v2802 = vpack.c.b16 %v2701, %v2700
        %v2803 = vpack.c.b16 %v2703, %v2702
        %v2804 = vpack.c.b16 %v2705, %v2704
        %v2805 = vpack.c.b16 %v2707, %v2706
        %v2806 = vpack.c.b16 %v2709, %v2708
        %v2807 = vpack.c.b16 %v2711, %v2710
        %v2808 = vpack.c.b16 %v2713, %v2712
        %v2809 = vpack.c.b16 %v2715, %v2714
        %v2810 = vpack.c.b16 %v2717, %v2716
        %v2811 = vpack.c.b16 %v2719, %v2718
        %v2812 = vpack.c.b16 %v2721, %v2720
        %v2813 = vpack.c.b16 %v2723, %v2722
        %v2814 = vpack.c.b16 %v2725, %v2724
        %v2815 = vpack.c.b16 %v2727, %v2726
        %v2816 = vpack.c.b16 %v2729, %v2728
        %v2817 = vpack.c.b16 %v2731, %v2730
        %v2818 = vpack.c.b16 %v2733, %v2732
        %v2819 = vpack.c.b16 %v2735, %v2734
        %v2820 = vpack.c.b16 %v2737, %v2736
        %v2821 = vpack.c.b16 %v2739, %v2738
        %v2822 = vpack.c.b16 %v2741, %v2740
        %v2823 = vpack.c.b16 %v2743, %v2742
        %v2824 = vpack.c.b16 %v2745, %v2744
        %v2825 = vpack.c.b16 %v2747, %v2746
        %v2826 = vpack.c.b16 %v2749, %v2748
        %v2827 = vpack.c.b16 %v2751, %v2750
        %v2828 = vpack.c.b16 %v2753, %v2752
        %v2829 = vpack.c.b16 %v2755, %v2754
        %v2830 = vpack.c.b16 %v2757, %v2756
        %v2831 = vpack.c.b16 %v2759, %v2758
        %v2832 = vpack.c.b16 %v2761, %v2760
        %v2833 = vpack.c.b16 %v2763, %v2762
        %v2834 = vpack.c.b16 %v2765, %v2764
        %v2835 = vpack.c.b16 %v2767, %v2766
        %v2836 = vpack.c.b16 %v2769, %v2768
        %v2837 = vpack.c.b16 %v2771, %v2770
        %v2838 = vpack.c.b16 %v2773, %v2772
        %v2839 = vpack.c.b16 %v2775, %v2774
        %2904 = vst [vmem:[%s329] sm:$0xff] %v2776
        %2905 = vst [vmem:[%s329 + $0x8] sm:$0xff] %v2777
        %2906 = vst [vmem:[%s329 + $0x10] sm:$0xff] %v2778
        %2907 = vst [vmem:[%s329 + $0x18] sm:$0xff] %v2779
        %2908 = vst [vmem:[%s329 + $0x20] sm:$0xff] %v2780
        %2909 = vst [vmem:[%s329 + $0x28] sm:$0xff] %v2781
        %2910 = vst [vmem:[%s329 + $0x30] sm:$0xff] %v2782
        %2911 = vst [vmem:[%s329 + $0x38] sm:$0xff] %v2783
        %2912 = vst [vmem:[%s329 + $0x40] sm:$0xff] %v2784
        %2913 = vst [vmem:[%s329 + $0x48] sm:$0xff] %v2785
        %2914 = vst [vmem:[%s329 + $0x50] sm:$0xff] %v2786
        %2915 = vst [vmem:[%s329 + $0x58] sm:$0xff] %v2787
        %2916 = vst [vmem:[%s329 + $0x60] sm:$0xff] %v2788
        %2917 = vst [vmem:[%s329 + $0x68] sm:$0xff] %v2789
        %2918 = vst [vmem:[%s329 + $0x70] sm:$0xff] %v2790
        %2919 = vst [vmem:[%s329 + $0x78] sm:$0xff] %v2791
        %2920 = vst [vmem:[%s329 + $0x80] sm:$0xff] %v2792
        %2921 = vst [vmem:[%s329 + $0x88] sm:$0xff] %v2793
        %2922 = vst [vmem:[%s329 + $0x90] sm:$0xff] %v2794
        %2923 = vst [vmem:[%s329 + $0x98] sm:$0xff] %v2795
        %2924 = vst [vmem:[%s329 + $0xa0] sm:$0xff] %v2796
        %2925 = vst [vmem:[%s329 + $0xa8] sm:$0xff] %v2797
        %2926 = vst [vmem:[%s329 + $0xb0] sm:$0xff] %v2798
        %2927 = vst [vmem:[%s329 + $0xb8] sm:$0xff] %v2799
        %2928 = vst [vmem:[%s329 + $0xc0] sm:$0xff] %v2800
        %2929 = vst [vmem:[%s329 + $0xc8] sm:$0xff] %v2801
        %2930 = vst [vmem:[%s329 + $0xd0] sm:$0xff] %v2802
        %2931 = vst [vmem:[%s329 + $0xd8] sm:$0xff] %v2803
        %2932 = vst [vmem:[%s329 + $0xe0] sm:$0xff] %v2804
        %2933 = vst [vmem:[%s329 + $0xe8] sm:$0xff] %v2805
        %2934 = vst [vmem:[%s329 + $0xf0] sm:$0xff] %v2806
        %2935 = vst [vmem:[%s329 + $0xf8] sm:$0xff] %v2807
        %2936 = vst [vmem:[%s329 + $0x100] sm:$0xff] %v2808
        %2937 = vst [vmem:[%s329 + $0x108] sm:$0xff] %v2809
        %2938 = vst [vmem:[%s329 + $0x110] sm:$0xff] %v2810
        %2939 = vst [vmem:[%s329 + $0x118] sm:$0xff] %v2811
        %2940 = vst [vmem:[%s329 + $0x120] sm:$0xff] %v2812
        %2941 = vst [vmem:[%s329 + $0x128] sm:$0xff] %v2813
        %2942 = vst [vmem:[%s329 + $0x130] sm:$0xff] %v2814
        %2943 = vst [vmem:[%s329 + $0x138] sm:$0xff] %v2815
        %2944 = vst [vmem:[%s329 + $0x140] sm:$0xff] %v2816
        %2945 = vst [vmem:[%s329 + $0x148] sm:$0xff] %v2817
        %2946 = vst [vmem:[%s329 + $0x150] sm:$0xff] %v2818
        %2947 = vst [vmem:[%s329 + $0x158] sm:$0xff] %v2819
        %2948 = vst [vmem:[%s329 + $0x160] sm:$0xff] %v2820
        %2949 = vst [vmem:[%s329 + $0x168] sm:$0xff] %v2821
        %2950 = vst [vmem:[%s329 + $0x170] sm:$0xff] %v2822
        %2951 = vst [vmem:[%s329 + $0x178] sm:$0xff] %v2823
        %2952 = vst [vmem:[%s329 + $0x180] sm:$0xff] %v2824
        %2953 = vst [vmem:[%s329 + $0x188] sm:$0xff] %v2825
        %2954 = vst [vmem:[%s329 + $0x190] sm:$0xff] %v2826
        %2955 = vst [vmem:[%s329 + $0x198] sm:$0xff] %v2827
        %2956 = vst [vmem:[%s329 + $0x1a0] sm:$0xff] %v2828
        %2957 = vst [vmem:[%s329 + $0x1a8] sm:$0xff] %v2829
        %2958 = vst [vmem:[%s329 + $0x1b0] sm:$0xff] %v2830
        %2959 = vst [vmem:[%s329 + $0x1b8] sm:$0xff] %v2831
        %2960 = vst [vmem:[%s329 + $0x1c0] sm:$0xff] %v2832
        %2961 = vst [vmem:[%s329 + $0x1c8] sm:$0xff] %v2833
        %2962 = vst [vmem:[%s329 + $0x1d0] sm:$0xff] %v2834
        %2963 = vst [vmem:[%s329 + $0x1d8] sm:$0xff] %v2835
        %2964 = vst [vmem:[%s329 + $0x1e0] sm:$0xff] %v2836
        %2965 = vst [vmem:[%s329 + $0x1e8] sm:$0xff] %v2837
        %2966 = vst [vmem:[%s329 + $0x1f0] sm:$0xff] %v2838
        %2967 = vst [vmem:[%s329 + $0x1f8] sm:$0xff] %v2839
        %v2968 = vpack.c.bf16 %v1502, %v1498
        %v2969 = vpack.c.bf16 %v1504, %v1500
        %v2970 = vpack.c.bf16 %v1512, %v1508
        %v2971 = vpack.c.bf16 %v1514, %v1510
        %v2972 = vpack.c.bf16 %v1522, %v1518
        %v2973 = vpack.c.bf16 %v1524, %v1520
        %v2974 = vpack.c.bf16 %v1532, %v1528
        %v2975 = vpack.c.bf16 %v1534, %v1530
        %v2976 = vpack.c.bf16 %v1542, %v1538
        %v2977 = vpack.c.bf16 %v1544, %v1540
        %v2978 = vpack.c.bf16 %v1552, %v1548
        %v2979 = vpack.c.bf16 %v1554, %v1550
        %v2980 = vpack.c.bf16 %v1562, %v1558
        %v2981 = vpack.c.bf16 %v1564, %v1560
        %v2982 = vpack.c.bf16 %v1572, %v1568
        %v2983 = vpack.c.bf16 %v1574, %v1570
        %v2984 = vpack.c.bf16 %v1582, %v1578
        %v2985 = vpack.c.bf16 %v1584, %v1580
        %v2986 = vpack.c.bf16 %v1592, %v1588
        %v2987 = vpack.c.bf16 %v1594, %v1590
        %v2988 = vpack.c.bf16 %v1602, %v1598
        %v2989 = vpack.c.bf16 %v1604, %v1600
        %v2990 = vpack.c.bf16 %v1612, %v1608
        %v2991 = vpack.c.bf16 %v1614, %v1610
        %v2992 = vpack.c.bf16 %v1622, %v1618
        %v2993 = vpack.c.bf16 %v1624, %v1620
        %v2994 = vpack.c.bf16 %v1632, %v1628
        %v2995 = vpack.c.bf16 %v1634, %v1630
        %v2996 = vpack.c.bf16 %v1642, %v1638
        %v2997 = vpack.c.bf16 %v1644, %v1640
        %v2998 = vpack.c.bf16 %v1652, %v1648
        %v2999 = vpack.c.bf16 %v1654, %v1650
        %v3000 = vpack.c.bf16 %v1662, %v1658
        %v3001 = vpack.c.bf16 %v1664, %v1660
        %v3002 = vpack.c.bf16 %v1672, %v1668
        %v3003 = vpack.c.bf16 %v1674, %v1670
        %v3004 = vpack.c.bf16 %v1682, %v1678
        %v3005 = vpack.c.bf16 %v1684, %v1680
        %v3006 = vpack.c.bf16 %v1692, %v1688
        %v3007 = vpack.c.bf16 %v1694, %v1690
        %v3008 = vpack.c.bf16 %v1702, %v1698
        %v3009 = vpack.c.bf16 %v1704, %v1700
        %v3010 = vpack.c.bf16 %v1712, %v1708
        %v3011 = vpack.c.bf16 %v1714, %v1710
        %v3012 = vpack.c.bf16 %v1722, %v1718
        %v3013 = vpack.c.bf16 %v1724, %v1720
        %v3014 = vpack.c.bf16 %v1732, %v1728
        %v3015 = vpack.c.bf16 %v1734, %v1730
        %v3016 = vpack.c.bf16 %v1742, %v1738
        %v3017 = vpack.c.bf16 %v1744, %v1740
        %v3018 = vpack.c.bf16 %v1752, %v1748
        %v3019 = vpack.c.bf16 %v1754, %v1750
        %v3020 = vpack.c.bf16 %v1762, %v1758
        %v3021 = vpack.c.bf16 %v1764, %v1760
        %v3022 = vpack.c.bf16 %v1772, %v1768
        %v3023 = vpack.c.bf16 %v1774, %v1770
        %v3024 = vpack.c.bf16 %v1782, %v1778
        %v3025 = vpack.c.bf16 %v1784, %v1780
        %v3026 = vpack.c.bf16 %v1792, %v1788
        %v3027 = vpack.c.bf16 %v1794, %v1790
        %v3028 = vpack.c.bf16 %v1802, %v1798
        %v3029 = vpack.c.bf16 %v1804, %v1800
        %v3030 = vpack.c.bf16 %v1812, %v1808
        %v3031 = vpack.c.bf16 %v1814, %v1810
        %v3096 = vunpack.c.l.b16 %v2968
        %v3097 = vunpack.c.l.b16 %v2969
        %v3098 = vunpack.c.h.b16 %v2968
        %v3099 = vunpack.c.h.b16 %v2969
        %v3100 = vunpack.c.l.b16 %v2970
        %v3101 = vunpack.c.l.b16 %v2971
        %v3102 = vunpack.c.h.b16 %v2970
        %v3103 = vunpack.c.h.b16 %v2971
        %v3104 = vunpack.c.l.b16 %v2972
        %v3105 = vunpack.c.l.b16 %v2973
        %v3106 = vunpack.c.h.b16 %v2972
        %v3107 = vunpack.c.h.b16 %v2973
        %v3108 = vunpack.c.l.b16 %v2974
        %v3109 = vunpack.c.l.b16 %v2975
        %v3110 = vunpack.c.h.b16 %v2974
        %v3111 = vunpack.c.h.b16 %v2975
        %v3112 = vunpack.c.l.b16 %v2976
        %v3113 = vunpack.c.l.b16 %v2977
        %v3114 = vunpack.c.h.b16 %v2976
        %v3115 = vunpack.c.h.b16 %v2977
        %v3116 = vunpack.c.l.b16 %v2978
        %v3117 = vunpack.c.l.b16 %v2979
        %v3118 = vunpack.c.h.b16 %v2978
        %v3119 = vunpack.c.h.b16 %v2979
        %v3120 = vunpack.c.l.b16 %v2980
        %v3121 = vunpack.c.l.b16 %v2981
        %v3122 = vunpack.c.h.b16 %v2980
        %v3123 = vunpack.c.h.b16 %v2981
        %v3124 = vunpack.c.l.b16 %v2982
        %v3125 = vunpack.c.l.b16 %v2983
        %v3126 = vunpack.c.h.b16 %v2982
        %v3127 = vunpack.c.h.b16 %v2983
        %v3128 = vunpack.c.l.b16 %v2984
        %v3129 = vunpack.c.l.b16 %v2985
        %v3130 = vunpack.c.h.b16 %v2984
        %v3131 = vunpack.c.h.b16 %v2985
        %v3132 = vunpack.c.l.b16 %v2986
        %v3133 = vunpack.c.l.b16 %v2987
        %v3134 = vunpack.c.h.b16 %v2986
        %v3135 = vunpack.c.h.b16 %v2987
        %v3136 = vunpack.c.l.b16 %v2988
        %v3137 = vunpack.c.l.b16 %v2989
        %v3138 = vunpack.c.h.b16 %v2988
        %v3139 = vunpack.c.h.b16 %v2989
        %v3140 = vunpack.c.l.b16 %v2990
        %v3141 = vunpack.c.l.b16 %v2991
        %v3142 = vunpack.c.h.b16 %v2990
        %v3143 = vunpack.c.h.b16 %v2991
        %v3144 = vunpack.c.l.b16 %v2992
        %v3145 = vunpack.c.l.b16 %v2993
        %v3146 = vunpack.c.h.b16 %v2992
        %v3147 = vunpack.c.h.b16 %v2993
        %v3148 = vunpack.c.l.b16 %v2994
        %v3149 = vunpack.c.l.b16 %v2995
        %v3150 = vunpack.c.h.b16 %v2994
        %v3151 = vunpack.c.h.b16 %v2995
        %v3152 = vunpack.c.l.b16 %v2996
        %v3153 = vunpack.c.l.b16 %v2997
        %v3154 = vunpack.c.h.b16 %v2996
        %v3155 = vunpack.c.h.b16 %v2997
        %v3156 = vunpack.c.l.b16 %v2998
        %v3157 = vunpack.c.l.b16 %v2999
        %v3158 = vunpack.c.h.b16 %v2998
        %v3159 = vunpack.c.h.b16 %v2999
        %v3160 = vunpack.c.l.b16 %v3000
        %v3161 = vunpack.c.l.b16 %v3001
        %v3162 = vunpack.c.h.b16 %v3000
        %v3163 = vunpack.c.h.b16 %v3001
        %v3164 = vunpack.c.l.b16 %v3002
        %v3165 = vunpack.c.l.b16 %v3003
        %v3166 = vunpack.c.h.b16 %v3002
        %v3167 = vunpack.c.h.b16 %v3003
        %v3168 = vunpack.c.l.b16 %v3004
        %v3169 = vunpack.c.l.b16 %v3005
        %v3170 = vunpack.c.h.b16 %v3004
        %v3171 = vunpack.c.h.b16 %v3005
        %v3172 = vunpack.c.l.b16 %v3006
        %v3173 = vunpack.c.l.b16 %v3007
        %v3174 = vunpack.c.h.b16 %v3006
        %v3175 = vunpack.c.h.b16 %v3007
        %v3176 = vunpack.c.l.b16 %v3008
        %v3177 = vunpack.c.l.b16 %v3009
        %v3178 = vunpack.c.h.b16 %v3008
        %v3179 = vunpack.c.h.b16 %v3009
        %v3180 = vunpack.c.l.b16 %v3010
        %v3181 = vunpack.c.l.b16 %v3011
        %v3182 = vunpack.c.h.b16 %v3010
        %v3183 = vunpack.c.h.b16 %v3011
        %v3184 = vunpack.c.l.b16 %v3012
        %v3185 = vunpack.c.l.b16 %v3013
        %v3186 = vunpack.c.h.b16 %v3012
        %v3187 = vunpack.c.h.b16 %v3013
        %v3188 = vunpack.c.l.b16 %v3014
        %v3189 = vunpack.c.l.b16 %v3015
        %v3190 = vunpack.c.h.b16 %v3014
        %v3191 = vunpack.c.h.b16 %v3015
        %v3192 = vunpack.c.l.b16 %v3016
        %v3193 = vunpack.c.l.b16 %v3017
        %v3194 = vunpack.c.h.b16 %v3016
        %v3195 = vunpack.c.h.b16 %v3017
        %v3196 = vunpack.c.l.b16 %v3018
        %v3197 = vunpack.c.l.b16 %v3019
        %v3198 = vunpack.c.h.b16 %v3018
        %v3199 = vunpack.c.h.b16 %v3019
        %v3200 = vunpack.c.l.b16 %v3020
        %v3201 = vunpack.c.l.b16 %v3021
        %v3202 = vunpack.c.h.b16 %v3020
        %v3203 = vunpack.c.h.b16 %v3021
        %v3204 = vunpack.c.l.b16 %v3022
        %v3205 = vunpack.c.l.b16 %v3023
        %v3206 = vunpack.c.h.b16 %v3022
        %v3207 = vunpack.c.h.b16 %v3023
        %v3208 = vunpack.c.l.b16 %v3024
        %v3209 = vunpack.c.l.b16 %v3025
        %v3210 = vunpack.c.h.b16 %v3024
        %v3211 = vunpack.c.h.b16 %v3025
        %v3212 = vunpack.c.l.b16 %v3026
        %v3213 = vunpack.c.l.b16 %v3027
        %v3214 = vunpack.c.h.b16 %v3026
        %v3215 = vunpack.c.h.b16 %v3027
        %v3216 = vunpack.c.l.b16 %v3028
        %v3217 = vunpack.c.l.b16 %v3029
        %v3218 = vunpack.c.h.b16 %v3028
        %v3219 = vunpack.c.h.b16 %v3029
        %v3220 = vunpack.c.l.b16 %v3030
        %v3221 = vunpack.c.l.b16 %v3031
        %v3222 = vunpack.c.h.b16 %v3030
        %v3223 = vunpack.c.h.b16 %v3031
        %v3224 = vpack.c.b16 %v3097, %v3096
        %v3225 = vpack.c.b16 %v3099, %v3098
        %v3226 = vpack.c.b16 %v3101, %v3100
        %v3227 = vpack.c.b16 %v3103, %v3102
        %v3228 = vpack.c.b16 %v3105, %v3104
        %v3229 = vpack.c.b16 %v3107, %v3106
        %v3230 = vpack.c.b16 %v3109, %v3108
        %v3231 = vpack.c.b16 %v3111, %v3110
        %v3232 = vpack.c.b16 %v3113, %v3112
        %v3233 = vpack.c.b16 %v3115, %v3114
        %v3234 = vpack.c.b16 %v3117, %v3116
        %v3235 = vpack.c.b16 %v3119, %v3118
        %v3236 = vpack.c.b16 %v3121, %v3120
        %v3237 = vpack.c.b16 %v3123, %v3122
        %v3238 = vpack.c.b16 %v3125, %v3124
        %v3239 = vpack.c.b16 %v3127, %v3126
        %v3240 = vpack.c.b16 %v3129, %v3128
        %v3241 = vpack.c.b16 %v3131, %v3130
        %v3242 = vpack.c.b16 %v3133, %v3132
        %v3243 = vpack.c.b16 %v3135, %v3134
        %v3244 = vpack.c.b16 %v3137, %v3136
        %v3245 = vpack.c.b16 %v3139, %v3138
        %v3246 = vpack.c.b16 %v3141, %v3140
        %v3247 = vpack.c.b16 %v3143, %v3142
        %v3248 = vpack.c.b16 %v3145, %v3144
        %v3249 = vpack.c.b16 %v3147, %v3146
        %v3250 = vpack.c.b16 %v3149, %v3148
        %v3251 = vpack.c.b16 %v3151, %v3150
        %v3252 = vpack.c.b16 %v3153, %v3152
        %v3253 = vpack.c.b16 %v3155, %v3154
        %v3254 = vpack.c.b16 %v3157, %v3156
        %v3255 = vpack.c.b16 %v3159, %v3158
        %v3256 = vpack.c.b16 %v3161, %v3160
        %v3257 = vpack.c.b16 %v3163, %v3162
        %v3258 = vpack.c.b16 %v3165, %v3164
        %v3259 = vpack.c.b16 %v3167, %v3166
        %v3260 = vpack.c.b16 %v3169, %v3168
        %v3261 = vpack.c.b16 %v3171, %v3170
        %v3262 = vpack.c.b16 %v3173, %v3172
        %v3263 = vpack.c.b16 %v3175, %v3174
        %v3264 = vpack.c.b16 %v3177, %v3176
        %v3265 = vpack.c.b16 %v3179, %v3178
        %v3266 = vpack.c.b16 %v3181, %v3180
        %v3267 = vpack.c.b16 %v3183, %v3182
        %v3268 = vpack.c.b16 %v3185, %v3184
        %v3269 = vpack.c.b16 %v3187, %v3186
        %v3270 = vpack.c.b16 %v3189, %v3188
        %v3271 = vpack.c.b16 %v3191, %v3190
        %v3272 = vpack.c.b16 %v3193, %v3192
        %v3273 = vpack.c.b16 %v3195, %v3194
        %v3274 = vpack.c.b16 %v3197, %v3196
        %v3275 = vpack.c.b16 %v3199, %v3198
        %v3276 = vpack.c.b16 %v3201, %v3200
        %v3277 = vpack.c.b16 %v3203, %v3202
        %v3278 = vpack.c.b16 %v3205, %v3204
        %v3279 = vpack.c.b16 %v3207, %v3206
        %v3280 = vpack.c.b16 %v3209, %v3208
        %v3281 = vpack.c.b16 %v3211, %v3210
        %v3282 = vpack.c.b16 %v3213, %v3212
        %v3283 = vpack.c.b16 %v3215, %v3214
        %v3284 = vpack.c.b16 %v3217, %v3216
        %v3285 = vpack.c.b16 %v3219, %v3218
        %v3286 = vpack.c.b16 %v3221, %v3220
        %v3287 = vpack.c.b16 %v3223, %v3222
        %3352 = vst [vmem:[%s336] sm:$0xff] %v3224
        %3353 = vst [vmem:[%s336 + $0x8] sm:$0xff] %v3225
        %3354 = vst [vmem:[%s336 + $0x10] sm:$0xff] %v3226
        %3355 = vst [vmem:[%s336 + $0x18] sm:$0xff] %v3227
        %3356 = vst [vmem:[%s336 + $0x20] sm:$0xff] %v3228
        %3357 = vst [vmem:[%s336 + $0x28] sm:$0xff] %v3229
        %3358 = vst [vmem:[%s336 + $0x30] sm:$0xff] %v3230
        %3359 = vst [vmem:[%s336 + $0x38] sm:$0xff] %v3231
        %3360 = vst [vmem:[%s336 + $0x40] sm:$0xff] %v3232
        %3361 = vst [vmem:[%s336 + $0x48] sm:$0xff] %v3233
        %3362 = vst [vmem:[%s336 + $0x50] sm:$0xff] %v3234
        %3363 = vst [vmem:[%s336 + $0x58] sm:$0xff] %v3235
        %3364 = vst [vmem:[%s336 + $0x60] sm:$0xff] %v3236
        %3365 = vst [vmem:[%s336 + $0x68] sm:$0xff] %v3237
        %3366 = vst [vmem:[%s336 + $0x70] sm:$0xff] %v3238
        %3367 = vst [vmem:[%s336 + $0x78] sm:$0xff] %v3239
        %3368 = vst [vmem:[%s336 + $0x80] sm:$0xff] %v3240
        %3369 = vst [vmem:[%s336 + $0x88] sm:$0xff] %v3241
        %3370 = vst [vmem:[%s336 + $0x90] sm:$0xff] %v3242
        %3371 = vst [vmem:[%s336 + $0x98] sm:$0xff] %v3243
        %3372 = vst [vmem:[%s336 + $0xa0] sm:$0xff] %v3244
        %3373 = vst [vmem:[%s336 + $0xa8] sm:$0xff] %v3245
        %3374 = vst [vmem:[%s336 + $0xb0] sm:$0xff] %v3246
        %3375 = vst [vmem:[%s336 + $0xb8] sm:$0xff] %v3247
        %3376 = vst [vmem:[%s336 + $0xc0] sm:$0xff] %v3248
        %3377 = vst [vmem:[%s336 + $0xc8] sm:$0xff] %v3249
        %3378 = vst [vmem:[%s336 + $0xd0] sm:$0xff] %v3250
        %3379 = vst [vmem:[%s336 + $0xd8] sm:$0xff] %v3251
        %3380 = vst [vmem:[%s336 + $0xe0] sm:$0xff] %v3252
        %3381 = vst [vmem:[%s336 + $0xe8] sm:$0xff] %v3253
        %3382 = vst [vmem:[%s336 + $0xf0] sm:$0xff] %v3254
        %3383 = vst [vmem:[%s336 + $0xf8] sm:$0xff] %v3255
        %3384 = vst [vmem:[%s336 + $0x100] sm:$0xff] %v3256
        %3385 = vst [vmem:[%s336 + $0x108] sm:$0xff] %v3257
        %3386 = vst [vmem:[%s336 + $0x110] sm:$0xff] %v3258
        %3387 = vst [vmem:[%s336 + $0x118] sm:$0xff] %v3259
        %3388 = vst [vmem:[%s336 + $0x120] sm:$0xff] %v3260
        %3389 = vst [vmem:[%s336 + $0x128] sm:$0xff] %v3261
        %3390 = vst [vmem:[%s336 + $0x130] sm:$0xff] %v3262
        %3391 = vst [vmem:[%s336 + $0x138] sm:$0xff] %v3263
        %3392 = vst [vmem:[%s336 + $0x140] sm:$0xff] %v3264
        %3393 = vst [vmem:[%s336 + $0x148] sm:$0xff] %v3265
        %3394 = vst [vmem:[%s336 + $0x150] sm:$0xff] %v3266
        %3395 = vst [vmem:[%s336 + $0x158] sm:$0xff] %v3267
        %3396 = vst [vmem:[%s336 + $0x160] sm:$0xff] %v3268
        %3397 = vst [vmem:[%s336 + $0x168] sm:$0xff] %v3269
        %3398 = vst [vmem:[%s336 + $0x170] sm:$0xff] %v3270
        %3399 = vst [vmem:[%s336 + $0x178] sm:$0xff] %v3271
        %3400 = vst [vmem:[%s336 + $0x180] sm:$0xff] %v3272
        %3401 = vst [vmem:[%s336 + $0x188] sm:$0xff] %v3273
        %3402 = vst [vmem:[%s336 + $0x190] sm:$0xff] %v3274
        %3403 = vst [vmem:[%s336 + $0x198] sm:$0xff] %v3275
        %3404 = vst [vmem:[%s336 + $0x1a0] sm:$0xff] %v3276
        %3405 = vst [vmem:[%s336 + $0x1a8] sm:$0xff] %v3277
        %3406 = vst [vmem:[%s336 + $0x1b0] sm:$0xff] %v3278
        %3407 = vst [vmem:[%s336 + $0x1b8] sm:$0xff] %v3279
        %3408 = vst [vmem:[%s336 + $0x1c0] sm:$0xff] %v3280
        %3409 = vst [vmem:[%s336 + $0x1c8] sm:$0xff] %v3281
        %3410 = vst [vmem:[%s336 + $0x1d0] sm:$0xff] %v3282
        %3411 = vst [vmem:[%s336 + $0x1d8] sm:$0xff] %v3283
        %3412 = vst [vmem:[%s336 + $0x1e0] sm:$0xff] %v3284
        %3413 = vst [vmem:[%s336 + $0x1e8] sm:$0xff] %v3285
        %3414 = vst [vmem:[%s336 + $0x1f0] sm:$0xff] %v3286
        %3415 = vst [vmem:[%s336 + $0x1f8] sm:$0xff] %v3287
        %s3416 = sand.u32 %s151, 1
        %s3417 = scalar_lea.sflag [#allocation4], %s3416
        %s3418 = sand.u32 %s151, 1
        %s3419 = smul.addr %s3418, 512
        %s3420 = scalar_lea.vmem [#allocation10], %s3419
        %s3421 = sand.u32 %s179, 1
        %s3422 = scalar_lea.sflag [#allocation12], %s3421
        %s3423 = sand.u32 %s179, 1
        %s3424 = smul.addr %s3423, 512
        %s3425 = scalar_lea.vmem [#allocation11], %s3424
        // Predicated region
        $region53: #{tpu_custom_call.1} parent=35 // pred_check
          %p3426 = pneg %p161
        $region54: #{tpu_custom_call.1} parent=35 // pred_check_branch
          %3428 = sbr.rel (%p3426) target = $region56
        $region55: #{tpu_custom_call.1} parent=35 // pred_region
          %s3429 = smul.u32 64, %s33
          %s3431 = ssub.s32 8192, 8192
          %3432 = vsyncadd %s3417, %s3431
          %s3433 = smul.addr %s3429, 2
          %s3434 = smul.addr %s32, 128
          %s3435 = sadd.s32 %s3433, %s3434
          %s3436 = smul.addr %s3435, 64
          %s3437 = scalar_lea.hbm %s4, %s3436
          %s3438 = sshll.u32 %s3420, 4
          %s3439 = int_to_ptr.vmem [resolvable:$true] %s3438
          %3444 = dma.vmem_to_hbm [thread:$0]  %s3439, 8192, %s3437, %s3417, 128, 128, 8
        $region56: #{tpu_custom_call.1} parent=35 // pred_fallthru
          _
        // Predicated region
        $region57: #{tpu_custom_call.1} parent=35 // pred_check
          %p3445 = pneg %p189
        $region58: #{tpu_custom_call.1} parent=35 // pred_check_branch
          %3447 = sbr.rel (%p3445) target = $region60
        $region59: #{tpu_custom_call.1} parent=35 // pred_region
          %s3448 = smul.u32 64, %s33
          %s3450 = ssub.s32 8192, 8192
          %3451 = vsyncadd %s3422, %s3450
          %s3452 = smul.addr %s3448, 2
          %s3453 = smul.addr %s32, 128
          %s3454 = sadd.s32 %s3452, %s3453
          %s3455 = smul.addr %s3454, 64
          %s3456 = scalar_lea.hbm %s5, %s3455
          %s3457 = sshll.u32 %s3425, 4
          %s3458 = int_to_ptr.vmem [resolvable:$true] %s3457
          %3463 = dma.vmem_to_hbm [thread:$0]  %s3458, 8192, %s3456, %s3422, 128, 128, 8
        $region60: #{tpu_custom_call.1} parent=35 // pred_fallthru
          _
      $region36: #{tpu_custom_call.1} parent=5 // pred_fallthru
        _
      %p3464 = scmp.le.s32.totalorder 2, %s23
      // Predicated region
      $region61: #{tpu_custom_call.1} parent=5 // pred_check
        %p3465 = pneg %p3464
      $region62: #{tpu_custom_call.1} parent=5 // pred_check_branch
        %3467 = sbr.rel (%p3465) target = $region64
      $region63: #{tpu_custom_call.1} parent=5 // pred_region
        %s3468 = ssub.s32 %s23, 2
        // Predicated region
        $region65: #{tpu_custom_call.1} parent=63 // pred_check
          %p3469 = pneg %p167
        $region66: #{tpu_custom_call.1} parent=63 // pred_check_branch
          %3471 = sbr.rel (%p3469) target = $region68
        $region67: #{tpu_custom_call.1} parent=63 // pred_region
          %s3472 = sand.u32 %s152, 1
          %s3473 = scalar_lea.sflag [#allocation4], %s3472
          %s3474 = sand.u32 %s152, 1
          %s3475 = smul.addr %s3474, 512
          %s3476 = scalar_lea.vmem [#allocation10], %s3475
          %3477 = dma.done %s3473, 8192
        $region68: #{tpu_custom_call.1} parent=63 // pred_fallthru
          _
        // Predicated region
        $region69: #{tpu_custom_call.1} parent=63 // pred_check
          %p3478 = pneg %p195
        $region70: #{tpu_custom_call.1} parent=63 // pred_check_branch
          %3480 = sbr.rel (%p3478) target = $region72
        $region71: #{tpu_custom_call.1} parent=63 // pred_region
          %s3481 = sand.u32 %s180, 1
          %s3482 = scalar_lea.sflag [#allocation12], %s3481
          %s3483 = sand.u32 %s180, 1
          %s3484 = smul.addr %s3483, 512
          %s3485 = scalar_lea.vmem [#allocation11], %s3484
          %3486 = dma.done %s3482, 8192
        $region72: #{tpu_custom_call.1} parent=63 // pred_fallthru
          _
      $region64: #{tpu_custom_call.1} parent=5 // pred_fallthru
        _
    $region6: #{tpu_custom_call.1} parent=1 // loop_footer
      %s27 = sadd.s32 1, %s23
    $region7: #{tpu_custom_call.1} parent=1 // loop_footer_branch
      %22 = sbr.rel target = $region3
    $region8: #{tpu_custom_call.1} parent=1 // loop_exit
      _
    %3487 = vsyncpa [#allocation3], 1
    %s3488 = scalar_lea.sflag [#allocation3], 1
    %3489 = vsyncpa %s3488, 1
    %3490 = vsyncpa [#allocation6], 1
    %3491 = vsyncpa [#allocation9], 1
    %3492 = vsyncpa [#allocation4], 1
    %s3493 = scalar_lea.sflag [#allocation4], 1
    %3494 = vsyncpa %s3493, 1
    %3495 = vsyncpa [#allocation12], 1
    %s3496 = scalar_lea.sflag [#allocation12], 1
    %3497 = vsyncpa %s3496, 1

</llo_original>
